<compile_context>
chip_gen: v7x
topology: tpu7x:2x2x1
jax: 0.10.0
libtpu: 0.0.40
codegen_flags: <defaults>
</compile_context>

<pallas_src>
import math

import numpy as np

import jax
import jax.numpy as jnp
from jax.experimental import pallas as pl
from jax.experimental.pallas import tpu as pltpu

# ----------------------------- configuration --------------------------------
B = 2            # batch
C = 4            # image channels
H = 16
W = 16
P = 4            # patch size
NP = (H // P) * (W // P)      # 16 patch tokens per image
PD = C * P * P                # 64  patch dim
NT = NP + 1                   # patch tokens + 1 cond token
NTPAD = 24                    # NT padded to a multiple of 8 sublanes
D = 32                        # latent / tape width
L = 8                         # number of latents
HM = 4 * D                    # MLP hidden (=128, lane dense)
NCLS = 10                     # num classes
TFEAT = 32                    # sinusoidal time-feature dim
TOTAL_ELEMS = B * C * H * W   # = B * NP * PD

F32 = jnp.float32
BF16 = jnp.bfloat16
NEG = -1e30                   # additive mask fill (f32-safe)


# ----------------------------- weight slab layout ----------------------------
def _pad8(n):
    return -(-n // 8) * 8


def _build_sections(parts):
    sec, off = {}, 0
    for name, rows in parts:
        sec[name] = (off, rows)
        off += _pad8(rows)
    return sec, off


# slab with last dim = D (=32); attention weights stacked along sublanes
W32_SEC, W32_ROWS = _build_sections([
    ('w_patch', PD),            # patch embed            (64, 32)
    ('w_time', TFEAT),          # time-feature embed     (32, 32)
    ('w_cls', NCLS),            # class embed            (10, 32)
    ('pos', NP),                # patch pos embedding    (16, 32)
    ('latent0', L),             # learned latent init    ( 8, 32)
    ('attn_qkvo', 3 * 4 * D),   # 3x [Wq; Wk; Wv; Wo]    (384, 32) row-stacked
    ('mlp_w2', 3 * HM),         # 3x MLP second proj     (384, 32)
    ('ln_s', 7),                # 7x LayerNorm scale
    ('ln_b', 7),                # 7x LayerNorm bias
    ('bias_misc', 5),           # b_patch, b_cond, 3x mlp_b2
])

# slab with last dim = 4*D (=128, lane dense) -- used whole, never lane-sliced
W128_SEC, W128_ROWS = _build_sections([
    ('mlp_w1', 3 * D),          # 3x MLP first proj      (96, 128)
    ('mlp_b1', 3),              # 3x MLP first bias      ( 3, 128)
])


# ------------------- trace-time additive attention biases --------------------
def _build_bias_masks():
    lat_b = np.arange(B * L) // L                    # batch id of latent rows
    tape_b = np.arange(B * NTPAD) // NTPAD           # batch id of tape rows
    tape_pos = np.arange(B * NTPAD) % NTPAD          # within-batch tape index
    read = np.where((lat_b[:, None] == tape_b[None, :]) & (tape_pos[None, :] < NT),
                    0.0, NEG).astype(np.float32)     # (B*L, B*NTPAD)
    selfb = np.where(lat_b[:, None] == lat_b[None, :], 0.0, NEG).astype(np.float32)
    write = np.where(tape_b[:, None] == lat_b[None, :], 0.0, NEG).astype(np.float32)
    return read, selfb, write


READ_BIAS, SELF_BIAS, WRITE_BIAS = _build_bias_masks()


# ----------------------------- fused forward kernel --------------------------
def _fused_kernel(imgp_ref, noisep_ref, grow_ref, tfeat_ref, lbl_ref,
                  rbias_ref, sbias_ref, wbias_ref,
                  w32_ref, w128_ref, wout_ref, bout_ref,
                  loss_ref):
    # slab accessors (static offsets -> cheap sublane-aligned VMEM slices)
    def w32(name, i=0, rows=None):
        off, n = W32_SEC[name]
        rows = n if rows is None else rows
        return w32_ref[off + i: off + i + rows, :]

    def w128(name, i=0, rows=None):
        off, n = W128_SEC[name]
        rows = n if rows is None else rows
        return w128_ref[off + i: off + i + rows, :]

    def dot(a, b):      # bf16 MXU operands, f32 accumulation
        return jnp.dot(a.astype(BF16), b.astype(BF16), preferred_element_type=F32)

    def dot_t(a, b):    # a @ b.T without materializing the transpose
        return jax.lax.dot_general(a.astype(BF16), b.astype(BF16),
                                   (((1,), (1,)), ((), ())),
                                   preferred_element_type=F32)

    # ---- noising: images*2-1 ; x_t = sqrt(g)*x + sqrt(1-g)*eps ---------------
    g = grow_ref[...]                                         # (B*NP, 1)
    x_scaled = imgp_ref[...] * 2.0 - 1.0                      # (B*NP, PD) f32
    x_t = jnp.sqrt(g) * x_scaled + jnp.sqrt(1.0 - g) * noisep_ref[...]

    # ---- tape tokens: patch embed + pos, plus conditioning token -------------
    b_patch = w32('bias_misc', 0, 1).astype(F32)              # (1, D)
    b_cond = w32('bias_misc', 1, 1).astype(F32)               # (1, D)
    tok = dot(x_t, w32('w_patch')) + b_patch                  # (B*NP, D) f32
    cond = (dot(tfeat_ref[...], w32('w_time'))
            + dot(lbl_ref[...], w32('w_cls')) + b_cond)       # (B, D) f32

    pos = w32('pos').astype(F32)                              # (NP, D)
    pad = jnp.zeros((NTPAD - NT, D), F32)
    pieces = []
    for b in range(B):
        pieces.append(tok[b * NP:(b + 1) * NP, :] + pos)      # (NP, D)
        pieces.append(cond[b:b + 1, :])                       # (1, D)
        pieces.append(pad)                                    # (NTPAD-NT, D)
    tape = jnp.concatenate(pieces, axis=0)                    # (B*NTPAD, D) f32

    latents = jnp.tile(w32('latent0').astype(F32), (B, 1))    # (B*L, D) f32

    rbias = rbias_ref[...]                                    # (B*L, B*NTPAD)
    sbias = sbias_ref[...]                                    # (B*L, B*L)
    wbias = wbias_ref[...]                                    # (B*NTPAD, B*L)

    # ---- building blocks -----------------------------------------------------
    def layer_norm(i, x):
        s = w32('ln_s', i, 1).astype(F32)
        b = w32('ln_b', i, 1).astype(F32)
        mu = jnp.mean(x, axis=-1, keepdims=True)
        var = jnp.mean(x * x, axis=-1, keepdims=True) - mu * mu
        return (x - mu) * jax.lax.rsqrt(var + 1e-5) * s + b

    def attn(i, xq, xkv, bias):
        base = i * 4 * D
        wq = w32('attn_qkvo', base + 0 * D, D)     # (D, D), 1/sqrt(D) folded in
        wk = w32('attn_qkvo', base + 1 * D, D)
        wv = w32('attn_qkvo', base + 2 * D, D)
        wo = w32('attn_qkvo', base + 3 * D, D)
        q = dot(xq, wq)                            # f32
        k = dot(xkv, wk)
        v = dot(xkv, wv)
        s = dot_t(q, k) + bias                     # f32 scores + additive mask
        s = s - jnp.max(s, axis=-1, keepdims=True)
        p = jnp.exp(s)
        p = p * pl.reciprocal(jnp.sum(p, axis=-1, keepdims=True), approx=True)
        o = dot(p, v)
        return dot(o, wo)

    def mlp(i, x):
        w1 = w128('mlp_w1', i * D, D)                         # (D, HM)
        b1 = w128('mlp_b1', i, 1).astype(F32)                 # (1, HM)
        w2 = w32('mlp_w2', i * HM, HM)                        # (HM, D)
        b2 = w32('bias_misc', 2 + i, 1).astype(F32)           # (1, D)
        h = dot(x, w1) + b1
        h = jax.nn.gelu(h)                                    # f32
        return dot(h, w2) + b2

    # ---- one RIN block: read -> process -> write ------------------------------
    latents = latents + attn(0, layer_norm(0, latents), tape, rbias)
    latents = latents + mlp(0, layer_norm(1, latents))
    latents = latents + attn(1, layer_norm(2, latents), latents, sbias)
    latents = latents + mlp(1, layer_norm(3, latents))
    tape = tape + attn(2, layer_norm(4, tape), latents, wbias)
    tape = tape + mlp(2, layer_norm(5, tape))

    # ---- fused readout: one LN, one matmul, one reduction ---------------------
    pt = jnp.concatenate(
        [tape[b * NTPAD: b * NTPAD + NP, :] for b in range(B)], axis=0)  # (B*NP, D)
    pt = layer_norm(6, pt)
    pred = dot(pt, wout_ref[...]) + bout_ref[...].astype(F32)            # (B*NP, PD)
    data_pred = jnp.clip(pred, -1.0, 1.0)                                # clip_x0=True
    diff = x_scaled - data_pred
    loss_ref[0, 0] = jnp.sum(diff * diff) * (1.0 / float(TOTAL_ELEMS))


def fused_forward_kernel(img_p, noise_p, gamma_rows, tfeat, labels_onehot, prm):
    vmem = pl.BlockSpec(memory_space=pltpu.MemorySpace.VMEM)
    loss = pl.pallas_call(
        _fused_kernel,
        in_specs=[vmem] * 12,
        out_specs=pl.BlockSpec(memory_space=pltpu.MemorySpace.SMEM),
        out_shape=jax.ShapeDtypeStruct((1, 1), F32),
    )(img_p, noise_p, gamma_rows, tfeat, labels_onehot,
      READ_BIAS, SELF_BIAS, WRITE_BIAS,
      prm['w32'], prm['w128'], prm['w_out'], prm['b_out'])
    return loss[0, 0]


# ------------------------------ glue (wrapper-side) --------------------------
def patchify(x):  # (B, C, H, W) -> (B*NP, PD), channel-major within patch
    x = x.reshape(B, C, H // P, P, W // P, P)
    x = x.transpose(0, 2, 4, 1, 3, 5)
    return x.reshape(B * NP, PD)


def time_features(gamma):  # (B,) -> (B, TFEAT) sinusoidal features of gamma
    freqs = jnp.exp(jnp.linspace(0.0, math.log(1000.0), TFEAT // 2)).astype(F32)
    ang = gamma[:, None] * freqs[None, :]
    return jnp.concatenate([jnp.sin(ang), jnp.cos(ang)], axis=-1)


def init_params(key):
    ks = jax.random.split(key, 10)

    def nrm(k, shape, scale=0.02):
        return (scale * jax.random.normal(k, shape)).astype(F32)

    # attention weights: (3 attn, 4 mats [q,k,v,o], D, D), scale folded into Wq
    attn = nrm(ks[5], (3, 4, D, D))
    attn = attn.at[:, 0, :, :].multiply(1.0 / math.sqrt(D))
    attn_qkvo = attn.reshape(3 * 4 * D, D)

    # ---- slab with last dim D ----
    parts32 = {
        'w_patch': nrm(ks[0], (PD, D)),
        'w_time': nrm(ks[1], (TFEAT, D)),
        'w_cls': nrm(ks[2], (NCLS, D)),
        'pos': nrm(ks[3], (NP, D)),
        'latent0': nrm(ks[4], (L, D)),
        'attn_qkvo': attn_qkvo,
        'mlp_w2': nrm(ks[6], (3 * HM, D)),
        'ln_s': jnp.ones((7, D), F32),
        'ln_b': jnp.zeros((7, D), F32),
        'bias_misc': jnp.zeros((5, D), F32),   # b_patch, b_cond, 3x mlp_b2
    }
    w32 = jnp.zeros((W32_ROWS, D), F32)
    for name, arr in parts32.items():
        off, rows = W32_SEC[name]
        w32 = w32.at[off:off + rows].set(arr)

    # ---- slab with last dim 4*D (lane dense, never lane-sliced) ----
    parts128 = {
        'mlp_w1': nrm(ks[7], (3 * D, HM)),
        'mlp_b1': jnp.zeros((3, HM), F32),
    }
    w128 = jnp.zeros((W128_ROWS, HM), F32)
    for name, arr in parts128.items():
        off, rows = W128_SEC[name]
        w128 = w128.at[off:off + rows].set(arr)

    # bf16 storage: native MXU rate + half the weight DMA bytes
    return dict(
        w32=w32.astype(BF16),
        w128=w128.astype(BF16),
        w_out=nrm(ks[8], (D, PD)).astype(BF16),
        b_out=jnp.zeros((1, PD), BF16),
    )


@jax.jit
def rin_diffusion_forward(images, labels_onehot, t_rand, noise, params):
    # Scheduler (train_schedule='cosine'): gamma = cos(pi/2 * t)^2
    gamma = jnp.cos(0.5 * jnp.pi * t_rand) ** 2               # (B,)

    img_p = patchify(images)                                  # (B*NP, PD)
    noise_p = patchify(noise)                                 # (B*NP, PD)
    gamma_rows = jnp.repeat(gamma, NP)[:, None].astype(F32)   # (B*NP, 1)
    tfeat = time_features(gamma)                              # (B, TFEAT)

    # single fused kernel: noise -> RIN denoise -> clip(x0) -> MSE
    return fused_forward_kernel(img_p, noise_p, gamma_rows, tfeat,
                                labels_onehot, params)


# ------------------------------ main -----------------------------------------
if __name__ == "__main__":
    key = jax.random.PRNGKey(0)
    k_img, k_lbl, k_t, k_noise, k_prm = jax.random.split(key, 5)

    images = jax.random.uniform(k_img, (B, C, H, W), dtype=F32)   # NCHW in [0,1]
    labels = jax.random.randint(k_lbl, (B,), 0, NCLS)
    labels_onehot = jax.nn.one_hot(labels, NCLS).astype(F32)      # (B, NCLS)
    t_rand = jax.random.uniform(k_t, (B,), dtype=F32)             # U(0,1)
    noise = jax.random.normal(k_noise, (B, C, H, W), dtype=F32)

    params = init_params(k_prm)

    loss = rin_diffusion_forward(images, labels_onehot, t_rand, noise, params)
    jax.block_until_ready(loss)
    print("KERNEL_OK")
</pallas_src>

<mosaic_0001>
module attributes {stable_mosaic.version = 11 : i64} {
  func.func @_fused_kernel(%arg0: memref<32x64xf32, #tpu.memory_space<vmem>>, %arg1: memref<32x64xf32, #tpu.memory_space<vmem>>, %arg2: memref<32x1xf32, #tpu.memory_space<vmem>>, %arg3: memref<2x32xf32, #tpu.memory_space<vmem>>, %arg4: memref<2x10xf32, #tpu.memory_space<vmem>>, %arg5: memref<16x48xf32, #tpu.memory_space<vmem>>, %arg6: memref<16x16xf32, #tpu.memory_space<vmem>>, %arg7: memref<48x16xf32, #tpu.memory_space<vmem>>, %arg8: memref<928x32xbf16, #tpu.memory_space<vmem>>, %arg9: memref<104x128xbf16, #tpu.memory_space<vmem>>, %arg10: memref<32x64xbf16, #tpu.memory_space<vmem>>, %arg11: memref<1x64xbf16, #tpu.memory_space<vmem>>, %arg12: memref<1x1xf32, #tpu.memory_space<smem>>) attributes {dimension_semantics = [], scalar_prefetch = 0 : i64, scratch_operands = 0 : i64, tpu.core_type = #tpu.core_type<tc>} {
    %c0 = arith.constant 0 : index
    %c0_0 = arith.constant 0 : index
    %0 = vector.load %arg2[%c0, %c0_0] : memref<32x1xf32, #tpu.memory_space<vmem>>, vector<32x1xf32>
    %c0_1 = arith.constant 0 : index
    %c0_2 = arith.constant 0 : index
    %1 = vector.load %arg0[%c0_1, %c0_2] : memref<32x64xf32, #tpu.memory_space<vmem>>, vector<32x64xf32>
    %cst = arith.constant 2.000000e+00 : f32
    %2 = vector.broadcast %cst : f32 to vector<32x64xf32>
    %3 = arith.mulf %1, %2 : vector<32x64xf32>
    %cst_3 = arith.constant 1.000000e+00 : f32
    %4 = vector.broadcast %cst_3 : f32 to vector<32x64xf32>
    %5 = arith.subf %3, %4 : vector<32x64xf32>
    %6 = math.sqrt %0 : vector<32x1xf32>
    %7 = vector.broadcast %6 : vector<32x1xf32> to vector<32x64xf32>
    %8 = arith.mulf %7, %5 : vector<32x64xf32>
    %cst_4 = arith.constant 1.000000e+00 : f32
    %9 = vector.broadcast %cst_4 : f32 to vector<32x1xf32>
    %10 = arith.subf %9, %0 : vector<32x1xf32>
    %11 = math.sqrt %10 : vector<32x1xf32>
    %c0_5 = arith.constant 0 : index
    %c0_6 = arith.constant 0 : index
    %12 = vector.load %arg1[%c0_5, %c0_6] : memref<32x64xf32, #tpu.memory_space<vmem>>, vector<32x64xf32>
    %13 = vector.broadcast %11 : vector<32x1xf32> to vector<32x64xf32>
    %14 = arith.mulf %13, %12 : vector<32x64xf32>
    %15 = arith.addf %8, %14 : vector<32x64xf32>
    %c920 = arith.constant 920 : index
    %c0_7 = arith.constant 0 : index
    %16 = vector.load %arg8[%c920, %c0_7] : memref<928x32xbf16, #tpu.memory_space<vmem>>, vector<1x32xbf16>
    %17 = arith.extf %16 : vector<1x32xbf16> to vector<1x32xf32>
    %c921 = arith.constant 921 : index
    %c0_8 = arith.constant 0 : index
    %18 = vector.load %arg8[%c921, %c0_8] : memref<928x32xbf16, #tpu.memory_space<vmem>>, vector<1x32xbf16>
    %19 = arith.extf %18 : vector<1x32xbf16> to vector<1x32xf32>
    %c0_9 = arith.constant 0 : index
    %c0_10 = arith.constant 0 : index
    %20 = vector.load %arg8[%c0_9, %c0_10] : memref<928x32xbf16, #tpu.memory_space<vmem>>, vector<64x32xbf16>
    %21 = arith.truncf %15 : vector<32x64xf32> to vector<32x64xbf16>
    %cst_11 = arith.constant dense<0.000000e+00> : vector<32x32xf32>
    %22 = tpu.matmul %21, %20, %cst_11 {dimension_numbers = #tpu.dot_dimension_numbers<[1], [0], [0], [1], [0, 0, 1, 1], [], []>} : vector<32x64xbf16>, vector<64x32xbf16>, vector<32x32xf32> -> vector<32x32xf32>
    %23 = vector.broadcast %17 : vector<1x32xf32> to vector<32x32xf32>
    %24 = arith.addf %22, %23 : vector<32x32xf32>
    %c0_12 = arith.constant 0 : index
    %c0_13 = arith.constant 0 : index
    %25 = vector.load %arg3[%c0_12, %c0_13] : memref<2x32xf32, #tpu.memory_space<vmem>>, vector<2x32xf32>
    %c64 = arith.constant 64 : index
    %c0_14 = arith.constant 0 : index
    %26 = vector.load %arg8[%c64, %c0_14] : memref<928x32xbf16, #tpu.memory_space<vmem>>, vector<32x32xbf16>
    %27 = arith.truncf %25 : vector<2x32xf32> to vector<2x32xbf16>
    %cst_15 = arith.constant dense<0.000000e+00> : vector<2x32xf32>
    %28 = tpu.matmul %27, %26, %cst_15 {dimension_numbers = #tpu.dot_dimension_numbers<[1], [0], [0], [1], [0, 0, 1, 1], [], []>} : vector<2x32xbf16>, vector<32x32xbf16>, vector<2x32xf32> -> vector<2x32xf32>
    %c0_16 = arith.constant 0 : index
    %c0_17 = arith.constant 0 : index
    %29 = vector.load %arg4[%c0_16, %c0_17] : memref<2x10xf32, #tpu.memory_space<vmem>>, vector<2x10xf32>
    %c96 = arith.constant 96 : index
    %c0_18 = arith.constant 0 : index
    %30 = vector.load %arg8[%c96, %c0_18] : memref<928x32xbf16, #tpu.memory_space<vmem>>, vector<10x32xbf16>
    %31 = arith.truncf %29 : vector<2x10xf32> to vector<2x10xbf16>
    %cst_19 = arith.constant dense<0.000000e+00> : vector<2x32xf32>
    %32 = tpu.matmul %31, %30, %cst_19 {dimension_numbers = #tpu.dot_dimension_numbers<[1], [0], [0], [1], [0, 0, 1, 1], [], []>} : vector<2x10xbf16>, vector<10x32xbf16>, vector<2x32xf32> -> vector<2x32xf32>
    %33 = arith.addf %28, %32 : vector<2x32xf32>
    %34 = vector.broadcast %19 : vector<1x32xf32> to vector<2x32xf32>
    %35 = arith.addf %33, %34 : vector<2x32xf32>
    %c112 = arith.constant 112 : index
    %c0_20 = arith.constant 0 : index
    %36 = vector.load %arg8[%c112, %c0_20] : memref<928x32xbf16, #tpu.memory_space<vmem>>, vector<16x32xbf16>
    %37 = arith.extf %36 : vector<16x32xbf16> to vector<16x32xf32>
    %cst_21 = arith.constant 0.000000e+00 : f32
    %38 = vector.broadcast %cst_21 : f32 to vector<7x32xf32>
    %39 = vector.extract_strided_slice %24 {offsets = [0, 0], sizes = [16, 32], strides = [1, 1]} : vector<32x32xf32> to vector<16x32xf32>
    %40 = arith.addf %39, %37 : vector<16x32xf32>
    %41 = vector.extract_strided_slice %35 {offsets = [0, 0], sizes = [1, 32], strides = [1, 1]} : vector<2x32xf32> to vector<1x32xf32>
    %42 = vector.extract_strided_slice %24 {offsets = [16, 0], sizes = [16, 32], strides = [1, 1]} : vector<32x32xf32> to vector<16x32xf32>
    %43 = arith.addf %42, %37 : vector<16x32xf32>
    %44 = vector.extract_strided_slice %35 {offsets = [1, 0], sizes = [1, 32], strides = [1, 1]} : vector<2x32xf32> to vector<1x32xf32>
    %45 = tpu.concatenate %40, %41, %38, %43, %44, %38 in 0 : vector<16x32xf32>, vector<1x32xf32>, vector<7x32xf32>, vector<16x32xf32>, vector<1x32xf32>, vector<7x32xf32> -> vector<48x32xf32>
    %c128 = arith.constant 128 : index
    %c0_22 = arith.constant 0 : index
    %46 = vector.load %arg8[%c128, %c0_22] : memref<928x32xbf16, #tpu.memory_space<vmem>>, vector<8x32xbf16>
    %47 = arith.extf %46 : vector<8x32xbf16> to vector<8x32xf32>
    %48 = tpu.concatenate %47, %47 in 0 : vector<8x32xf32>, vector<8x32xf32> -> vector<16x32xf32>
    %c0_23 = arith.constant 0 : index
    %c0_24 = arith.constant 0 : index
    %49 = vector.load %arg5[%c0_23, %c0_24] : memref<16x48xf32, #tpu.memory_space<vmem>>, vector<16x48xf32>
    %c0_25 = arith.constant 0 : index
    %c0_26 = arith.constant 0 : index
    %50 = vector.load %arg6[%c0_25, %c0_26] : memref<16x16xf32, #tpu.memory_space<vmem>>, vector<16x16xf32>
    %c0_27 = arith.constant 0 : index
    %c0_28 = arith.constant 0 : index
    %51 = vector.load %arg7[%c0_27, %c0_28] : memref<48x16xf32, #tpu.memory_space<vmem>>, vector<48x16xf32>
    %c904 = arith.constant 904 : index
    %c0_29 = arith.constant 0 : index
    %52 = vector.load %arg8[%c904, %c0_29] : memref<928x32xbf16, #tpu.memory_space<vmem>>, vector<1x32xbf16>
    %53 = arith.extf %52 : vector<1x32xbf16> to vector<1x32xf32>
    %c912 = arith.constant 912 : index
    %c0_30 = arith.constant 0 : index
    %54 = vector.load %arg8[%c912, %c0_30] : memref<928x32xbf16, #tpu.memory_space<vmem>>, vector<1x32xbf16>
    %55 = arith.extf %54 : vector<1x32xbf16> to vector<1x32xf32>
    %cst_31 = arith.constant dense<0.000000e+00> : vector<16xf32>
    %56 = vector.multi_reduction <add>, %48, %cst_31 [1] : vector<16x32xf32> to vector<16xf32>
    %57 = vector.shape_cast %56 : vector<16xf32> to vector<16x1xf32>
    %cst_32 = arith.constant 3.200000e+01 : f32
    %58 = vector.broadcast %cst_32 : f32 to vector<16x1xf32>
    %59 = arith.divf %57, %58 : vector<16x1xf32>
    %60 = arith.mulf %48, %48 : vector<16x32xf32>
    %cst_33 = arith.constant dense<0.000000e+00> : vector<16xf32>
    %61 = vector.multi_reduction <add>, %60, %cst_33 [1] : vector<16x32xf32> to vector<16xf32>
    %62 = vector.shape_cast %61 : vector<16xf32> to vector<16x1xf32>
    %cst_34 = arith.constant 3.200000e+01 : f32
    %63 = vector.broadcast %cst_34 : f32 to vector<16x1xf32>
    %64 = arith.divf %62, %63 : vector<16x1xf32>
    %65 = arith.mulf %59, %59 : vector<16x1xf32>
    %66 = arith.subf %64, %65 : vector<16x1xf32>
    %67 = vector.broadcast %59 : vector<16x1xf32> to vector<16x32xf32>
    %68 = arith.subf %48, %67 : vector<16x32xf32>
    %cst_35 = arith.constant 9.99999974E-6 : f32
    %69 = vector.broadcast %cst_35 : f32 to vector<16x1xf32>
    %70 = arith.addf %66, %69 : vector<16x1xf32>
    %71 = math.rsqrt %70 : vector<16x1xf32>
    %72 = vector.broadcast %71 : vector<16x1xf32> to vector<16x32xf32>
    %73 = arith.mulf %68, %72 : vector<16x32xf32>
    %74 = vector.broadcast %53 : vector<1x32xf32> to vector<16x32xf32>
    %75 = arith.mulf %73, %74 : vector<16x32xf32>
    %76 = vector.broadcast %55 : vector<1x32xf32> to vector<16x32xf32>
    %77 = arith.addf %75, %76 : vector<16x32xf32>
    %c136 = arith.constant 136 : index
    %c0_36 = arith.constant 0 : index
    %78 = vector.load %arg8[%c136, %c0_36] : memref<928x32xbf16, #tpu.memory_space<vmem>>, vector<32x32xbf16>
    %c168 = arith.constant 168 : index
    %c0_37 = arith.constant 0 : index
    %79 = vector.load %arg8[%c168, %c0_37] : memref<928x32xbf16, #tpu.memory_space<vmem>>, vector<32x32xbf16>
    %c200 = arith.constant 200 : index
    %c0_38 = arith.constant 0 : index
    %80 = vector.load %arg8[%c200, %c0_38] : memref<928x32xbf16, #tpu.memory_space<vmem>>, vector<32x32xbf16>
    %c232 = arith.constant 232 : index
    %c0_39 = arith.constant 0 : index
    %81 = vector.load %arg8[%c232, %c0_39] : memref<928x32xbf16, #tpu.memory_space<vmem>>, vector<32x32xbf16>
    %82 = arith.truncf %77 : vector<16x32xf32> to vector<16x32xbf16>
    %cst_40 = arith.constant dense<0.000000e+00> : vector<16x32xf32>
    %83 = tpu.matmul %82, %78, %cst_40 {dimension_numbers = #tpu.dot_dimension_numbers<[1], [0], [0], [1], [0, 0, 1, 1], [], []>} : vector<16x32xbf16>, vector<32x32xbf16>, vector<16x32xf32> -> vector<16x32xf32>
    %84 = arith.truncf %45 : vector<48x32xf32> to vector<48x32xbf16>
    %cst_41 = arith.constant dense<0.000000e+00> : vector<48x32xf32>
    %85 = tpu.matmul %84, %79, %cst_41 {dimension_numbers = #tpu.dot_dimension_numbers<[1], [0], [0], [1], [0, 0, 1, 1], [], []>} : vector<48x32xbf16>, vector<32x32xbf16>, vector<48x32xf32> -> vector<48x32xf32>
    %86 = arith.truncf %45 : vector<48x32xf32> to vector<48x32xbf16>
    %cst_42 = arith.constant dense<0.000000e+00> : vector<48x32xf32>
    %87 = tpu.matmul %86, %80, %cst_42 {dimension_numbers = #tpu.dot_dimension_numbers<[1], [0], [0], [1], [0, 0, 1, 1], [], []>} : vector<48x32xbf16>, vector<32x32xbf16>, vector<48x32xf32> -> vector<48x32xf32>
    %88 = arith.truncf %83 : vector<16x32xf32> to vector<16x32xbf16>
    %89 = arith.truncf %85 : vector<48x32xf32> to vector<48x32xbf16>
    %cst_43 = arith.constant dense<0.000000e+00> : vector<16x48xf32>
    %90 = tpu.matmul %88, %89, %cst_43 {dimension_numbers = #tpu.dot_dimension_numbers<[1], [1], [0], [0], [0, 0, 1, 0], [], []>} : vector<16x32xbf16>, vector<48x32xbf16>, vector<16x48xf32> -> vector<16x48xf32>
    %91 = arith.addf %90, %49 : vector<16x48xf32>
    %cst_44 = arith.constant dense<0xFF800000> : vector<16xf32>
    %92 = vector.multi_reduction <maximumf>, %91, %cst_44 [1] : vector<16x48xf32> to vector<16xf32>
    %93 = vector.shape_cast %92 : vector<16xf32> to vector<16x1xf32>
    %94 = vector.broadcast %93 : vector<16x1xf32> to vector<16x48xf32>
    %95 = arith.subf %91, %94 : vector<16x48xf32>
    %96 = math.exp %95 : vector<16x48xf32>
    %cst_45 = arith.constant dense<0.000000e+00> : vector<16xf32>
    %97 = vector.multi_reduction <add>, %96, %cst_45 [1] : vector<16x48xf32> to vector<16xf32>
    %98 = vector.shape_cast %97 : vector<16xf32> to vector<16x1xf32>
    %99 = tpu.reciprocal %98 {approx = true} : vector<16x1xf32> -> vector<16x1xf32>
    %100 = vector.broadcast %99 : vector<16x1xf32> to vector<16x48xf32>
    %101 = arith.mulf %96, %100 : vector<16x48xf32>
    %102 = arith.truncf %101 : vector<16x48xf32> to vector<16x48xbf16>
    %103 = arith.truncf %87 : vector<48x32xf32> to vector<48x32xbf16>
    %cst_46 = arith.constant dense<0.000000e+00> : vector<16x32xf32>
    %104 = tpu.matmul %102, %103, %cst_46 {dimension_numbers = #tpu.dot_dimension_numbers<[1], [0], [0], [1], [0, 0, 1, 1], [], []>} : vector<16x48xbf16>, vector<48x32xbf16>, vector<16x32xf32> -> vector<16x32xf32>
    %105 = arith.truncf %104 : vector<16x32xf32> to vector<16x32xbf16>
    %cst_47 = arith.constant dense<0.000000e+00> : vector<16x32xf32>
    %106 = tpu.matmul %105, %81, %cst_47 {dimension_numbers = #tpu.dot_dimension_numbers<[1], [0], [0], [1], [0, 0, 1, 1], [], []>} : vector<16x32xbf16>, vector<32x32xbf16>, vector<16x32xf32> -> vector<16x32xf32>
    %107 = arith.addf %48, %106 : vector<16x32xf32>
    %c905 = arith.constant 905 : index
    %c0_48 = arith.constant 0 : index
    %108 = vector.load %arg8[%c905, %c0_48] : memref<928x32xbf16, #tpu.memory_space<vmem>>, vector<1x32xbf16>
    %109 = arith.extf %108 : vector<1x32xbf16> to vector<1x32xf32>
    %c913 = arith.constant 913 : index
    %c0_49 = arith.constant 0 : index
    %110 = vector.load %arg8[%c913, %c0_49] : memref<928x32xbf16, #tpu.memory_space<vmem>>, vector<1x32xbf16>
    %111 = arith.extf %110 : vector<1x32xbf16> to vector<1x32xf32>
    %cst_50 = arith.constant dense<0.000000e+00> : vector<16xf32>
    %112 = vector.multi_reduction <add>, %107, %cst_50 [1] : vector<16x32xf32> to vector<16xf32>
    %113 = vector.shape_cast %112 : vector<16xf32> to vector<16x1xf32>
    %cst_51 = arith.constant 3.200000e+01 : f32
    %114 = vector.broadcast %cst_51 : f32 to vector<16x1xf32>
    %115 = arith.divf %113, %114 : vector<16x1xf32>
    %116 = arith.mulf %107, %107 : vector<16x32xf32>
    %cst_52 = arith.constant dense<0.000000e+00> : vector<16xf32>
    %117 = vector.multi_reduction <add>, %116, %cst_52 [1] : vector<16x32xf32> to vector<16xf32>
    %118 = vector.shape_cast %117 : vector<16xf32> to vector<16x1xf32>
    %cst_53 = arith.constant 3.200000e+01 : f32
    %119 = vector.broadcast %cst_53 : f32 to vector<16x1xf32>
    %120 = arith.divf %118, %119 : vector<16x1xf32>
    %121 = arith.mulf %115, %115 : vector<16x1xf32>
    %122 = arith.subf %120, %121 : vector<16x1xf32>
    %123 = vector.broadcast %115 : vector<16x1xf32> to vector<16x32xf32>
    %124 = arith.subf %107, %123 : vector<16x32xf32>
    %cst_54 = arith.constant 9.99999974E-6 : f32
    %125 = vector.broadcast %cst_54 : f32 to vector<16x1xf32>
    %126 = arith.addf %122, %125 : vector<16x1xf32>
    %127 = math.rsqrt %126 : vector<16x1xf32>
    %128 = vector.broadcast %127 : vector<16x1xf32> to vector<16x32xf32>
    %129 = arith.mulf %124, %128 : vector<16x32xf32>
    %130 = vector.broadcast %109 : vector<1x32xf32> to vector<16x32xf32>
    %131 = arith.mulf %129, %130 : vector<16x32xf32>
    %132 = vector.broadcast %111 : vector<1x32xf32> to vector<16x32xf32>
    %133 = arith.addf %131, %132 : vector<16x32xf32>
    %c0_55 = arith.constant 0 : index
    %c0_56 = arith.constant 0 : index
    %134 = vector.load %arg9[%c0_55, %c0_56] : memref<104x128xbf16, #tpu.memory_space<vmem>>, vector<32x128xbf16>
    %c96_57 = arith.constant 96 : index
    %c0_58 = arith.constant 0 : index
    %135 = vector.load %arg9[%c96_57, %c0_58] : memref<104x128xbf16, #tpu.memory_space<vmem>>, vector<1x128xbf16>
    %136 = arith.extf %135 : vector<1x128xbf16> to vector<1x128xf32>
    %c520 = arith.constant 520 : index
    %c0_59 = arith.constant 0 : index
    %137 = vector.load %arg8[%c520, %c0_59] : memref<928x32xbf16, #tpu.memory_space<vmem>>, vector<128x32xbf16>
    %c922 = arith.constant 922 : index
    %c0_60 = arith.constant 0 : index
    %138 = vector.load %arg8[%c922, %c0_60] : memref<928x32xbf16, #tpu.memory_space<vmem>>, vector<1x32xbf16>
    %139 = arith.extf %138 : vector<1x32xbf16> to vector<1x32xf32>
    %140 = arith.truncf %133 : vector<16x32xf32> to vector<16x32xbf16>
    %cst_61 = arith.constant dense<0.000000e+00> : vector<16x128xf32>
    %141 = tpu.matmul %140, %134, %cst_61 {dimension_numbers = #tpu.dot_dimension_numbers<[1], [0], [0], [1], [0, 0, 1, 1], [], []>} : vector<16x32xbf16>, vector<32x128xbf16>, vector<16x128xf32> -> vector<16x128xf32>
    %142 = vector.broadcast %136 : vector<1x128xf32> to vector<16x128xf32>
    %143 = arith.addf %141, %142 : vector<16x128xf32>
    %144 = arith.mulf %143, %143 : vector<16x128xf32>
    %145 = arith.mulf %143, %144 : vector<16x128xf32>
    %cst_62 = arith.constant 4.471500e-02 : f32
    %146 = vector.broadcast %cst_62 : f32 to vector<16x128xf32>
    %147 = arith.mulf %146, %145 : vector<16x128xf32>
    %148 = arith.addf %143, %147 : vector<16x128xf32>
    %cst_63 = arith.constant 0.797884583 : f32
    %149 = vector.broadcast %cst_63 : f32 to vector<16x128xf32>
    %150 = arith.mulf %149, %148 : vector<16x128xf32>
    %151 = math.tanh %150 : vector<16x128xf32>
    %cst_64 = arith.constant 1.000000e+00 : f32
    %152 = vector.broadcast %cst_64 : f32 to vector<16x128xf32>
    %153 = arith.addf %152, %151 : vector<16x128xf32>
    %cst_65 = arith.constant 5.000000e-01 : f32
    %154 = vector.broadcast %cst_65 : f32 to vector<16x128xf32>
    %155 = arith.mulf %154, %153 : vector<16x128xf32>
    %156 = arith.mulf %143, %155 : vector<16x128xf32>
    %157 = arith.truncf %156 : vector<16x128xf32> to vector<16x128xbf16>
    %cst_66 = arith.constant dense<0.000000e+00> : vector<16x32xf32>
    %158 = tpu.matmul %157, %137, %cst_66 {dimension_numbers = #tpu.dot_dimension_numbers<[1], [0], [0], [1], [0, 0, 1, 1], [], []>} : vector<16x128xbf16>, vector<128x32xbf16>, vector<16x32xf32> -> vector<16x32xf32>
    %159 = vector.broadcast %139 : vector<1x32xf32> to vector<16x32xf32>
    %160 = arith.addf %158, %159 : vector<16x32xf32>
    %161 = arith.addf %107, %160 : vector<16x32xf32>
    %c906 = arith.constant 906 : index
    %c0_67 = arith.constant 0 : index
    %162 = vector.load %arg8[%c906, %c0_67] : memref<928x32xbf16, #tpu.memory_space<vmem>>, vector<1x32xbf16>
    %163 = arith.extf %162 : vector<1x32xbf16> to vector<1x32xf32>
    %c914 = arith.constant 914 : index
    %c0_68 = arith.constant 0 : index
    %164 = vector.load %arg8[%c914, %c0_68] : memref<928x32xbf16, #tpu.memory_space<vmem>>, vector<1x32xbf16>
    %165 = arith.extf %164 : vector<1x32xbf16> to vector<1x32xf32>
    %cst_69 = arith.constant dense<0.000000e+00> : vector<16xf32>
    %166 = vector.multi_reduction <add>, %161, %cst_69 [1] : vector<16x32xf32> to vector<16xf32>
    %167 = vector.shape_cast %166 : vector<16xf32> to vector<16x1xf32>
    %cst_70 = arith.constant 3.200000e+01 : f32
    %168 = vector.broadcast %cst_70 : f32 to vector<16x1xf32>
    %169 = arith.divf %167, %168 : vector<16x1xf32>
    %170 = arith.mulf %161, %161 : vector<16x32xf32>
    %cst_71 = arith.constant dense<0.000000e+00> : vector<16xf32>
    %171 = vector.multi_reduction <add>, %170, %cst_71 [1] : vector<16x32xf32> to vector<16xf32>
    %172 = vector.shape_cast %171 : vector<16xf32> to vector<16x1xf32>
    %cst_72 = arith.constant 3.200000e+01 : f32
    %173 = vector.broadcast %cst_72 : f32 to vector<16x1xf32>
    %174 = arith.divf %172, %173 : vector<16x1xf32>
    %175 = arith.mulf %169, %169 : vector<16x1xf32>
    %176 = arith.subf %174, %175 : vector<16x1xf32>
    %177 = vector.broadcast %169 : vector<16x1xf32> to vector<16x32xf32>
    %178 = arith.subf %161, %177 : vector<16x32xf32>
    %cst_73 = arith.constant 9.99999974E-6 : f32
    %179 = vector.broadcast %cst_73 : f32 to vector<16x1xf32>
    %180 = arith.addf %176, %179 : vector<16x1xf32>
    %181 = math.rsqrt %180 : vector<16x1xf32>
    %182 = vector.broadcast %181 : vector<16x1xf32> to vector<16x32xf32>
    %183 = arith.mulf %178, %182 : vector<16x32xf32>
    %184 = vector.broadcast %163 : vector<1x32xf32> to vector<16x32xf32>
    %185 = arith.mulf %183, %184 : vector<16x32xf32>
    %186 = vector.broadcast %165 : vector<1x32xf32> to vector<16x32xf32>
    %187 = arith.addf %185, %186 : vector<16x32xf32>
    %c264 = arith.constant 264 : index
    %c0_74 = arith.constant 0 : index
    %188 = vector.load %arg8[%c264, %c0_74] : memref<928x32xbf16, #tpu.memory_space<vmem>>, vector<32x32xbf16>
    %c296 = arith.constant 296 : index
    %c0_75 = arith.constant 0 : index
    %189 = vector.load %arg8[%c296, %c0_75] : memref<928x32xbf16, #tpu.memory_space<vmem>>, vector<32x32xbf16>
    %c328 = arith.constant 328 : index
    %c0_76 = arith.constant 0 : index
    %190 = vector.load %arg8[%c328, %c0_76] : memref<928x32xbf16, #tpu.memory_space<vmem>>, vector<32x32xbf16>
    %c360 = arith.constant 360 : index
    %c0_77 = arith.constant 0 : index
    %191 = vector.load %arg8[%c360, %c0_77] : memref<928x32xbf16, #tpu.memory_space<vmem>>, vector<32x32xbf16>
    %192 = arith.truncf %187 : vector<16x32xf32> to vector<16x32xbf16>
    %cst_78 = arith.constant dense<0.000000e+00> : vector<16x32xf32>
    %193 = tpu.matmul %192, %188, %cst_78 {dimension_numbers = #tpu.dot_dimension_numbers<[1], [0], [0], [1], [0, 0, 1, 1], [], []>} : vector<16x32xbf16>, vector<32x32xbf16>, vector<16x32xf32> -> vector<16x32xf32>
    %194 = arith.truncf %161 : vector<16x32xf32> to vector<16x32xbf16>
    %cst_79 = arith.constant dense<0.000000e+00> : vector<16x32xf32>
    %195 = tpu.matmul %194, %189, %cst_79 {dimension_numbers = #tpu.dot_dimension_numbers<[1], [0], [0], [1], [0, 0, 1, 1], [], []>} : vector<16x32xbf16>, vector<32x32xbf16>, vector<16x32xf32> -> vector<16x32xf32>
    %196 = arith.truncf %161 : vector<16x32xf32> to vector<16x32xbf16>
    %cst_80 = arith.constant dense<0.000000e+00> : vector<16x32xf32>
    %197 = tpu.matmul %196, %190, %cst_80 {dimension_numbers = #tpu.dot_dimension_numbers<[1], [0], [0], [1], [0, 0, 1, 1], [], []>} : vector<16x32xbf16>, vector<32x32xbf16>, vector<16x32xf32> -> vector<16x32xf32>
    %198 = arith.truncf %193 : vector<16x32xf32> to vector<16x32xbf16>
    %199 = arith.truncf %195 : vector<16x32xf32> to vector<16x32xbf16>
    %cst_81 = arith.constant dense<0.000000e+00> : vector<16x16xf32>
    %200 = tpu.matmul %198, %199, %cst_81 {dimension_numbers = #tpu.dot_dimension_numbers<[1], [1], [0], [0], [0, 0, 1, 0], [], []>} : vector<16x32xbf16>, vector<16x32xbf16>, vector<16x16xf32> -> vector<16x16xf32>
    %201 = arith.addf %200, %50 : vector<16x16xf32>
    %cst_82 = arith.constant dense<0xFF800000> : vector<16xf32>
    %202 = vector.multi_reduction <maximumf>, %201, %cst_82 [1] : vector<16x16xf32> to vector<16xf32>
    %203 = vector.shape_cast %202 : vector<16xf32> to vector<16x1xf32>
    %204 = vector.broadcast %203 : vector<16x1xf32> to vector<16x16xf32>
    %205 = arith.subf %201, %204 : vector<16x16xf32>
    %206 = math.exp %205 : vector<16x16xf32>
    %cst_83 = arith.constant dense<0.000000e+00> : vector<16xf32>
    %207 = vector.multi_reduction <add>, %206, %cst_83 [1] : vector<16x16xf32> to vector<16xf32>
    %208 = vector.shape_cast %207 : vector<16xf32> to vector<16x1xf32>
    %209 = tpu.reciprocal %208 {approx = true} : vector<16x1xf32> -> vector<16x1xf32>
    %210 = vector.broadcast %209 : vector<16x1xf32> to vector<16x16xf32>
    %211 = arith.mulf %206, %210 : vector<16x16xf32>
    %212 = arith.truncf %211 : vector<16x16xf32> to vector<16x16xbf16>
    %213 = arith.truncf %197 : vector<16x32xf32> to vector<16x32xbf16>
    %cst_84 = arith.constant dense<0.000000e+00> : vector<16x32xf32>
    %214 = tpu.matmul %212, %213, %cst_84 {dimension_numbers = #tpu.dot_dimension_numbers<[1], [0], [0], [1], [0, 0, 1, 1], [], []>} : vector<16x16xbf16>, vector<16x32xbf16>, vector<16x32xf32> -> vector<16x32xf32>
    %215 = arith.truncf %214 : vector<16x32xf32> to vector<16x32xbf16>
    %cst_85 = arith.constant dense<0.000000e+00> : vector<16x32xf32>
    %216 = tpu.matmul %215, %191, %cst_85 {dimension_numbers = #tpu.dot_dimension_numbers<[1], [0], [0], [1], [0, 0, 1, 1], [], []>} : vector<16x32xbf16>, vector<32x32xbf16>, vector<16x32xf32> -> vector<16x32xf32>
    %217 = arith.addf %161, %216 : vector<16x32xf32>
    %c907 = arith.constant 907 : index
    %c0_86 = arith.constant 0 : index
    %218 = vector.load %arg8[%c907, %c0_86] : memref<928x32xbf16, #tpu.memory_space<vmem>>, vector<1x32xbf16>
    %219 = arith.extf %218 : vector<1x32xbf16> to vector<1x32xf32>
    %c915 = arith.constant 915 : index
    %c0_87 = arith.constant 0 : index
    %220 = vector.load %arg8[%c915, %c0_87] : memref<928x32xbf16, #tpu.memory_space<vmem>>, vector<1x32xbf16>
    %221 = arith.extf %220 : vector<1x32xbf16> to vector<1x32xf32>
    %cst_88 = arith.constant dense<0.000000e+00> : vector<16xf32>
    %222 = vector.multi_reduction <add>, %217, %cst_88 [1] : vector<16x32xf32> to vector<16xf32>
    %223 = vector.shape_cast %222 : vector<16xf32> to vector<16x1xf32>
    %cst_89 = arith.constant 3.200000e+01 : f32
    %224 = vector.broadcast %cst_89 : f32 to vector<16x1xf32>
    %225 = arith.divf %223, %224 : vector<16x1xf32>
    %226 = arith.mulf %217, %217 : vector<16x32xf32>
    %cst_90 = arith.constant dense<0.000000e+00> : vector<16xf32>
    %227 = vector.multi_reduction <add>, %226, %cst_90 [1] : vector<16x32xf32> to vector<16xf32>
    %228 = vector.shape_cast %227 : vector<16xf32> to vector<16x1xf32>
    %cst_91 = arith.constant 3.200000e+01 : f32
    %229 = vector.broadcast %cst_91 : f32 to vector<16x1xf32>
    %230 = arith.divf %228, %229 : vector<16x1xf32>
    %231 = arith.mulf %225, %225 : vector<16x1xf32>
    %232 = arith.subf %230, %231 : vector<16x1xf32>
    %233 = vector.broadcast %225 : vector<16x1xf32> to vector<16x32xf32>
    %234 = arith.subf %217, %233 : vector<16x32xf32>
    %cst_92 = arith.constant 9.99999974E-6 : f32
    %235 = vector.broadcast %cst_92 : f32 to vector<16x1xf32>
    %236 = arith.addf %232, %235 : vector<16x1xf32>
    %237 = math.rsqrt %236 : vector<16x1xf32>
    %238 = vector.broadcast %237 : vector<16x1xf32> to vector<16x32xf32>
    %239 = arith.mulf %234, %238 : vector<16x32xf32>
    %240 = vector.broadcast %219 : vector<1x32xf32> to vector<16x32xf32>
    %241 = arith.mulf %239, %240 : vector<16x32xf32>
    %242 = vector.broadcast %221 : vector<1x32xf32> to vector<16x32xf32>
    %243 = arith.addf %241, %242 : vector<16x32xf32>
    %c32 = arith.constant 32 : index
    %c0_93 = arith.constant 0 : index
    %244 = vector.load %arg9[%c32, %c0_93] : memref<104x128xbf16, #tpu.memory_space<vmem>>, vector<32x128xbf16>
    %c97 = arith.constant 97 : index
    %c0_94 = arith.constant 0 : index
    %245 = vector.load %arg9[%c97, %c0_94] : memref<104x128xbf16, #tpu.memory_space<vmem>>, vector<1x128xbf16>
    %246 = arith.extf %245 : vector<1x128xbf16> to vector<1x128xf32>
    %c648 = arith.constant 648 : index
    %c0_95 = arith.constant 0 : index
    %247 = vector.load %arg8[%c648, %c0_95] : memref<928x32xbf16, #tpu.memory_space<vmem>>, vector<128x32xbf16>
    %c923 = arith.constant 923 : index
    %c0_96 = arith.constant 0 : index
    %248 = vector.load %arg8[%c923, %c0_96] : memref<928x32xbf16, #tpu.memory_space<vmem>>, vector<1x32xbf16>
    %249 = arith.extf %248 : vector<1x32xbf16> to vector<1x32xf32>
    %250 = arith.truncf %243 : vector<16x32xf32> to vector<16x32xbf16>
    %cst_97 = arith.constant dense<0.000000e+00> : vector<16x128xf32>
    %251 = tpu.matmul %250, %244, %cst_97 {dimension_numbers = #tpu.dot_dimension_numbers<[1], [0], [0], [1], [0, 0, 1, 1], [], []>} : vector<16x32xbf16>, vector<32x128xbf16>, vector<16x128xf32> -> vector<16x128xf32>
    %252 = vector.broadcast %246 : vector<1x128xf32> to vector<16x128xf32>
    %253 = arith.addf %251, %252 : vector<16x128xf32>
    %254 = arith.mulf %253, %253 : vector<16x128xf32>
    %255 = arith.mulf %253, %254 : vector<16x128xf32>
    %cst_98 = arith.constant 4.471500e-02 : f32
    %256 = vector.broadcast %cst_98 : f32 to vector<16x128xf32>
    %257 = arith.mulf %256, %255 : vector<16x128xf32>
    %258 = arith.addf %253, %257 : vector<16x128xf32>
    %cst_99 = arith.constant 0.797884583 : f32
    %259 = vector.broadcast %cst_99 : f32 to vector<16x128xf32>
    %260 = arith.mulf %259, %258 : vector<16x128xf32>
    %261 = math.tanh %260 : vector<16x128xf32>
    %cst_100 = arith.constant 1.000000e+00 : f32
    %262 = vector.broadcast %cst_100 : f32 to vector<16x128xf32>
    %263 = arith.addf %262, %261 : vector<16x128xf32>
    %cst_101 = arith.constant 5.000000e-01 : f32
    %264 = vector.broadcast %cst_101 : f32 to vector<16x128xf32>
    %265 = arith.mulf %264, %263 : vector<16x128xf32>
    %266 = arith.mulf %253, %265 : vector<16x128xf32>
    %267 = arith.truncf %266 : vector<16x128xf32> to vector<16x128xbf16>
    %cst_102 = arith.constant dense<0.000000e+00> : vector<16x32xf32>
    %268 = tpu.matmul %267, %247, %cst_102 {dimension_numbers = #tpu.dot_dimension_numbers<[1], [0], [0], [1], [0, 0, 1, 1], [], []>} : vector<16x128xbf16>, vector<128x32xbf16>, vector<16x32xf32> -> vector<16x32xf32>
    %269 = vector.broadcast %249 : vector<1x32xf32> to vector<16x32xf32>
    %270 = arith.addf %268, %269 : vector<16x32xf32>
    %271 = arith.addf %217, %270 : vector<16x32xf32>
    %c908 = arith.constant 908 : index
    %c0_103 = arith.constant 0 : index
    %272 = vector.load %arg8[%c908, %c0_103] : memref<928x32xbf16, #tpu.memory_space<vmem>>, vector<1x32xbf16>
    %273 = arith.extf %272 : vector<1x32xbf16> to vector<1x32xf32>
    %c916 = arith.constant 916 : index
    %c0_104 = arith.constant 0 : index
    %274 = vector.load %arg8[%c916, %c0_104] : memref<928x32xbf16, #tpu.memory_space<vmem>>, vector<1x32xbf16>
    %275 = arith.extf %274 : vector<1x32xbf16> to vector<1x32xf32>
    %cst_105 = arith.constant dense<0.000000e+00> : vector<48xf32>
    %276 = vector.multi_reduction <add>, %45, %cst_105 [1] : vector<48x32xf32> to vector<48xf32>
    %277 = vector.shape_cast %276 : vector<48xf32> to vector<48x1xf32>
    %cst_106 = arith.constant 3.200000e+01 : f32
    %278 = vector.broadcast %cst_106 : f32 to vector<48x1xf32>
    %279 = arith.divf %277, %278 : vector<48x1xf32>
    %280 = arith.mulf %45, %45 : vector<48x32xf32>
    %cst_107 = arith.constant dense<0.000000e+00> : vector<48xf32>
    %281 = vector.multi_reduction <add>, %280, %cst_107 [1] : vector<48x32xf32> to vector<48xf32>
    %282 = vector.shape_cast %281 : vector<48xf32> to vector<48x1xf32>
    %cst_108 = arith.constant 3.200000e+01 : f32
    %283 = vector.broadcast %cst_108 : f32 to vector<48x1xf32>
    %284 = arith.divf %282, %283 : vector<48x1xf32>
    %285 = arith.mulf %279, %279 : vector<48x1xf32>
    %286 = arith.subf %284, %285 : vector<48x1xf32>
    %287 = vector.broadcast %279 : vector<48x1xf32> to vector<48x32xf32>
    %288 = arith.subf %45, %287 : vector<48x32xf32>
    %cst_109 = arith.constant 9.99999974E-6 : f32
    %289 = vector.broadcast %cst_109 : f32 to vector<48x1xf32>
    %290 = arith.addf %286, %289 : vector<48x1xf32>
    %291 = math.rsqrt %290 : vector<48x1xf32>
    %292 = vector.broadcast %291 : vector<48x1xf32> to vector<48x32xf32>
    %293 = arith.mulf %288, %292 : vector<48x32xf32>
    %294 = vector.broadcast %273 : vector<1x32xf32> to vector<48x32xf32>
    %295 = arith.mulf %293, %294 : vector<48x32xf32>
    %296 = vector.broadcast %275 : vector<1x32xf32> to vector<48x32xf32>
    %297 = arith.addf %295, %296 : vector<48x32xf32>
    %c392 = arith.constant 392 : index
    %c0_110 = arith.constant 0 : index
    %298 = vector.load %arg8[%c392, %c0_110] : memref<928x32xbf16, #tpu.memory_space<vmem>>, vector<32x32xbf16>
    %c424 = arith.constant 424 : index
    %c0_111 = arith.constant 0 : index
    %299 = vector.load %arg8[%c424, %c0_111] : memref<928x32xbf16, #tpu.memory_space<vmem>>, vector<32x32xbf16>
    %c456 = arith.constant 456 : index
    %c0_112 = arith.constant 0 : index
    %300 = vector.load %arg8[%c456, %c0_112] : memref<928x32xbf16, #tpu.memory_space<vmem>>, vector<32x32xbf16>
    %c488 = arith.constant 488 : index
    %c0_113 = arith.constant 0 : index
    %301 = vector.load %arg8[%c488, %c0_113] : memref<928x32xbf16, #tpu.memory_space<vmem>>, vector<32x32xbf16>
    %302 = arith.truncf %297 : vector<48x32xf32> to vector<48x32xbf16>
    %cst_114 = arith.constant dense<0.000000e+00> : vector<48x32xf32>
    %303 = tpu.matmul %302, %298, %cst_114 {dimension_numbers = #tpu.dot_dimension_numbers<[1], [0], [0], [1], [0, 0, 1, 1], [], []>} : vector<48x32xbf16>, vector<32x32xbf16>, vector<48x32xf32> -> vector<48x32xf32>
    %304 = arith.truncf %271 : vector<16x32xf32> to vector<16x32xbf16>
    %cst_115 = arith.constant dense<0.000000e+00> : vector<16x32xf32>
    %305 = tpu.matmul %304, %299, %cst_115 {dimension_numbers = #tpu.dot_dimension_numbers<[1], [0], [0], [1], [0, 0, 1, 1], [], []>} : vector<16x32xbf16>, vector<32x32xbf16>, vector<16x32xf32> -> vector<16x32xf32>
    %306 = arith.truncf %271 : vector<16x32xf32> to vector<16x32xbf16>
    %cst_116 = arith.constant dense<0.000000e+00> : vector<16x32xf32>
    %307 = tpu.matmul %306, %300, %cst_116 {dimension_numbers = #tpu.dot_dimension_numbers<[1], [0], [0], [1], [0, 0, 1, 1], [], []>} : vector<16x32xbf16>, vector<32x32xbf16>, vector<16x32xf32> -> vector<16x32xf32>
    %308 = arith.truncf %303 : vector<48x32xf32> to vector<48x32xbf16>
    %309 = arith.truncf %305 : vector<16x32xf32> to vector<16x32xbf16>
    %cst_117 = arith.constant dense<0.000000e+00> : vector<48x16xf32>
    %310 = tpu.matmul %308, %309, %cst_117 {dimension_numbers = #tpu.dot_dimension_numbers<[1], [1], [0], [0], [0, 0, 1, 0], [], []>} : vector<48x32xbf16>, vector<16x32xbf16>, vector<48x16xf32> -> vector<48x16xf32>
    %311 = arith.addf %310, %51 : vector<48x16xf32>
    %cst_118 = arith.constant dense<0xFF800000> : vector<48xf32>
    %312 = vector.multi_reduction <maximumf>, %311, %cst_118 [1] : vector<48x16xf32> to vector<48xf32>
    %313 = vector.shape_cast %312 : vector<48xf32> to vector<48x1xf32>
    %314 = vector.broadcast %313 : vector<48x1xf32> to vector<48x16xf32>
    %315 = arith.subf %311, %314 : vector<48x16xf32>
    %316 = math.exp %315 : vector<48x16xf32>
    %cst_119 = arith.constant dense<0.000000e+00> : vector<48xf32>
    %317 = vector.multi_reduction <add>, %316, %cst_119 [1] : vector<48x16xf32> to vector<48xf32>
    %318 = vector.shape_cast %317 : vector<48xf32> to vector<48x1xf32>
    %319 = tpu.reciprocal %318 {approx = true} : vector<48x1xf32> -> vector<48x1xf32>
    %320 = vector.broadcast %319 : vector<48x1xf32> to vector<48x16xf32>
    %321 = arith.mulf %316, %320 : vector<48x16xf32>
    %322 = arith.truncf %321 : vector<48x16xf32> to vector<48x16xbf16>
    %323 = arith.truncf %307 : vector<16x32xf32> to vector<16x32xbf16>
    %cst_120 = arith.constant dense<0.000000e+00> : vector<48x32xf32>
    %324 = tpu.matmul %322, %323, %cst_120 {dimension_numbers = #tpu.dot_dimension_numbers<[1], [0], [0], [1], [0, 0, 1, 1], [], []>} : vector<48x16xbf16>, vector<16x32xbf16>, vector<48x32xf32> -> vector<48x32xf32>
    %325 = arith.truncf %324 : vector<48x32xf32> to vector<48x32xbf16>
    %cst_121 = arith.constant dense<0.000000e+00> : vector<48x32xf32>
    %326 = tpu.matmul %325, %301, %cst_121 {dimension_numbers = #tpu.dot_dimension_numbers<[1], [0], [0], [1], [0, 0, 1, 1], [], []>} : vector<48x32xbf16>, vector<32x32xbf16>, vector<48x32xf32> -> vector<48x32xf32>
    %327 = arith.addf %45, %326 : vector<48x32xf32>
    %c909 = arith.constant 909 : index
    %c0_122 = arith.constant 0 : index
    %328 = vector.load %arg8[%c909, %c0_122] : memref<928x32xbf16, #tpu.memory_space<vmem>>, vector<1x32xbf16>
    %329 = arith.extf %328 : vector<1x32xbf16> to vector<1x32xf32>
    %c917 = arith.constant 917 : index
    %c0_123 = arith.constant 0 : index
    %330 = vector.load %arg8[%c917, %c0_123] : memref<928x32xbf16, #tpu.memory_space<vmem>>, vector<1x32xbf16>
    %331 = arith.extf %330 : vector<1x32xbf16> to vector<1x32xf32>
    %cst_124 = arith.constant dense<0.000000e+00> : vector<48xf32>
    %332 = vector.multi_reduction <add>, %327, %cst_124 [1] : vector<48x32xf32> to vector<48xf32>
    %333 = vector.shape_cast %332 : vector<48xf32> to vector<48x1xf32>
    %cst_125 = arith.constant 3.200000e+01 : f32
    %334 = vector.broadcast %cst_125 : f32 to vector<48x1xf32>
    %335 = arith.divf %333, %334 : vector<48x1xf32>
    %336 = arith.mulf %327, %327 : vector<48x32xf32>
    %cst_126 = arith.constant dense<0.000000e+00> : vector<48xf32>
    %337 = vector.multi_reduction <add>, %336, %cst_126 [1] : vector<48x32xf32> to vector<48xf32>
    %338 = vector.shape_cast %337 : vector<48xf32> to vector<48x1xf32>
    %cst_127 = arith.constant 3.200000e+01 : f32
    %339 = vector.broadcast %cst_127 : f32 to vector<48x1xf32>
    %340 = arith.divf %338, %339 : vector<48x1xf32>
    %341 = arith.mulf %335, %335 : vector<48x1xf32>
    %342 = arith.subf %340, %341 : vector<48x1xf32>
    %343 = vector.broadcast %335 : vector<48x1xf32> to vector<48x32xf32>
    %344 = arith.subf %327, %343 : vector<48x32xf32>
    %cst_128 = arith.constant 9.99999974E-6 : f32
    %345 = vector.broadcast %cst_128 : f32 to vector<48x1xf32>
    %346 = arith.addf %342, %345 : vector<48x1xf32>
    %347 = math.rsqrt %346 : vector<48x1xf32>
    %348 = vector.broadcast %347 : vector<48x1xf32> to vector<48x32xf32>
    %349 = arith.mulf %344, %348 : vector<48x32xf32>
    %350 = vector.broadcast %329 : vector<1x32xf32> to vector<48x32xf32>
    %351 = arith.mulf %349, %350 : vector<48x32xf32>
    %352 = vector.broadcast %331 : vector<1x32xf32> to vector<48x32xf32>
    %353 = arith.addf %351, %352 : vector<48x32xf32>
    %c64_129 = arith.constant 64 : index
    %c0_130 = arith.constant 0 : index
    %354 = vector.load %arg9[%c64_129, %c0_130] : memref<104x128xbf16, #tpu.memory_space<vmem>>, vector<32x128xbf16>
    %c98 = arith.constant 98 : index
    %c0_131 = arith.constant 0 : index
    %355 = vector.load %arg9[%c98, %c0_131] : memref<104x128xbf16, #tpu.memory_space<vmem>>, vector<1x128xbf16>
    %356 = arith.extf %355 : vector<1x128xbf16> to vector<1x128xf32>
    %c776 = arith.constant 776 : index
    %c0_132 = arith.constant 0 : index
    %357 = vector.load %arg8[%c776, %c0_132] : memref<928x32xbf16, #tpu.memory_space<vmem>>, vector<128x32xbf16>
    %c924 = arith.constant 924 : index
    %c0_133 = arith.constant 0 : index
    %358 = vector.load %arg8[%c924, %c0_133] : memref<928x32xbf16, #tpu.memory_space<vmem>>, vector<1x32xbf16>
    %359 = arith.extf %358 : vector<1x32xbf16> to vector<1x32xf32>
    %360 = arith.truncf %353 : vector<48x32xf32> to vector<48x32xbf16>
    %cst_134 = arith.constant dense<0.000000e+00> : vector<48x128xf32>
    %361 = tpu.matmul %360, %354, %cst_134 {dimension_numbers = #tpu.dot_dimension_numbers<[1], [0], [0], [1], [0, 0, 1, 1], [], []>} : vector<48x32xbf16>, vector<32x128xbf16>, vector<48x128xf32> -> vector<48x128xf32>
    %362 = vector.broadcast %356 : vector<1x128xf32> to vector<48x128xf32>
    %363 = arith.addf %361, %362 : vector<48x128xf32>
    %364 = arith.mulf %363, %363 : vector<48x128xf32>
    %365 = arith.mulf %363, %364 : vector<48x128xf32>
    %cst_135 = arith.constant 4.471500e-02 : f32
    %366 = vector.broadcast %cst_135 : f32 to vector<48x128xf32>
    %367 = arith.mulf %366, %365 : vector<48x128xf32>
    %368 = arith.addf %363, %367 : vector<48x128xf32>
    %cst_136 = arith.constant 0.797884583 : f32
    %369 = vector.broadcast %cst_136 : f32 to vector<48x128xf32>
    %370 = arith.mulf %369, %368 : vector<48x128xf32>
    %371 = math.tanh %370 : vector<48x128xf32>
    %cst_137 = arith.constant 1.000000e+00 : f32
    %372 = vector.broadcast %cst_137 : f32 to vector<48x128xf32>
    %373 = arith.addf %372, %371 : vector<48x128xf32>
    %cst_138 = arith.constant 5.000000e-01 : f32
    %374 = vector.broadcast %cst_138 : f32 to vector<48x128xf32>
    %375 = arith.mulf %374, %373 : vector<48x128xf32>
    %376 = arith.mulf %363, %375 : vector<48x128xf32>
    %377 = arith.truncf %376 : vector<48x128xf32> to vector<48x128xbf16>
    %cst_139 = arith.constant dense<0.000000e+00> : vector<48x32xf32>
    %378 = tpu.matmul %377, %357, %cst_139 {dimension_numbers = #tpu.dot_dimension_numbers<[1], [0], [0], [1], [0, 0, 1, 1], [], []>} : vector<48x128xbf16>, vector<128x32xbf16>, vector<48x32xf32> -> vector<48x32xf32>
    %379 = vector.broadcast %359 : vector<1x32xf32> to vector<48x32xf32>
    %380 = arith.addf %378, %379 : vector<48x32xf32>
    %381 = arith.addf %327, %380 : vector<48x32xf32>
    %382 = vector.extract_strided_slice %381 {offsets = [0, 0], sizes = [16, 32], strides = [1, 1]} : vector<48x32xf32> to vector<16x32xf32>
    %383 = vector.extract_strided_slice %381 {offsets = [24, 0], sizes = [16, 32], strides = [1, 1]} : vector<48x32xf32> to vector<16x32xf32>
    %384 = tpu.concatenate %382, %383 in 0 : vector<16x32xf32>, vector<16x32xf32> -> vector<32x32xf32>
    %c910 = arith.constant 910 : index
    %c0_140 = arith.constant 0 : index
    %385 = vector.load %arg8[%c910, %c0_140] : memref<928x32xbf16, #tpu.memory_space<vmem>>, vector<1x32xbf16>
    %386 = arith.extf %385 : vector<1x32xbf16> to vector<1x32xf32>
    %c918 = arith.constant 918 : index
    %c0_141 = arith.constant 0 : index
    %387 = vector.load %arg8[%c918, %c0_141] : memref<928x32xbf16, #tpu.memory_space<vmem>>, vector<1x32xbf16>
    %388 = arith.extf %387 : vector<1x32xbf16> to vector<1x32xf32>
    %cst_142 = arith.constant dense<0.000000e+00> : vector<32xf32>
    %389 = vector.multi_reduction <add>, %384, %cst_142 [1] : vector<32x32xf32> to vector<32xf32>
    %390 = vector.shape_cast %389 : vector<32xf32> to vector<32x1xf32>
    %cst_143 = arith.constant 3.200000e+01 : f32
    %391 = vector.broadcast %cst_143 : f32 to vector<32x1xf32>
    %392 = arith.divf %390, %391 : vector<32x1xf32>
    %393 = arith.mulf %384, %384 : vector<32x32xf32>
    %cst_144 = arith.constant dense<0.000000e+00> : vector<32xf32>
    %394 = vector.multi_reduction <add>, %393, %cst_144 [1] : vector<32x32xf32> to vector<32xf32>
    %395 = vector.shape_cast %394 : vector<32xf32> to vector<32x1xf32>
    %cst_145 = arith.constant 3.200000e+01 : f32
    %396 = vector.broadcast %cst_145 : f32 to vector<32x1xf32>
    %397 = arith.divf %395, %396 : vector<32x1xf32>
    %398 = arith.mulf %392, %392 : vector<32x1xf32>
    %399 = arith.subf %397, %398 : vector<32x1xf32>
    %400 = vector.broadcast %392 : vector<32x1xf32> to vector<32x32xf32>
    %401 = arith.subf %384, %400 : vector<32x32xf32>
    %cst_146 = arith.constant 9.99999974E-6 : f32
    %402 = vector.broadcast %cst_146 : f32 to vector<32x1xf32>
    %403 = arith.addf %399, %402 : vector<32x1xf32>
    %404 = math.rsqrt %403 : vector<32x1xf32>
    %405 = vector.broadcast %404 : vector<32x1xf32> to vector<32x32xf32>
    %406 = arith.mulf %401, %405 : vector<32x32xf32>
    %407 = vector.broadcast %386 : vector<1x32xf32> to vector<32x32xf32>
    %408 = arith.mulf %406, %407 : vector<32x32xf32>
    %409 = vector.broadcast %388 : vector<1x32xf32> to vector<32x32xf32>
    %410 = arith.addf %408, %409 : vector<32x32xf32>
    %c0_147 = arith.constant 0 : index
    %c0_148 = arith.constant 0 : index
    %411 = vector.load %arg10[%c0_147, %c0_148] : memref<32x64xbf16, #tpu.memory_space<vmem>>, vector<32x64xbf16>
    %412 = arith.truncf %410 : vector<32x32xf32> to vector<32x32xbf16>
    %cst_149 = arith.constant dense<0.000000e+00> : vector<32x64xf32>
    %413 = tpu.matmul %412, %411, %cst_149 {dimension_numbers = #tpu.dot_dimension_numbers<[1], [0], [0], [1], [0, 0, 1, 1], [], []>} : vector<32x32xbf16>, vector<32x64xbf16>, vector<32x64xf32> -> vector<32x64xf32>
    %c0_150 = arith.constant 0 : index
    %c0_151 = arith.constant 0 : index
    %414 = vector.load %arg11[%c0_150, %c0_151] : memref<1x64xbf16, #tpu.memory_space<vmem>>, vector<1x64xbf16>
    %415 = arith.extf %414 : vector<1x64xbf16> to vector<1x64xf32>
    %416 = vector.broadcast %415 : vector<1x64xf32> to vector<32x64xf32>
    %417 = arith.addf %413, %416 : vector<32x64xf32>
    %cst_152 = arith.constant -1.000000e+00 : f32
    %cst_153 = arith.constant 1.000000e+00 : f32
    %418 = vector.broadcast %cst_152 : f32 to vector<32x64xf32>
    %419 = arith.maximumf %418, %417 : vector<32x64xf32>
    %420 = vector.broadcast %cst_153 : f32 to vector<32x64xf32>
    %421 = arith.minimumf %420, %419 : vector<32x64xf32>
    %422 = arith.subf %5, %421 : vector<32x64xf32>
    %423 = arith.mulf %422, %422 : vector<32x64xf32>
    %424 = vector.shape_cast %423 : vector<32x64xf32> to vector<1x32x64xf32>
    %cst_154 = arith.constant dense<0.000000e+00> : vector<1xf32>
    %425 = vector.multi_reduction <add>, %424, %cst_154 [1, 2] : vector<1x32x64xf32> to vector<1xf32>
    %426 = vector.shape_cast %425 : vector<1xf32> to vector<1x1x1xf32>
    %427 = vector.extract %426[0, 0, 0] : f32 from vector<1x1x1xf32>
    %cst_155 = arith.constant 4.8828125E-4 : f32
    %428 = arith.mulf %427, %cst_155 : f32
    %c0_156 = arith.constant 0 : index
    %c0_157 = arith.constant 0 : index
    %429 = memref.load %arg12[%c0_156, %c0_157] : memref<1x1xf32, #tpu.memory_space<smem>>
    memref.store %428, %arg12[%c0_156, %c0_157] : memref<1x1xf32, #tpu.memory_space<smem>>
    return
  }
}

</mosaic_0001>

<llo_original>
// kernel: rin_diffusion_forward.1
$region0: #{rin_diffusion_forward.1}
  #allocation0 [shape = 'u32[]', space=smem, size = 0x4, offset = 0x4, fixed_abs, tag = 'smem constant byte address 0x4 - core index']
  #allocation1 [shape = 'u32[144,128]{1,0:T(1,128)}', space=vmem, size = 0x12000, scoped, tag = 'internal scratch']
  %s0 = inlined_call_operand.vmem [shape: f32[32,64], index: 0, kind: input, shape index: {}]
  %s1 = inlined_call_operand.vmem [shape: f32[32,64], index: 1, kind: input, shape index: {}]
  %s2 = inlined_call_operand.vmem [shape: f32[32,1], index: 2, kind: input, shape index: {}]
  %s3 = inlined_call_operand.vmem [shape: f32[2,32], index: 3, kind: input, shape index: {}]
  %s4 = inlined_call_operand.vmem [shape: f32[2,10], index: 4, kind: input, shape index: {}]
  %s5 = inlined_call_operand.vmem [shape: f32[16,48], index: 5, kind: input, shape index: {}]
  %s6 = inlined_call_operand.vmem [shape: f32[16,16], index: 6, kind: input, shape index: {}]
  %s7 = inlined_call_operand.vmem [shape: f32[48,16], index: 7, kind: input, shape index: {}]
  %s8 = inlined_call_operand.vmem [shape: bf16[928,32], index: 8, kind: input, shape index: {}]
  %s9 = inlined_call_operand.vmem [shape: bf16[104,128], index: 9, kind: input, shape index: {}]
  %s10 = inlined_call_operand.vmem [shape: bf16[32,64], index: 10, kind: input, shape index: {}]
  %s11 = inlined_call_operand.vmem [shape: bf16[1,64], index: 11, kind: input, shape index: {}]
  %s12 = inlined_call_operand.hbm [shape: f32[1,1], index: 12, kind: output, shape index: {}]
  %s13 = sld [smem:[#allocation0]]
  $region58: #{rin_diffusion_forward.1} parent=0
    _
  %s15 = ssub.s32 1, %s13
  %s16 = scalar_select 0, %s15, %s13
  $region1: #{rin_diffusion_forward.1} parent=0
    #allocation2 [shape = 'u8[512]{0}', space=smem, size = 0x200, scoped, tag = 'output window, operand 0, single buffered']
    #allocation3 [shape = 's32[1]{0}', space=sflag, size = 0x4, scoped, tag = 'scoped memory for rin_diffusion_forward.1']
    %17 = vsyncpa [#allocation3], 0
    // Predicated region
    $region2: #{rin_diffusion_forward.1} parent=1 // pred_check
      _
    $region3: #{rin_diffusion_forward.1} parent=1 // pred_check_branch
      %19 = sbr.rel (0) target = $region5
    $region4: #{rin_diffusion_forward.1} parent=1 // pred_region
      _
    $region5: #{rin_diffusion_forward.1} parent=1 // pred_fallthru
      _
    // Predicated region
    $region6: #{rin_diffusion_forward.1} parent=1 // pred_check
      _
    $region7: #{rin_diffusion_forward.1} parent=1 // pred_check_branch
      %21 = sbr.rel (0) target = $region9
    $region8: #{rin_diffusion_forward.1} parent=1 // pred_region
      _
    $region9: #{rin_diffusion_forward.1} parent=1 // pred_fallthru
      _
    // Predicated region
    $region10: #{rin_diffusion_forward.1} parent=1 // pred_check
      _
    $region11: #{rin_diffusion_forward.1} parent=1 // pred_check_branch
      %23 = sbr.rel (0) target = $region13
    $region12: #{rin_diffusion_forward.1} parent=1 // pred_region
      _
    $region13: #{rin_diffusion_forward.1} parent=1 // pred_fallthru
      _
    // Predicated region
    $region14: #{rin_diffusion_forward.1} parent=1 // pred_check
      _
    $region15: #{rin_diffusion_forward.1} parent=1 // pred_check_branch
      %25 = sbr.rel (0) target = $region17
    $region16: #{rin_diffusion_forward.1} parent=1 // pred_region
      _
    $region17: #{rin_diffusion_forward.1} parent=1 // pred_fallthru
      _
    // Predicated region
    $region18: #{rin_diffusion_forward.1} parent=1 // pred_check
      _
    $region19: #{rin_diffusion_forward.1} parent=1 // pred_check_branch
      %27 = sbr.rel (0) target = $region21
    $region20: #{rin_diffusion_forward.1} parent=1 // pred_region
      _
    $region21: #{rin_diffusion_forward.1} parent=1 // pred_fallthru
      _
    // Predicated region
    $region22: #{rin_diffusion_forward.1} parent=1 // pred_check
      _
    $region23: #{rin_diffusion_forward.1} parent=1 // pred_check_branch
      %29 = sbr.rel (0) target = $region25
    $region24: #{rin_diffusion_forward.1} parent=1 // pred_region
      _
    $region25: #{rin_diffusion_forward.1} parent=1 // pred_fallthru
      _
    // Predicated region
    $region26: #{rin_diffusion_forward.1} parent=1 // pred_check
      _
    $region27: #{rin_diffusion_forward.1} parent=1 // pred_check_branch
      %31 = sbr.rel (0) target = $region29
    $region28: #{rin_diffusion_forward.1} parent=1 // pred_region
      _
    $region29: #{rin_diffusion_forward.1} parent=1 // pred_fallthru
      _
    // Predicated region
    $region30: #{rin_diffusion_forward.1} parent=1 // pred_check
      _
    $region31: #{rin_diffusion_forward.1} parent=1 // pred_check_branch
      %33 = sbr.rel (0) target = $region33
    $region32: #{rin_diffusion_forward.1} parent=1 // pred_region
      _
    $region33: #{rin_diffusion_forward.1} parent=1 // pred_fallthru
      _
    // Predicated region
    $region34: #{rin_diffusion_forward.1} parent=1 // pred_check
      _
    $region35: #{rin_diffusion_forward.1} parent=1 // pred_check_branch
      %35 = sbr.rel (0) target = $region37
    $region36: #{rin_diffusion_forward.1} parent=1 // pred_region
      _
    $region37: #{rin_diffusion_forward.1} parent=1 // pred_fallthru
      _
    // Predicated region
    $region38: #{rin_diffusion_forward.1} parent=1 // pred_check
      _
    $region39: #{rin_diffusion_forward.1} parent=1 // pred_check_branch
      %37 = sbr.rel (0) target = $region41
    $region40: #{rin_diffusion_forward.1} parent=1 // pred_region
      _
    $region41: #{rin_diffusion_forward.1} parent=1 // pred_fallthru
      _
    // Predicated region
    $region42: #{rin_diffusion_forward.1} parent=1 // pred_check
      _
    $region43: #{rin_diffusion_forward.1} parent=1 // pred_check_branch
      %39 = sbr.rel (0) target = $region45
    $region44: #{rin_diffusion_forward.1} parent=1 // pred_region
      _
    $region45: #{rin_diffusion_forward.1} parent=1 // pred_fallthru
      _
    // Predicated region
    $region46: #{rin_diffusion_forward.1} parent=1 // pred_check
      _
    $region47: #{rin_diffusion_forward.1} parent=1 // pred_check_branch
      %41 = sbr.rel (0) target = $region49
    $region48: #{rin_diffusion_forward.1} parent=1 // pred_region
      _
    $region49: #{rin_diffusion_forward.1} parent=1 // pred_fallthru
      _
    %v43 = vld [vmem:[%s2] sm:$0xff]
    %v44 = vld [vmem:[%s2 + $0x8] sm:$0xff]
    %v45 = vld [vmem:[%s2 + $0x10] sm:$0xff]
    %v46 = vld [vmem:[%s2 + $0x18] sm:$0xff]
    %v47 = vld [vmem:[%s0] sm:$0xff]
    %v48 = vld [vmem:[%s0 + $0x8] sm:$0xff]
    %v49 = vld [vmem:[%s0 + $0x10] sm:$0xff]
    %v50 = vld [vmem:[%s0 + $0x18] sm:$0xff]
    %v51 = vmul.f32 %v47, 2.0
    %v52 = vmul.f32 %v48, 2.0
    %v53 = vmul.f32 %v49, 2.0
    %v54 = vmul.f32 %v50, 2.0
    %v55 = vsub.f32 %v51, 1.0
    %v56 = vsub.f32 %v52, 1.0
    %v57 = vsub.f32 %v53, 1.0
    %v58 = vsub.f32 %v54, 1.0
    %v59 = vrsqrt.pop %v43
    %v60 = vmul.f32 %v43, %v59
    %vm61 = vcmp.eq.f32.partialorder %v43, inf
    %v62 = vsel %vm61, %v43, %v60
    %vm63 = vcmp.eq.f32.partialorder %v43, 0.0
    %v64 = vand.u32 %v43, 2147483648
    %v65 = vsel %vm63, %v64, %v62
    %v66 = vrsqrt.pop %v44
    %v67 = vmul.f32 %v44, %v66
    %vm68 = vcmp.eq.f32.partialorder %v44, inf
    %v69 = vsel %vm68, %v44, %v67
    %vm70 = vcmp.eq.f32.partialorder %v44, 0.0
    %v71 = vand.u32 %v44, 2147483648
    %v72 = vsel %vm70, %v71, %v69
    %v73 = vrsqrt.pop %v45
    %v74 = vmul.f32 %v45, %v73
    %vm75 = vcmp.eq.f32.partialorder %v45, inf
    %v76 = vsel %vm75, %v45, %v74
    %vm77 = vcmp.eq.f32.partialorder %v45, 0.0
    %v78 = vand.u32 %v45, 2147483648
    %v79 = vsel %vm77, %v78, %v76
    %v80 = vrsqrt.pop %v46
    %v81 = vmul.f32 %v46, %v80
    %vm82 = vcmp.eq.f32.partialorder %v46, inf
    %v83 = vsel %vm82, %v46, %v81
    %vm84 = vcmp.eq.f32.partialorder %v46, 0.0
    %v85 = vand.u32 %v46, 2147483648
    %v86 = vsel %vm84, %v85, %v83
    %88 = vset.pattern.permute.xlu0 0
    %89 = vperm.xlu0 %88, %v65
    %v90 = vpop.permute.xlu0 %89
    %93 = vset.pattern.permute.xlu0 0
    %94 = vperm.xlu0 %93, %v72
    %v95 = vpop.permute.xlu0 %94
    %98 = vset.pattern.permute.xlu0 0
    %99 = vperm.xlu0 %98, %v79
    %v100 = vpop.permute.xlu0 %99
    %103 = vset.pattern.permute.xlu0 0
    %104 = vperm.xlu0 %103, %v86
    %v105 = vpop.permute.xlu0 %104
    %v107 = vmul.f32 %v90, %v55
    %v108 = vmul.f32 %v95, %v56
    %v109 = vmul.f32 %v100, %v57
    %v110 = vmul.f32 %v105, %v58
    %v111 = vsub.f32 1.0, %v43
    %v112 = vsub.f32 1.0, %v44
    %v113 = vsub.f32 1.0, %v45
    %v114 = vsub.f32 1.0, %v46
    %v115 = vrsqrt.pop %v111
    %v116 = vmul.f32 %v111, %v115
    %vm117 = vcmp.eq.f32.partialorder %v111, inf
    %v118 = vsel %vm117, %v111, %v116
    %vm119 = vcmp.eq.f32.partialorder %v111, 0.0
    %v120 = vand.u32 %v111, 2147483648
    %v121 = vsel %vm119, %v120, %v118
    %v122 = vrsqrt.pop %v112
    %v123 = vmul.f32 %v112, %v122
    %vm124 = vcmp.eq.f32.partialorder %v112, inf
    %v125 = vsel %vm124, %v112, %v123
    %vm126 = vcmp.eq.f32.partialorder %v112, 0.0
    %v127 = vand.u32 %v112, 2147483648
    %v128 = vsel %vm126, %v127, %v125
    %v129 = vrsqrt.pop %v113
    %v130 = vmul.f32 %v113, %v129
    %vm131 = vcmp.eq.f32.partialorder %v113, inf
    %v132 = vsel %vm131, %v113, %v130
    %vm133 = vcmp.eq.f32.partialorder %v113, 0.0
    %v134 = vand.u32 %v113, 2147483648
    %v135 = vsel %vm133, %v134, %v132
    %v136 = vrsqrt.pop %v114
    %v137 = vmul.f32 %v114, %v136
    %vm138 = vcmp.eq.f32.partialorder %v114, inf
    %v139 = vsel %vm138, %v114, %v137
    %vm140 = vcmp.eq.f32.partialorder %v114, 0.0
    %v141 = vand.u32 %v114, 2147483648
    %v142 = vsel %vm140, %v141, %v139
    %v143 = vld [vmem:[%s1] sm:$0xff]
    %v144 = vld [vmem:[%s1 + $0x8] sm:$0xff]
    %v145 = vld [vmem:[%s1 + $0x10] sm:$0xff]
    %v146 = vld [vmem:[%s1 + $0x18] sm:$0xff]
    %148 = vset.pattern.permute.xlu0 0
    %149 = vperm.xlu0 %148, %v121
    %v150 = vpop.permute.xlu0 %149
    %153 = vset.pattern.permute.xlu0 0
    %154 = vperm.xlu0 %153, %v128
    %v155 = vpop.permute.xlu0 %154
    %158 = vset.pattern.permute.xlu0 0
    %159 = vperm.xlu0 %158, %v135
    %v160 = vpop.permute.xlu0 %159
    %163 = vset.pattern.permute.xlu0 0
    %164 = vperm.xlu0 %163, %v142
    %v165 = vpop.permute.xlu0 %164
    %v167 = vmul.f32 %v150, %v143
    %v168 = vmul.f32 %v155, %v144
    %v169 = vmul.f32 %v160, %v145
    %v170 = vmul.f32 %v165, %v146
    %v171 = vadd.f32 %v107, %v167
    %v172 = vadd.f32 %v108, %v168
    %v173 = vadd.f32 %v109, %v169
    %v174 = vadd.f32 %v110, %v170
    %v175 = vld [vmem:[%s8 + $0x1cc] sm:$0x1]
    %v176 = vunpack.c.l.bf16 %v175
    %v177 = vld [vmem:[%s8] sm:$0xf]
    %v178 = vld [vmem:[%s8 + $0x4] sm:$0xf]
    %v179 = vld [vmem:[%s8 + $0x8] sm:$0xf]
    %v180 = vld [vmem:[%s8 + $0xc] sm:$0xf]
    %v181 = vld [vmem:[%s8 + $0x10] sm:$0xf]
    %v182 = vld [vmem:[%s8 + $0x14] sm:$0xf]
    %v183 = vld [vmem:[%s8 + $0x18] sm:$0xf]
    %v184 = vld [vmem:[%s8 + $0x1c] sm:$0xf]
    %v185 = vpack.c.bf16 %v172, %v171
    %v186 = vpack.c.bf16 %v174, %v173
    %v187 = vlaneseq
    %v188 = vshrl.u32 %v187, 7
    %v189 = vsub.s32 0, %v188
    %v190 = vrot.slane %v176, %v189
    %v199 = vunpack.c.l.b16 %v177
    %v200 = vunpack.c.l.b16 %v178
    %v201 = vunpack.c.l.b16 %v179
    %v202 = vunpack.c.l.b16 %v180
    %v203 = vunpack.c.l.b16 %v181
    %v204 = vunpack.c.l.b16 %v182
    %v205 = vunpack.c.l.b16 %v183
    %v206 = vunpack.c.l.b16 %v184
    %v207 = vpack.c.b16 %v200, %v199
    %v208 = vpack.c.b16 %v202, %v201
    %v209 = vpack.c.b16 %v204, %v203
    %v210 = vpack.c.b16 %v206, %v205
    %vm215 = vcmask 523264
    %v217 = vsel %vm215, %v185, 0
    %v220 = vsel %vm215, %v186, 0
    %222 = vmatprep.subr.bf16.mxu0 0
    %223 = vmatpush1.bf16.msra.mxu0 %v207
    %224 = vmatprep.subr.bf16.mxu0 0
    %225 = vmatpush1.bf16.msra.mxu0 %v208
    %226 = vmatprep.subr.bf16.mxu0 0
    %227 = vmatpush1.bf16.msra.mxu0 %v209
    %228 = vmatprep.subr.bf16.mxu0 0
    %229 = vmatpush1.bf16.msra.mxu0 %v210
    %230 = vmatprep.subr.bf16.mxu0 0
    %231 = vmatpush1.bf16.msra.mxu0 0
    %232 = vmatprep.subr.bf16.mxu0 0
    %233 = vmatpush1.bf16.msra.mxu0 0
    %234 = vmatprep.subr.bf16.mxu0 0
    %235 = vmatpush1.bf16.msra.mxu0 0
    %236 = vmatprep.subr.bf16.mxu0 0
    %237 = vmatpush1.bf16.msra.mxu0 0
    %238 = vmatprep.subr.bf16.mxu0 0
    %239 = vmatpush1.bf16.msra.mxu0 0
    %240 = vmatprep.subr.bf16.mxu0 0
    %241 = vmatpush1.bf16.msra.mxu0 0
    %242 = vmatprep.subr.bf16.mxu0 0
    %243 = vmatpush1.bf16.msra.mxu0 0
    %244 = vmatprep.subr.bf16.mxu0 0
    %245 = vmatpush1.bf16.msra.mxu0 0
    %246 = vmatprep.subr.bf16.mxu0 0
    %247 = vmatpush1.bf16.msra.mxu0 0
    %248 = vmatprep.subr.bf16.mxu0 0
    %249 = vmatpush1.bf16.msra.mxu0 0
    %250 = vmatprep.subr.bf16.mxu0 0
    %251 = vmatpush1.bf16.msra.mxu0 0
    %252 = vmatprep.subr.bf16.mxu0 0
    %253 = vmatpush1.bf16.msra.mxu0 0
    %254 = vmatprep.mubr.bf16.mxu0 0
    %255 = vmatmul.mubr.bf16.gmra.mrb[0].mxu0 %v217
    %v256 = vpop.f32.mrb[0].mxu0
    %v257 = vadd.f32 %v190, %v256
    %v258 = vpop.f32.mrb[0].mxu0
    %v259 = vpop.f32.mrb[0].mxu0
    %v260 = vadd.f32 %v190, %v259
    %v261 = vpop.f32.mrb[0].mxu0
    %262 = vmatprep.mubr.bf16.mxu0 0
    %263 = vmatmul.mubr.bf16.gmra.mrb[0].mxu0 %v220
    %v264 = vpop.f32.mrb[0].mxu0
    %v265 = vadd.f32 %v190, %v264
    %v266 = vpop.f32.mrb[0].mxu0
    %v267 = vpop.f32.mrb[0].mxu0
    %v268 = vadd.f32 %v190, %v267
    %v269 = vpop.f32.mrb[0].mxu0
    %270 = vdwg.mxu0
    %v271 = vld [vmem:[%s3] sm:$0x3]
    %v272 = vld [vmem:[%s8 + $0x20] sm:$0xf]
    %v273 = vld [vmem:[%s8 + $0x24] sm:$0xf]
    %v274 = vld [vmem:[%s8 + $0x28] sm:$0xf]
    %v275 = vld [vmem:[%s8 + $0x2c] sm:$0xf]
    %v276 = vpack.c.bf16 %v271, %v271
    %v277 = vld [vmem:[%s4] sm:$0x3]
    %v278 = vld [vmem:[%s8 + $0x30] sm:$0xf]
    %v279 = vld [vmem:[%s8 + $0x34] sm:$0x1]
    %v280 = vpack.c.bf16 %v277, %v277
    %v283 = vunpack.c.l.b16 %v278
    %v284 = vunpack.c.l.b16 %v279
    %v285 = vpack.c.b16 %v284, %v283
    %vm286 = vcmask 80896
    %v288 = vsel %vm286, %v280, 0
    %vm290 = vcmask 1044480
    %v292 = vsel %vm290, %v285, 0
    %294 = vmatprep.subr.bf16.mxu0 0
    %295 = vmatpush1.bf16.msra.mxu0 %v292
    %296 = vmatprep.subr.bf16.mxu0 0
    %297 = vmatpush1.bf16.msra.mxu0 0
    %298 = vmatprep.subr.bf16.mxu0 0
    %299 = vmatpush1.bf16.msra.mxu0 0
    %300 = vmatprep.subr.bf16.mxu0 0
    %301 = vmatpush1.bf16.msra.mxu0 0
    %302 = vmatprep.subr.bf16.mxu0 0
    %303 = vmatpush1.bf16.msra.mxu0 0
    %304 = vmatprep.subr.bf16.mxu0 0
    %305 = vmatpush1.bf16.msra.mxu0 0
    %306 = vmatprep.subr.bf16.mxu0 0
    %307 = vmatpush1.bf16.msra.mxu0 0
    %308 = vmatprep.subr.bf16.mxu0 0
    %309 = vmatpush1.bf16.msra.mxu0 0
    %310 = vmatprep.subr.bf16.mxu0 0
    %311 = vmatpush1.bf16.msra.mxu0 0
    %312 = vmatprep.subr.bf16.mxu0 0
    %313 = vmatpush1.bf16.msra.mxu0 0
    %314 = vmatprep.subr.bf16.mxu0 0
    %315 = vmatpush1.bf16.msra.mxu0 0
    %316 = vmatprep.subr.bf16.mxu0 0
    %317 = vmatpush1.bf16.msra.mxu0 0
    %318 = vmatprep.subr.bf16.mxu0 0
    %319 = vmatpush1.bf16.msra.mxu0 0
    %320 = vmatprep.subr.bf16.mxu0 0
    %321 = vmatpush1.bf16.msra.mxu0 0
    %322 = vmatprep.subr.bf16.mxu0 0
    %323 = vmatpush1.bf16.msra.mxu0 0
    %324 = vmatprep.subr.bf16.mxu0 0
    %325 = vmatpush1.bf16.msra.mxu0 0
    %326 = vmatprep.mubr.bf16.mxu0 0
    %327 = vmatmul.mubr.bf16.gmra.mrb[0].mxu0 %v288
    %v328 = vpop.f32.mrb[0].mxu0
    %v329 = vadd.f32 0.0, %v328
    %v330 = vpop.f32.mrb[0].mxu0
    %v331 = vpop.f32.mrb[0].mxu0
    %v332 = vpop.f32.mrb[0].mxu0
    %333 = vdwg.mxu0
    %v338 = vunpack.c.l.b16 %v272
    %v339 = vunpack.c.l.b16 %v273
    %v340 = vunpack.c.l.b16 %v274
    %v341 = vunpack.c.l.b16 %v275
    %v342 = vpack.c.b16 %v339, %v338
    %v343 = vpack.c.b16 %v341, %v340
    %vm346 = vcmask 261120
    %v348 = vsel %vm346, %v276, 0
    %350 = vmatprep.subr.bf16.mxu0 0
    %351 = vmatpush1.bf16.msra.mxu0 %v342
    %352 = vmatprep.subr.bf16.mxu0 0
    %353 = vmatpush1.bf16.msra.mxu0 %v343
    %354 = vmatprep.subr.bf16.mxu0 0
    %355 = vmatpush1.bf16.msra.mxu0 0
    %356 = vmatprep.subr.bf16.mxu0 0
    %357 = vmatpush1.bf16.msra.mxu0 0
    %358 = vmatprep.subr.bf16.mxu0 0
    %359 = vmatpush1.bf16.msra.mxu0 0
    %360 = vmatprep.subr.bf16.mxu0 0
    %361 = vmatpush1.bf16.msra.mxu0 0
    %362 = vmatprep.subr.bf16.mxu0 0
    %363 = vmatpush1.bf16.msra.mxu0 0
    %364 = vmatprep.subr.bf16.mxu0 0
    %365 = vmatpush1.bf16.msra.mxu0 0
    %366 = vmatprep.subr.bf16.mxu0 0
    %367 = vmatpush1.bf16.msra.mxu0 0
    %368 = vmatprep.subr.bf16.mxu0 0
    %369 = vmatpush1.bf16.msra.mxu0 0
    %370 = vmatprep.subr.bf16.mxu0 0
    %371 = vmatpush1.bf16.msra.mxu0 0
    %372 = vmatprep.subr.bf16.mxu0 0
    %373 = vmatpush1.bf16.msra.mxu0 0
    %374 = vmatprep.subr.bf16.mxu0 0
    %375 = vmatpush1.bf16.msra.mxu0 0
    %376 = vmatprep.subr.bf16.mxu0 0
    %377 = vmatpush1.bf16.msra.mxu0 0
    %378 = vmatprep.subr.bf16.mxu0 0
    %379 = vmatpush1.bf16.msra.mxu0 0
    %380 = vmatprep.subr.bf16.mxu0 0
    %381 = vmatpush1.bf16.msra.mxu0 0
    %382 = vmatprep.mubr.bf16.mxu0 0
    %383 = vmatmul.mubr.bf16.gmra.mrb[0].mxu0 %v348
    %v384 = vpop.f32.mrb[0].mxu0
    %v385 = vadd.f32 %v329, %v384
    %v386 = vpop.f32.mrb[0].mxu0
    %v387 = vpop.f32.mrb[0].mxu0
    %v388 = vpop.f32.mrb[0].mxu0
    %389 = vdwg.mxu0
    %v390 = vlaneseq
    %v391 = vshrl.u32 %v390, 7
    %v392 = vsub.s32 1, %v391
    %v393 = vrot.slane %v176, %v392
    %v394 = vadd.f32 %v385, %v393
    %v395 = vld [vmem:[%s8 + $0x38] sm:$0xf]
    %v396 = vld [vmem:[%s8 + $0x3c] sm:$0xf]
    %v397 = vunpack.c.l.bf16 %v395
    %v398 = vunpack.c.l.bf16 %v396
    %v399 = vadd.f32 %v257, %v397
    %v400 = vadd.f32 %v260, %v398
    %v401 = vadd.f32 %v265, %v397
    %v402 = vadd.f32 %v268, %v398
    %v404 = vrot.slane %v394, 1
    %vm406 = vcmask 1040384
    %v407 = vsel %vm406, %v394, 0.0
    %v408 = vsel %vm406, %v404, 0.0
    %v409 = vld [vmem:[%s8 + $0x40] sm:$0xf]
    %v410 = vunpack.c.l.bf16 %v409
    %v411 = vld [vmem:[%s5] sm:$0xff]
    %v412 = vld [vmem:[%s5 + $0x8] sm:$0xff]
    %v413 = vld [vmem:[%s6] sm:$0xff]
    %v414 = vld [vmem:[%s6 + $0x8] sm:$0xff]
    %v415 = vld [vmem:[%s7] sm:$0xff]
    %v416 = vld [vmem:[%s7 + $0x8] sm:$0xff]
    %v417 = vld [vmem:[%s7 + $0x10] sm:$0xff]
    %v418 = vld [vmem:[%s7 + $0x18] sm:$0xff]
    %v419 = vld [vmem:[%s7 + $0x20] sm:$0xff]
    %v420 = vld [vmem:[%s7 + $0x28] sm:$0xff]
    %v421 = vld [vmem:[%s8 + $0x1c4] sm:$0x1]
    %v422 = vunpack.c.l.bf16 %v421
    %v423 = vld [vmem:[%s8 + $0x1c8] sm:$0x1]
    %v424 = vunpack.c.l.bf16 %v423
    %v425 = vsel %vm346, %v410, 0.0
    %426 = vadd.xlane.f32.xlu0 %v425
    %v427 = vpop.xlane.xlu0 %426
    %v428 = vrcp.pop 32.0
    %v429 = vmul.f32 %v427, %v428
    %v430 = vmul.f32 %v410, %v410
    %v431 = vsel %vm346, %v430, 0.0
    %432 = vadd.xlane.f32.xlu0 %v431
    %v433 = vpop.xlane.xlu0 %432
    %v434 = vmul.f32 %v433, %v428
    %v435 = vmul.f32 %v429, %v429
    %v436 = vsub.f32 %v434, %v435
    %v437 = vsub.f32 %v410, %v429
    %v438 = vadd.f32 %v436, 1e-05
    %v439 = vrsqrt.pop %v438
    %v440 = vmul.f32 %v437, %v439
    %v441 = vlaneseq
    %v442 = vshrl.u32 %v441, 7
    %v443 = vsub.s32 0, %v442
    %v444 = vrot.slane %v422, %v443
    %v445 = vmul.f32 %v440, %v444
    %v446 = vlaneseq
    %v447 = vshrl.u32 %v446, 7
    %v448 = vsub.s32 0, %v447
    %v449 = vrot.slane %v424, %v448
    %v450 = vadd.f32 %v445, %v449
    %v451 = vld [vmem:[%s8 + $0x44] sm:$0xf]
    %v452 = vld [vmem:[%s8 + $0x48] sm:$0xf]
    %v453 = vld [vmem:[%s8 + $0x4c] sm:$0xf]
    %v454 = vld [vmem:[%s8 + $0x50] sm:$0xf]
    %v455 = vld [vmem:[%s8 + $0x54] sm:$0xf]
    %v456 = vld [vmem:[%s8 + $0x58] sm:$0xf]
    %v457 = vld [vmem:[%s8 + $0x5c] sm:$0xf]
    %v458 = vld [vmem:[%s8 + $0x60] sm:$0xf]
    %v459 = vld [vmem:[%s8 + $0x64] sm:$0xf]
    %v460 = vld [vmem:[%s8 + $0x68] sm:$0xf]
    %v461 = vld [vmem:[%s8 + $0x6c] sm:$0xf]
    %v462 = vld [vmem:[%s8 + $0x70] sm:$0xf]
    %v463 = vld [vmem:[%s8 + $0x74] sm:$0xf]
    %v464 = vld [vmem:[%s8 + $0x78] sm:$0xf]
    %v465 = vld [vmem:[%s8 + $0x7c] sm:$0xf]
    %v466 = vld [vmem:[%s8 + $0x80] sm:$0xf]
    %v467 = vpack.c.bf16 %v450, %v450
    %v472 = vunpack.c.l.b16 %v451
    %v473 = vunpack.c.l.b16 %v452
    %v474 = vunpack.c.l.b16 %v453
    %v475 = vunpack.c.l.b16 %v454
    %v476 = vpack.c.b16 %v473, %v472
    %v477 = vpack.c.b16 %v475, %v474
    %v481 = vsel %vm346, %v467, 0
    %483 = vmatprep.subr.bf16.mxu0 0
    %484 = vmatpush1.bf16.msra.mxu0 %v476
    %485 = vmatprep.subr.bf16.mxu0 0
    %486 = vmatpush1.bf16.msra.mxu0 %v477
    %487 = vmatprep.subr.bf16.mxu0 0
    %488 = vmatpush1.bf16.msra.mxu0 0
    %489 = vmatprep.subr.bf16.mxu0 0
    %490 = vmatpush1.bf16.msra.mxu0 0
    %491 = vmatprep.subr.bf16.mxu0 0
    %492 = vmatpush1.bf16.msra.mxu0 0
    %493 = vmatprep.subr.bf16.mxu0 0
    %494 = vmatpush1.bf16.msra.mxu0 0
    %495 = vmatprep.subr.bf16.mxu0 0
    %496 = vmatpush1.bf16.msra.mxu0 0
    %497 = vmatprep.subr.bf16.mxu0 0
    %498 = vmatpush1.bf16.msra.mxu0 0
    %499 = vmatprep.subr.bf16.mxu0 0
    %500 = vmatpush1.bf16.msra.mxu0 0
    %501 = vmatprep.subr.bf16.mxu0 0
    %502 = vmatpush1.bf16.msra.mxu0 0
    %503 = vmatprep.subr.bf16.mxu0 0
    %504 = vmatpush1.bf16.msra.mxu0 0
    %505 = vmatprep.subr.bf16.mxu0 0
    %506 = vmatpush1.bf16.msra.mxu0 0
    %507 = vmatprep.subr.bf16.mxu0 0
    %508 = vmatpush1.bf16.msra.mxu0 0
    %509 = vmatprep.subr.bf16.mxu0 0
    %510 = vmatpush1.bf16.msra.mxu0 0
    %511 = vmatprep.subr.bf16.mxu0 0
    %512 = vmatpush1.bf16.msra.mxu0 0
    %513 = vmatprep.subr.bf16.mxu0 0
    %514 = vmatpush1.bf16.msra.mxu0 0
    %515 = vmatprep.mubr.bf16.mxu0 0
    %516 = vmatmul.mubr.bf16.gmra.mrb[0].mxu0 %v481
    %v517 = vpop.f32.mrb[0].mxu0
    %v518 = vadd.f32 0.0, %v517
    %v519 = vpop.f32.mrb[0].mxu0
    %v520 = vpop.f32.mrb[0].mxu0
    %v521 = vadd.f32 0.0, %v520
    %v522 = vpop.f32.mrb[0].mxu0
    %523 = vdwg.mxu0
    %v524 = vpack.c.bf16 %v400, %v399
    %v525 = vpack.c.bf16 %v401, %v407
    %v526 = vpack.c.bf16 %v408, %v402
    %v531 = vunpack.c.l.b16 %v455
    %v532 = vunpack.c.l.b16 %v456
    %v533 = vunpack.c.l.b16 %v457
    %v534 = vunpack.c.l.b16 %v458
    %v535 = vpack.c.b16 %v532, %v531
    %v536 = vpack.c.b16 %v534, %v533
    %v540 = vsel %vm346, %v524, 0
    %v543 = vsel %vm346, %v525, 0
    %v546 = vsel %vm346, %v526, 0
    %548 = vmatprep.subr.bf16.mxu0 0
    %549 = vmatpush1.bf16.msra.mxu0 %v535
    %550 = vmatprep.subr.bf16.mxu0 0
    %551 = vmatpush1.bf16.msra.mxu0 %v536
    %552 = vmatprep.subr.bf16.mxu0 0
    %553 = vmatpush1.bf16.msra.mxu0 0
    %554 = vmatprep.subr.bf16.mxu0 0
    %555 = vmatpush1.bf16.msra.mxu0 0
    %556 = vmatprep.subr.bf16.mxu0 0
    %557 = vmatpush1.bf16.msra.mxu0 0
    %558 = vmatprep.subr.bf16.mxu0 0
    %559 = vmatpush1.bf16.msra.mxu0 0
    %560 = vmatprep.subr.bf16.mxu0 0
    %561 = vmatpush1.bf16.msra.mxu0 0
    %562 = vmatprep.subr.bf16.mxu0 0
    %563 = vmatpush1.bf16.msra.mxu0 0
    %564 = vmatprep.subr.bf16.mxu0 0
    %565 = vmatpush1.bf16.msra.mxu0 0
    %566 = vmatprep.subr.bf16.mxu0 0
    %567 = vmatpush1.bf16.msra.mxu0 0
    %568 = vmatprep.subr.bf16.mxu0 0
    %569 = vmatpush1.bf16.msra.mxu0 0
    %570 = vmatprep.subr.bf16.mxu0 0
    %571 = vmatpush1.bf16.msra.mxu0 0
    %572 = vmatprep.subr.bf16.mxu0 0
    %573 = vmatpush1.bf16.msra.mxu0 0
    %574 = vmatprep.subr.bf16.mxu0 0
    %575 = vmatpush1.bf16.msra.mxu0 0
    %576 = vmatprep.subr.bf16.mxu0 0
    %577 = vmatpush1.bf16.msra.mxu0 0
    %578 = vmatprep.subr.bf16.mxu0 0
    %579 = vmatpush1.bf16.msra.mxu0 0
    %580 = vmatprep.mubr.bf16.mxu0 0
    %581 = vmatmul.mubr.bf16.gmra.mrb[0].mxu0 %v540
    %v582 = vpop.f32.mrb[0].mxu0
    %v583 = vadd.f32 0.0, %v582
    %v584 = vpop.f32.mrb[0].mxu0
    %v585 = vpop.f32.mrb[0].mxu0
    %v586 = vadd.f32 0.0, %v585
    %v587 = vpop.f32.mrb[0].mxu0
    %588 = vmatprep.mubr.bf16.mxu0 0
    %589 = vmatmul.mubr.bf16.gmra.mrb[0].mxu0 %v543
    %v590 = vpop.f32.mrb[0].mxu0
    %v591 = vadd.f32 0.0, %v590
    %v592 = vpop.f32.mrb[0].mxu0
    %v593 = vpop.f32.mrb[0].mxu0
    %v594 = vadd.f32 0.0, %v593
    %v595 = vpop.f32.mrb[0].mxu0
    %596 = vmatprep.mubr.bf16.mxu0 0
    %597 = vmatmul.mubr.bf16.gmra.mrb[0].mxu0 %v546
    %v598 = vpop.f32.mrb[0].mxu0
    %v599 = vadd.f32 0.0, %v598
    %v600 = vpop.f32.mrb[0].mxu0
    %v601 = vpop.f32.mrb[0].mxu0
    %v602 = vadd.f32 0.0, %v601
    %v603 = vpop.f32.mrb[0].mxu0
    %604 = vdwg.mxu0
    %v609 = vunpack.c.l.b16 %v459
    %v610 = vunpack.c.l.b16 %v460
    %v611 = vunpack.c.l.b16 %v461
    %v612 = vunpack.c.l.b16 %v462
    %v613 = vpack.c.b16 %v610, %v609
    %v614 = vpack.c.b16 %v612, %v611
    %617 = vmatprep.subr.bf16.mxu0 0
    %618 = vmatpush1.bf16.msra.mxu0 %v613
    %619 = vmatprep.subr.bf16.mxu0 0
    %620 = vmatpush1.bf16.msra.mxu0 %v614
    %621 = vmatprep.subr.bf16.mxu0 0
    %622 = vmatpush1.bf16.msra.mxu0 0
    %623 = vmatprep.subr.bf16.mxu0 0
    %624 = vmatpush1.bf16.msra.mxu0 0
    %625 = vmatprep.subr.bf16.mxu0 0
    %626 = vmatpush1.bf16.msra.mxu0 0
    %627 = vmatprep.subr.bf16.mxu0 0
    %628 = vmatpush1.bf16.msra.mxu0 0
    %629 = vmatprep.subr.bf16.mxu0 0
    %630 = vmatpush1.bf16.msra.mxu0 0
    %631 = vmatprep.subr.bf16.mxu0 0
    %632 = vmatpush1.bf16.msra.mxu0 0
    %633 = vmatprep.subr.bf16.mxu0 0
    %634 = vmatpush1.bf16.msra.mxu0 0
    %635 = vmatprep.subr.bf16.mxu0 0
    %636 = vmatpush1.bf16.msra.mxu0 0
    %637 = vmatprep.subr.bf16.mxu0 0
    %638 = vmatpush1.bf16.msra.mxu0 0
    %639 = vmatprep.subr.bf16.mxu0 0
    %640 = vmatpush1.bf16.msra.mxu0 0
    %641 = vmatprep.subr.bf16.mxu0 0
    %642 = vmatpush1.bf16.msra.mxu0 0
    %643 = vmatprep.subr.bf16.mxu0 0
    %644 = vmatpush1.bf16.msra.mxu0 0
    %645 = vmatprep.subr.bf16.mxu0 0
    %646 = vmatpush1.bf16.msra.mxu0 0
    %647 = vmatprep.subr.bf16.mxu0 0
    %648 = vmatpush1.bf16.msra.mxu0 0
    %649 = vmatprep.mubr.bf16.mxu0 0
    %650 = vmatmul.mubr.bf16.gmra.mrb[0].mxu0 %v540
    %v651 = vpop.f32.mrb[0].mxu0
    %v652 = vadd.f32 0.0, %v651
    %v653 = vpop.f32.mrb[0].mxu0
    %v654 = vpop.f32.mrb[0].mxu0
    %v655 = vadd.f32 0.0, %v654
    %v656 = vpop.f32.mrb[0].mxu0
    %657 = vmatprep.mubr.bf16.mxu0 0
    %658 = vmatmul.mubr.bf16.gmra.mrb[0].mxu0 %v543
    %v659 = vpop.f32.mrb[0].mxu0
    %v660 = vadd.f32 0.0, %v659
    %v661 = vpop.f32.mrb[0].mxu0
    %v662 = vpop.f32.mrb[0].mxu0
    %v663 = vadd.f32 0.0, %v662
    %v664 = vpop.f32.mrb[0].mxu0
    %665 = vmatprep.mubr.bf16.mxu0 0
    %666 = vmatmul.mubr.bf16.gmra.mrb[0].mxu0 %v546
    %v667 = vpop.f32.mrb[0].mxu0
    %v668 = vadd.f32 0.0, %v667
    %v669 = vpop.f32.mrb[0].mxu0
    %v670 = vpop.f32.mrb[0].mxu0
    %v671 = vadd.f32 0.0, %v670
    %v672 = vpop.f32.mrb[0].mxu0
    %673 = vdwg.mxu0
    %v674 = vpack.c.bf16 %v521, %v518
    %v675 = vpack.c.bf16 %v586, %v583
    %v676 = vpack.c.bf16 %v594, %v591
    %v677 = vpack.c.bf16 %v602, %v599
    %v679 = vsel %vm346, %v674, 0
    %v682 = vsel %vm346, %v675, 0
    %v685 = vsel %vm346, %v676, 0
    %v688 = vsel %vm346, %v677, 0
    %690 = vmatprep.subr.bf16.mxu0 0
    %691 = vmatpush1.bf16.xpose.msra.mxu0 %v682
    %692 = vmatprep.subr.bf16.mxu0 0
    %693 = vmatpush1.bf16.xpose.msra.mxu0 %v685
    %694 = vmatprep.subr.bf16.mxu0 0
    %695 = vmatpush1.bf16.xpose.msra.mxu0 %v688
    %696 = vmatprep.subr.bf16.mxu0 0
    %697 = vmatpush1.bf16.xpose.msra.mxu0 0
    %698 = vmatprep.subr.bf16.mxu0 0
    %699 = vmatpush1.bf16.xpose.msra.mxu0 0
    %700 = vmatprep.subr.bf16.mxu0 0
    %701 = vmatpush1.bf16.xpose.msra.mxu0 0
    %702 = vmatprep.subr.bf16.mxu0 0
    %703 = vmatpush1.bf16.xpose.msra.mxu0 0
    %704 = vmatprep.subr.bf16.mxu0 0
    %705 = vmatpush1.bf16.xpose.msra.mxu0 0
    %706 = vmatprep.subr.bf16.mxu0 0
    %707 = vmatpush1.bf16.xpose.msra.mxu0 0
    %708 = vmatprep.subr.bf16.mxu0 0
    %709 = vmatpush1.bf16.xpose.msra.mxu0 0
    %710 = vmatprep.subr.bf16.mxu0 0
    %711 = vmatpush1.bf16.xpose.msra.mxu0 0
    %712 = vmatprep.subr.bf16.mxu0 0
    %713 = vmatpush1.bf16.xpose.msra.mxu0 0
    %714 = vmatprep.subr.bf16.mxu0 0
    %715 = vmatpush1.bf16.xpose.msra.mxu0 0
    %716 = vmatprep.subr.bf16.mxu0 0
    %717 = vmatpush1.bf16.xpose.msra.mxu0 0
    %718 = vmatprep.subr.bf16.mxu0 0
    %719 = vmatpush1.bf16.xpose.msra.mxu0 0
    %720 = vmatprep.subr.bf16.mxu0 0
    %721 = vmatpush1.bf16.xpose.msra.mxu0 0
    %722 = vmatprep.mubr.bf16.mxu0 0
    %723 = vmatmul.mubr.bf16.gmra.mrb[0].mxu0 %v679
    %v724 = vpop.f32.mrb[0].mxu0
    %v725 = vadd.f32 %v411, %v724
    %v726 = vpop.f32.mrb[0].mxu0
    %v727 = vpop.f32.mrb[0].mxu0
    %v728 = vadd.f32 %v412, %v727
    %v729 = vpop.f32.mrb[0].mxu0
    %730 = vdwg.mxu0
    %vm731 = vcmask 392192
    %v732 = vsel %vm731, %v725, -inf
    %733 = vmax.xlane.f32.xlu0 %v732
    %v734 = vpop.xlane.xlu0 %733
    %v735 = vsel %vm731, %v728, -inf
    %736 = vmax.xlane.f32.xlu0 %v735
    %v737 = vpop.xlane.xlu0 %736
    %v738 = vsub.f32 %v725, %v734
    %v739 = vsub.f32 %v728, %v737
    %v740 = vmul.f32 %v738, 1.442695
    %v741 = vpow.pop %v740
    %v742 = vmul.f32 %v739, 1.442695
    %v743 = vpow.pop %v742
    %v744 = vsel %vm731, %v741, 0.0
    %745 = vadd.xlane.f32.xlu0 %v744
    %v746 = vpop.xlane.xlu0 %745
    %v747 = vsel %vm731, %v743, 0.0
    %748 = vadd.xlane.f32.xlu0 %v747
    %v749 = vpop.xlane.xlu0 %748
    %v750 = vrcp.pop %v746
    %v751 = vrcp.pop %v749
    %v752 = vmul.f32 %v741, %v750
    %v753 = vmul.f32 %v743, %v751
    %v754 = vpack.c.bf16 %v753, %v752
    %v755 = vpack.c.bf16 %v655, %v652
    %v756 = vpack.c.bf16 %v663, %v660
    %v757 = vpack.c.bf16 %v671, %v668
    %v759 = vsel %vm731, %v754, 0
    %761 = vmatprep.subr.bf16.mxu0 0
    %762 = vmatpush1.bf16.msra.mxu0 %v755
    %763 = vmatprep.subr.bf16.mxu0 0
    %764 = vmatpush1.bf16.msra.mxu0 %v756
    %765 = vmatprep.subr.bf16.mxu0 0
    %766 = vmatpush1.bf16.msra.mxu0 %v757
    %767 = vmatprep.subr.bf16.mxu0 0
    %768 = vmatpush1.bf16.msra.mxu0 0
    %769 = vmatprep.subr.bf16.mxu0 0
    %770 = vmatpush1.bf16.msra.mxu0 0
    %771 = vmatprep.subr.bf16.mxu0 0
    %772 = vmatpush1.bf16.msra.mxu0 0
    %773 = vmatprep.subr.bf16.mxu0 0
    %774 = vmatpush1.bf16.msra.mxu0 0
    %775 = vmatprep.subr.bf16.mxu0 0
    %776 = vmatpush1.bf16.msra.mxu0 0
    %777 = vmatprep.subr.bf16.mxu0 0
    %778 = vmatpush1.bf16.msra.mxu0 0
    %779 = vmatprep.subr.bf16.mxu0 0
    %780 = vmatpush1.bf16.msra.mxu0 0
    %781 = vmatprep.subr.bf16.mxu0 0
    %782 = vmatpush1.bf16.msra.mxu0 0
    %783 = vmatprep.subr.bf16.mxu0 0
    %784 = vmatpush1.bf16.msra.mxu0 0
    %785 = vmatprep.subr.bf16.mxu0 0
    %786 = vmatpush1.bf16.msra.mxu0 0
    %787 = vmatprep.subr.bf16.mxu0 0
    %788 = vmatpush1.bf16.msra.mxu0 0
    %789 = vmatprep.subr.bf16.mxu0 0
    %790 = vmatpush1.bf16.msra.mxu0 0
    %791 = vmatprep.subr.bf16.mxu0 0
    %792 = vmatpush1.bf16.msra.mxu0 0
    %793 = vmatprep.mubr.bf16.mxu0 0
    %794 = vmatmul.mubr.bf16.gmra.mrb[0].mxu0 %v759
    %v795 = vpop.f32.mrb[0].mxu0
    %v796 = vadd.f32 0.0, %v795
    %v797 = vpop.f32.mrb[0].mxu0
    %v798 = vpop.f32.mrb[0].mxu0
    %v799 = vadd.f32 0.0, %v798
    %v800 = vpop.f32.mrb[0].mxu0
    %801 = vdwg.mxu0
    %v802 = vpack.c.bf16 %v799, %v796
    %v807 = vunpack.c.l.b16 %v463
    %v808 = vunpack.c.l.b16 %v464
    %v809 = vunpack.c.l.b16 %v465
    %v810 = vunpack.c.l.b16 %v466
    %v811 = vpack.c.b16 %v808, %v807
    %v812 = vpack.c.b16 %v810, %v809
    %v816 = vsel %vm346, %v802, 0
    %818 = vmatprep.subr.bf16.mxu0 0
    %819 = vmatpush1.bf16.msra.mxu0 %v811
    %820 = vmatprep.subr.bf16.mxu0 0
    %821 = vmatpush1.bf16.msra.mxu0 %v812
    %822 = vmatprep.subr.bf16.mxu0 0
    %823 = vmatpush1.bf16.msra.mxu0 0
    %824 = vmatprep.subr.bf16.mxu0 0
    %825 = vmatpush1.bf16.msra.mxu0 0
    %826 = vmatprep.subr.bf16.mxu0 0
    %827 = vmatpush1.bf16.msra.mxu0 0
    %828 = vmatprep.subr.bf16.mxu0 0
    %829 = vmatpush1.bf16.msra.mxu0 0
    %830 = vmatprep.subr.bf16.mxu0 0
    %831 = vmatpush1.bf16.msra.mxu0 0
    %832 = vmatprep.subr.bf16.mxu0 0
    %833 = vmatpush1.bf16.msra.mxu0 0
    %834 = vmatprep.subr.bf16.mxu0 0
    %835 = vmatpush1.bf16.msra.mxu0 0
    %836 = vmatprep.subr.bf16.mxu0 0
    %837 = vmatpush1.bf16.msra.mxu0 0
    %838 = vmatprep.subr.bf16.mxu0 0
    %839 = vmatpush1.bf16.msra.mxu0 0
    %840 = vmatprep.subr.bf16.mxu0 0
    %841 = vmatpush1.bf16.msra.mxu0 0
    %842 = vmatprep.subr.bf16.mxu0 0
    %843 = vmatpush1.bf16.msra.mxu0 0
    %844 = vmatprep.subr.bf16.mxu0 0
    %845 = vmatpush1.bf16.msra.mxu0 0
    %846 = vmatprep.subr.bf16.mxu0 0
    %847 = vmatpush1.bf16.msra.mxu0 0
    %848 = vmatprep.subr.bf16.mxu0 0
    %849 = vmatpush1.bf16.msra.mxu0 0
    %850 = vmatprep.mubr.bf16.mxu0 0
    %851 = vmatmul.mubr.bf16.gmra.mrb[0].mxu0 %v816
    %v852 = vpop.f32.mrb[0].mxu0
    %v853 = vadd.f32 0.0, %v852
    %v854 = vpop.f32.mrb[0].mxu0
    %v855 = vpop.f32.mrb[0].mxu0
    %v856 = vadd.f32 0.0, %v855
    %v857 = vpop.f32.mrb[0].mxu0
    %858 = vdwg.mxu0
    %v859 = vadd.f32 %v410, %v853
    %v860 = vadd.f32 %v410, %v856
    %v861 = vsel %vm346, %v859, 0.0
    %862 = vadd.xlane.f32.xlu0 %v861
    %v863 = vpop.xlane.xlu0 %862
    %v864 = vsel %vm346, %v860, 0.0
    %865 = vadd.xlane.f32.xlu0 %v864
    %v866 = vpop.xlane.xlu0 %865
    %v867 = vmul.f32 %v863, %v428
    %v868 = vmul.f32 %v866, %v428
    %v869 = vmul.f32 %v859, %v859
    %v870 = vmul.f32 %v860, %v860
    %v871 = vsel %vm346, %v869, 0.0
    %872 = vadd.xlane.f32.xlu0 %v871
    %v873 = vpop.xlane.xlu0 %872
    %v874 = vsel %vm346, %v870, 0.0
    %875 = vadd.xlane.f32.xlu0 %v874
    %v876 = vpop.xlane.xlu0 %875
    %v877 = vmul.f32 %v873, %v428
    %v878 = vmul.f32 %v876, %v428
    %v879 = vmul.f32 %v867, %v867
    %v880 = vmul.f32 %v868, %v868
    %v881 = vsub.f32 %v877, %v879
    %v882 = vsub.f32 %v878, %v880
    %v883 = vsub.f32 %v859, %v867
    %v884 = vsub.f32 %v860, %v868
    %v885 = vadd.f32 %v881, 1e-05
    %v886 = vadd.f32 %v882, 1e-05
    %v887 = vrsqrt.pop %v885
    %v888 = vrsqrt.pop %v886
    %v889 = vmul.f32 %v883, %v887
    %v890 = vmul.f32 %v884, %v888
    %v891 = vlaneseq
    %v892 = vshrl.u32 %v891, 7
    %v893 = vsub.s32 1, %v892
    %v894 = vrot.slane %v422, %v893
    %v895 = vmul.f32 %v889, %v894
    %v896 = vmul.f32 %v890, %v894
    %v897 = vlaneseq
    %v898 = vshrl.u32 %v897, 7
    %v899 = vsub.s32 1, %v898
    %v900 = vrot.slane %v424, %v899
    %v901 = vadd.f32 %v895, %v900
    %v902 = vadd.f32 %v896, %v900
    %v903 = vld [vmem:[%s9] sm:$0xf]
    %v904 = vld [vmem:[%s9 + $0x4] sm:$0xf]
    %v905 = vld [vmem:[%s9 + $0x8] sm:$0xf]
    %v906 = vld [vmem:[%s9 + $0xc] sm:$0xf]
    %v907 = vld [vmem:[%s9 + $0x30] sm:$0x1]
    %v908 = vunpack.c.l.bf16 %v907
    %v909 = vld [vmem:[%s8 + $0x104] sm:$0xf]
    %v910 = vld [vmem:[%s8 + $0x108] sm:$0xf]
    %v911 = vld [vmem:[%s8 + $0x10c] sm:$0xf]
    %v912 = vld [vmem:[%s8 + $0x110] sm:$0xf]
    %v913 = vld [vmem:[%s8 + $0x114] sm:$0xf]
    %v914 = vld [vmem:[%s8 + $0x118] sm:$0xf]
    %v915 = vld [vmem:[%s8 + $0x11c] sm:$0xf]
    %v916 = vld [vmem:[%s8 + $0x120] sm:$0xf]
    %v917 = vld [vmem:[%s8 + $0x124] sm:$0xf]
    %v918 = vld [vmem:[%s8 + $0x128] sm:$0xf]
    %v919 = vld [vmem:[%s8 + $0x12c] sm:$0xf]
    %v920 = vld [vmem:[%s8 + $0x130] sm:$0xf]
    %v921 = vld [vmem:[%s8 + $0x134] sm:$0xf]
    %v922 = vld [vmem:[%s8 + $0x138] sm:$0xf]
    %v923 = vld [vmem:[%s8 + $0x13c] sm:$0xf]
    %v924 = vld [vmem:[%s8 + $0x140] sm:$0xf]
    %v925 = vld [vmem:[%s8 + $0x1cc] sm:$0x2]
    %v926 = vunpack.c.l.bf16 %v925
    %v927 = vpack.c.bf16 %v902, %v901
    %v928 = vlaneseq
    %v929 = vshrl.u32 %v928, 7
    %v930 = vsub.s32 0, %v929
    %v931 = vrot.slane %v908, %v930
    %v936 = vunpack.c.l.b16 %v903
    %v937 = vunpack.c.l.b16 %v904
    %v938 = vunpack.c.l.b16 %v905
    %v939 = vunpack.c.l.b16 %v906
    %v940 = vpack.c.b16 %v937, %v936
    %v941 = vpack.c.b16 %v939, %v938
    %v945 = vsel %vm346, %v927, 0
    %947 = vmatprep.subr.bf16.mxu0 0
    %948 = vmatpush1.bf16.msra.mxu0 %v940
    %949 = vmatprep.subr.bf16.mxu0 0
    %950 = vmatpush1.bf16.msra.mxu0 %v941
    %951 = vmatprep.subr.bf16.mxu0 0
    %952 = vmatpush1.bf16.msra.mxu0 0
    %953 = vmatprep.subr.bf16.mxu0 0
    %954 = vmatpush1.bf16.msra.mxu0 0
    %955 = vmatprep.subr.bf16.mxu0 0
    %956 = vmatpush1.bf16.msra.mxu0 0
    %957 = vmatprep.subr.bf16.mxu0 0
    %958 = vmatpush1.bf16.msra.mxu0 0
    %959 = vmatprep.subr.bf16.mxu0 0
    %960 = vmatpush1.bf16.msra.mxu0 0
    %961 = vmatprep.subr.bf16.mxu0 0
    %962 = vmatpush1.bf16.msra.mxu0 0
    %963 = vmatprep.subr.bf16.mxu0 0
    %964 = vmatpush1.bf16.msra.mxu0 0
    %965 = vmatprep.subr.bf16.mxu0 0
    %966 = vmatpush1.bf16.msra.mxu0 0
    %967 = vmatprep.subr.bf16.mxu0 0
    %968 = vmatpush1.bf16.msra.mxu0 0
    %969 = vmatprep.subr.bf16.mxu0 0
    %970 = vmatpush1.bf16.msra.mxu0 0
    %971 = vmatprep.subr.bf16.mxu0 0
    %972 = vmatpush1.bf16.msra.mxu0 0
    %973 = vmatprep.subr.bf16.mxu0 0
    %974 = vmatpush1.bf16.msra.mxu0 0
    %975 = vmatprep.subr.bf16.mxu0 0
    %976 = vmatpush1.bf16.msra.mxu0 0
    %977 = vmatprep.subr.bf16.mxu0 0
    %978 = vmatpush1.bf16.msra.mxu0 0
    %979 = vmatprep.mubr.bf16.mxu0 0
    %980 = vmatmul.mubr.bf16.gmra.mrb[0].mxu0 %v945
    %v981 = vpop.f32.mrb[0].mxu0
    %v982 = vadd.f32 %v931, %v981
    %v983 = vpop.f32.mrb[0].mxu0
    %v984 = vpop.f32.mrb[0].mxu0
    %v985 = vadd.f32 %v931, %v984
    %v986 = vpop.f32.mrb[0].mxu0
    %987 = vdwg.mxu0
    %v988 = vmul.f32 %v982, %v982
    %v989 = vmul.f32 %v985, %v985
    %v990 = vmul.f32 %v982, %v988
    %v991 = vmul.f32 %v985, %v989
    %v992 = vmul.f32 %v990, 0.044715
    %v993 = vmul.f32 %v991, 0.044715
    %v994 = vadd.f32 %v982, %v992
    %v995 = vadd.f32 %v985, %v993
    %v996 = vmul.f32 %v994, 0.7978846
    %v997 = vmul.f32 %v995, 0.7978846
    %v998 = vtanh.pop %v996
    %v999 = vtanh.pop %v997
    %v1000 = vadd.f32 %v998, 1.0
    %v1001 = vadd.f32 %v999, 1.0
    %v1002 = vmul.f32 %v1000, 0.5
    %v1003 = vmul.f32 %v1001, 0.5
    %v1004 = vmul.f32 %v982, %v1002
    %v1005 = vmul.f32 %v985, %v1003
    %v1006 = vpack.c.bf16 %v1005, %v1004
    %v1007 = vlaneseq
    %v1008 = vshrl.u32 %v1007, 7
    %v1009 = vsub.s32 2, %v1008
    %v1010 = vrot.slane %v926, %v1009
    %v1027 = vunpack.c.l.b16 %v909
    %v1028 = vunpack.c.l.b16 %v910
    %v1029 = vunpack.c.l.b16 %v911
    %v1030 = vunpack.c.l.b16 %v912
    %v1031 = vunpack.c.l.b16 %v913
    %v1032 = vunpack.c.l.b16 %v914
    %v1033 = vunpack.c.l.b16 %v915
    %v1034 = vunpack.c.l.b16 %v916
    %v1035 = vunpack.c.l.b16 %v917
    %v1036 = vunpack.c.l.b16 %v918
    %v1037 = vunpack.c.l.b16 %v919
    %v1038 = vunpack.c.l.b16 %v920
    %v1039 = vunpack.c.l.b16 %v921
    %v1040 = vunpack.c.l.b16 %v922
    %v1041 = vunpack.c.l.b16 %v923
    %v1042 = vunpack.c.l.b16 %v924
    %v1043 = vpack.c.b16 %v1028, %v1027
    %v1044 = vpack.c.b16 %v1030, %v1029
    %v1045 = vpack.c.b16 %v1032, %v1031
    %v1046 = vpack.c.b16 %v1034, %v1033
    %v1047 = vpack.c.b16 %v1036, %v1035
    %v1048 = vpack.c.b16 %v1038, %v1037
    %v1049 = vpack.c.b16 %v1040, %v1039
    %v1050 = vpack.c.b16 %v1042, %v1041
    %1059 = vmatprep.subr.bf16.mxu0 0
    %1060 = vmatpush1.bf16.msra.mxu0 %v1043
    %1061 = vmatprep.subr.bf16.mxu0 0
    %1062 = vmatpush1.bf16.msra.mxu0 %v1044
    %1063 = vmatprep.subr.bf16.mxu0 0
    %1064 = vmatpush1.bf16.msra.mxu0 %v1045
    %1065 = vmatprep.subr.bf16.mxu0 0
    %1066 = vmatpush1.bf16.msra.mxu0 %v1046
    %1067 = vmatprep.subr.bf16.mxu0 0
    %1068 = vmatpush1.bf16.msra.mxu0 %v1047
    %1069 = vmatprep.subr.bf16.mxu0 0
    %1070 = vmatpush1.bf16.msra.mxu0 %v1048
    %1071 = vmatprep.subr.bf16.mxu0 0
    %1072 = vmatpush1.bf16.msra.mxu0 %v1049
    %1073 = vmatprep.subr.bf16.mxu0 0
    %1074 = vmatpush1.bf16.msra.mxu0 %v1050
    %1075 = vmatprep.subr.bf16.mxu0 0
    %1076 = vmatpush1.bf16.msra.mxu0 0
    %1077 = vmatprep.subr.bf16.mxu0 0
    %1078 = vmatpush1.bf16.msra.mxu0 0
    %1079 = vmatprep.subr.bf16.mxu0 0
    %1080 = vmatpush1.bf16.msra.mxu0 0
    %1081 = vmatprep.subr.bf16.mxu0 0
    %1082 = vmatpush1.bf16.msra.mxu0 0
    %1083 = vmatprep.subr.bf16.mxu0 0
    %1084 = vmatpush1.bf16.msra.mxu0 0
    %1085 = vmatprep.subr.bf16.mxu0 0
    %1086 = vmatpush1.bf16.msra.mxu0 0
    %1087 = vmatprep.subr.bf16.mxu0 0
    %1088 = vmatpush1.bf16.msra.mxu0 0
    %1089 = vmatprep.subr.bf16.mxu0 0
    %1090 = vmatpush1.bf16.msra.mxu0 0
    %1091 = vmatprep.mubr.bf16.mxu0 0
    %1092 = vmatmul.mubr.bf16.gmra.mrb[0].mxu0 %v1006
    %v1093 = vpop.f32.mrb[0].mxu0
    %v1094 = vadd.f32 %v1010, %v1093
    %v1095 = vpop.f32.mrb[0].mxu0
    %v1096 = vpop.f32.mrb[0].mxu0
    %v1097 = vadd.f32 %v1010, %v1096
    %v1098 = vpop.f32.mrb[0].mxu0
    %1099 = vdwg.mxu0
    %v1100 = vadd.f32 %v859, %v1094
    %v1101 = vadd.f32 %v860, %v1097
    %v1102 = vld [vmem:[%s8 + $0x1c4] sm:$0x2]
    %v1103 = vunpack.c.l.bf16 %v1102
    %v1104 = vld [vmem:[%s8 + $0x1c8] sm:$0x2]
    %v1105 = vunpack.c.l.bf16 %v1104
    %v1106 = vsel %vm346, %v1100, 0.0
    %1107 = vadd.xlane.f32.xlu0 %v1106
    %v1108 = vpop.xlane.xlu0 %1107
    %v1109 = vsel %vm346, %v1101, 0.0
    %1110 = vadd.xlane.f32.xlu0 %v1109
    %v1111 = vpop.xlane.xlu0 %1110
    %v1112 = vmul.f32 %v1108, %v428
    %v1113 = vmul.f32 %v1111, %v428
    %v1114 = vmul.f32 %v1100, %v1100
    %v1115 = vmul.f32 %v1101, %v1101
    %v1116 = vsel %vm346, %v1114, 0.0
    %1117 = vadd.xlane.f32.xlu0 %v1116
    %v1118 = vpop.xlane.xlu0 %1117
    %v1119 = vsel %vm346, %v1115, 0.0
    %1120 = vadd.xlane.f32.xlu0 %v1119
    %v1121 = vpop.xlane.xlu0 %1120
    %v1122 = vmul.f32 %v1118, %v428
    %v1123 = vmul.f32 %v1121, %v428
    %v1124 = vmul.f32 %v1112, %v1112
    %v1125 = vmul.f32 %v1113, %v1113
    %v1126 = vsub.f32 %v1122, %v1124
    %v1127 = vsub.f32 %v1123, %v1125
    %v1128 = vsub.f32 %v1100, %v1112
    %v1129 = vsub.f32 %v1101, %v1113
    %v1130 = vadd.f32 %v1126, 1e-05
    %v1131 = vadd.f32 %v1127, 1e-05
    %v1132 = vrsqrt.pop %v1130
    %v1133 = vrsqrt.pop %v1131
    %v1134 = vmul.f32 %v1128, %v1132
    %v1135 = vmul.f32 %v1129, %v1133
    %v1136 = vlaneseq
    %v1137 = vshrl.u32 %v1136, 7
    %v1138 = vsub.s32 2, %v1137
    %v1139 = vrot.slane %v1103, %v1138
    %v1140 = vmul.f32 %v1134, %v1139
    %v1141 = vmul.f32 %v1135, %v1139
    %v1142 = vlaneseq
    %v1143 = vshrl.u32 %v1142, 7
    %v1144 = vsub.s32 2, %v1143
    %v1145 = vrot.slane %v1105, %v1144
    %v1146 = vadd.f32 %v1140, %v1145
    %v1147 = vadd.f32 %v1141, %v1145
    %v1148 = vld [vmem:[%s8 + $0x84] sm:$0xf]
    %v1149 = vld [vmem:[%s8 + $0x88] sm:$0xf]
    %v1150 = vld [vmem:[%s8 + $0x8c] sm:$0xf]
    %v1151 = vld [vmem:[%s8 + $0x90] sm:$0xf]
    %v1152 = vld [vmem:[%s8 + $0x94] sm:$0xf]
    %v1153 = vld [vmem:[%s8 + $0x98] sm:$0xf]
    %v1154 = vld [vmem:[%s8 + $0x9c] sm:$0xf]
    %v1155 = vld [vmem:[%s8 + $0xa0] sm:$0xf]
    %v1156 = vld [vmem:[%s8 + $0xa4] sm:$0xf]
    %v1157 = vld [vmem:[%s8 + $0xa8] sm:$0xf]
    %v1158 = vld [vmem:[%s8 + $0xac] sm:$0xf]
    %v1159 = vld [vmem:[%s8 + $0xb0] sm:$0xf]
    %v1160 = vld [vmem:[%s8 + $0xb4] sm:$0xf]
    %v1161 = vld [vmem:[%s8 + $0xb8] sm:$0xf]
    %v1162 = vld [vmem:[%s8 + $0xbc] sm:$0xf]
    %v1163 = vld [vmem:[%s8 + $0xc0] sm:$0xf]
    %v1164 = vpack.c.bf16 %v1147, %v1146
    %v1169 = vunpack.c.l.b16 %v1148
    %v1170 = vunpack.c.l.b16 %v1149
    %v1171 = vunpack.c.l.b16 %v1150
    %v1172 = vunpack.c.l.b16 %v1151
    %v1173 = vpack.c.b16 %v1170, %v1169
    %v1174 = vpack.c.b16 %v1172, %v1171
    %v1178 = vsel %vm346, %v1164, 0
    %1180 = vmatprep.subr.bf16.mxu0 0
    %1181 = vmatpush1.bf16.msra.mxu0 %v1173
    %1182 = vmatprep.subr.bf16.mxu0 0
    %1183 = vmatpush1.bf16.msra.mxu0 %v1174
    %1184 = vmatprep.subr.bf16.mxu0 0
    %1185 = vmatpush1.bf16.msra.mxu0 0
    %1186 = vmatprep.subr.bf16.mxu0 0
    %1187 = vmatpush1.bf16.msra.mxu0 0
    %1188 = vmatprep.subr.bf16.mxu0 0
    %1189 = vmatpush1.bf16.msra.mxu0 0
    %1190 = vmatprep.subr.bf16.mxu0 0
    %1191 = vmatpush1.bf16.msra.mxu0 0
    %1192 = vmatprep.subr.bf16.mxu0 0
    %1193 = vmatpush1.bf16.msra.mxu0 0
    %1194 = vmatprep.subr.bf16.mxu0 0
    %1195 = vmatpush1.bf16.msra.mxu0 0
    %1196 = vmatprep.subr.bf16.mxu0 0
    %1197 = vmatpush1.bf16.msra.mxu0 0
    %1198 = vmatprep.subr.bf16.mxu0 0
    %1199 = vmatpush1.bf16.msra.mxu0 0
    %1200 = vmatprep.subr.bf16.mxu0 0
    %1201 = vmatpush1.bf16.msra.mxu0 0
    %1202 = vmatprep.subr.bf16.mxu0 0
    %1203 = vmatpush1.bf16.msra.mxu0 0
    %1204 = vmatprep.subr.bf16.mxu0 0
    %1205 = vmatpush1.bf16.msra.mxu0 0
    %1206 = vmatprep.subr.bf16.mxu0 0
    %1207 = vmatpush1.bf16.msra.mxu0 0
    %1208 = vmatprep.subr.bf16.mxu0 0
    %1209 = vmatpush1.bf16.msra.mxu0 0
    %1210 = vmatprep.subr.bf16.mxu0 0
    %1211 = vmatpush1.bf16.msra.mxu0 0
    %1212 = vmatprep.mubr.bf16.mxu0 0
    %1213 = vmatmul.mubr.bf16.gmra.mrb[0].mxu0 %v1178
    %v1214 = vpop.f32.mrb[0].mxu0
    %v1215 = vadd.f32 0.0, %v1214
    %v1216 = vpop.f32.mrb[0].mxu0
    %v1217 = vpop.f32.mrb[0].mxu0
    %v1218 = vadd.f32 0.0, %v1217
    %v1219 = vpop.f32.mrb[0].mxu0
    %1220 = vdwg.mxu0
    %v1221 = vpack.c.bf16 %v1101, %v1100
    %v1226 = vunpack.c.l.b16 %v1152
    %v1227 = vunpack.c.l.b16 %v1153
    %v1228 = vunpack.c.l.b16 %v1154
    %v1229 = vunpack.c.l.b16 %v1155
    %v1230 = vpack.c.b16 %v1227, %v1226
    %v1231 = vpack.c.b16 %v1229, %v1228
    %v1235 = vsel %vm346, %v1221, 0
    %1237 = vmatprep.subr.bf16.mxu0 0
    %1238 = vmatpush1.bf16.msra.mxu0 %v1230
    %1239 = vmatprep.subr.bf16.mxu0 0
    %1240 = vmatpush1.bf16.msra.mxu0 %v1231
    %1241 = vmatprep.subr.bf16.mxu0 0
    %1242 = vmatpush1.bf16.msra.mxu0 0
    %1243 = vmatprep.subr.bf16.mxu0 0
    %1244 = vmatpush1.bf16.msra.mxu0 0
    %1245 = vmatprep.subr.bf16.mxu0 0
    %1246 = vmatpush1.bf16.msra.mxu0 0
    %1247 = vmatprep.subr.bf16.mxu0 0
    %1248 = vmatpush1.bf16.msra.mxu0 0
    %1249 = vmatprep.subr.bf16.mxu0 0
    %1250 = vmatpush1.bf16.msra.mxu0 0
    %1251 = vmatprep.subr.bf16.mxu0 0
    %1252 = vmatpush1.bf16.msra.mxu0 0
    %1253 = vmatprep.subr.bf16.mxu0 0
    %1254 = vmatpush1.bf16.msra.mxu0 0
    %1255 = vmatprep.subr.bf16.mxu0 0
    %1256 = vmatpush1.bf16.msra.mxu0 0
    %1257 = vmatprep.subr.bf16.mxu0 0
    %1258 = vmatpush1.bf16.msra.mxu0 0
    %1259 = vmatprep.subr.bf16.mxu0 0
    %1260 = vmatpush1.bf16.msra.mxu0 0
    %1261 = vmatprep.subr.bf16.mxu0 0
    %1262 = vmatpush1.bf16.msra.mxu0 0
    %1263 = vmatprep.subr.bf16.mxu0 0
    %1264 = vmatpush1.bf16.msra.mxu0 0
    %1265 = vmatprep.subr.bf16.mxu0 0
    %1266 = vmatpush1.bf16.msra.mxu0 0
    %1267 = vmatprep.subr.bf16.mxu0 0
    %1268 = vmatpush1.bf16.msra.mxu0 0
    %1269 = vmatprep.mubr.bf16.mxu0 0
    %1270 = vmatmul.mubr.bf16.gmra.mrb[0].mxu0 %v1235
    %v1271 = vpop.f32.mrb[0].mxu0
    %v1272 = vadd.f32 0.0, %v1271
    %v1273 = vpop.f32.mrb[0].mxu0
    %v1274 = vpop.f32.mrb[0].mxu0
    %v1275 = vadd.f32 0.0, %v1274
    %v1276 = vpop.f32.mrb[0].mxu0
    %1277 = vdwg.mxu0
    %v1282 = vunpack.c.l.b16 %v1156
    %v1283 = vunpack.c.l.b16 %v1157
    %v1284 = vunpack.c.l.b16 %v1158
    %v1285 = vunpack.c.l.b16 %v1159
    %v1286 = vpack.c.b16 %v1283, %v1282
    %v1287 = vpack.c.b16 %v1285, %v1284
    %1290 = vmatprep.subr.bf16.mxu0 0
    %1291 = vmatpush1.bf16.msra.mxu0 %v1286
    %1292 = vmatprep.subr.bf16.mxu0 0
    %1293 = vmatpush1.bf16.msra.mxu0 %v1287
    %1294 = vmatprep.subr.bf16.mxu0 0
    %1295 = vmatpush1.bf16.msra.mxu0 0
    %1296 = vmatprep.subr.bf16.mxu0 0
    %1297 = vmatpush1.bf16.msra.mxu0 0
    %1298 = vmatprep.subr.bf16.mxu0 0
    %1299 = vmatpush1.bf16.msra.mxu0 0
    %1300 = vmatprep.subr.bf16.mxu0 0
    %1301 = vmatpush1.bf16.msra.mxu0 0
    %1302 = vmatprep.subr.bf16.mxu0 0
    %1303 = vmatpush1.bf16.msra.mxu0 0
    %1304 = vmatprep.subr.bf16.mxu0 0
    %1305 = vmatpush1.bf16.msra.mxu0 0
    %1306 = vmatprep.subr.bf16.mxu0 0
    %1307 = vmatpush1.bf16.msra.mxu0 0
    %1308 = vmatprep.subr.bf16.mxu0 0
    %1309 = vmatpush1.bf16.msra.mxu0 0
    %1310 = vmatprep.subr.bf16.mxu0 0
    %1311 = vmatpush1.bf16.msra.mxu0 0
    %1312 = vmatprep.subr.bf16.mxu0 0
    %1313 = vmatpush1.bf16.msra.mxu0 0
    %1314 = vmatprep.subr.bf16.mxu0 0
    %1315 = vmatpush1.bf16.msra.mxu0 0
    %1316 = vmatprep.subr.bf16.mxu0 0
    %1317 = vmatpush1.bf16.msra.mxu0 0
    %1318 = vmatprep.subr.bf16.mxu0 0
    %1319 = vmatpush1.bf16.msra.mxu0 0
    %1320 = vmatprep.subr.bf16.mxu0 0
    %1321 = vmatpush1.bf16.msra.mxu0 0
    %1322 = vmatprep.mubr.bf16.mxu0 0
    %1323 = vmatmul.mubr.bf16.gmra.mrb[0].mxu0 %v1235
    %v1324 = vpop.f32.mrb[0].mxu0
    %v1325 = vadd.f32 0.0, %v1324
    %v1326 = vpop.f32.mrb[0].mxu0
    %v1327 = vpop.f32.mrb[0].mxu0
    %v1328 = vadd.f32 0.0, %v1327
    %v1329 = vpop.f32.mrb[0].mxu0
    %1330 = vdwg.mxu0
    %v1331 = vpack.c.bf16 %v1218, %v1215
    %v1332 = vpack.c.bf16 %v1275, %v1272
    %v1334 = vsel %vm346, %v1331, 0
    %v1337 = vsel %vm346, %v1332, 0
    %1339 = vmatprep.subr.bf16.mxu0 0
    %1340 = vmatpush1.bf16.xpose.msra.mxu0 %v1337
    %1341 = vmatprep.subr.bf16.mxu0 0
    %1342 = vmatpush1.bf16.xpose.msra.mxu0 0
    %1343 = vmatprep.subr.bf16.mxu0 0
    %1344 = vmatpush1.bf16.xpose.msra.mxu0 0
    %1345 = vmatprep.subr.bf16.mxu0 0
    %1346 = vmatpush1.bf16.xpose.msra.mxu0 0
    %1347 = vmatprep.subr.bf16.mxu0 0
    %1348 = vmatpush1.bf16.xpose.msra.mxu0 0
    %1349 = vmatprep.subr.bf16.mxu0 0
    %1350 = vmatpush1.bf16.xpose.msra.mxu0 0
    %1351 = vmatprep.subr.bf16.mxu0 0
    %1352 = vmatpush1.bf16.xpose.msra.mxu0 0
    %1353 = vmatprep.subr.bf16.mxu0 0
    %1354 = vmatpush1.bf16.xpose.msra.mxu0 0
    %1355 = vmatprep.subr.bf16.mxu0 0
    %1356 = vmatpush1.bf16.xpose.msra.mxu0 0
    %1357 = vmatprep.subr.bf16.mxu0 0
    %1358 = vmatpush1.bf16.xpose.msra.mxu0 0
    %1359 = vmatprep.subr.bf16.mxu0 0
    %1360 = vmatpush1.bf16.xpose.msra.mxu0 0
    %1361 = vmatprep.subr.bf16.mxu0 0
    %1362 = vmatpush1.bf16.xpose.msra.mxu0 0
    %1363 = vmatprep.subr.bf16.mxu0 0
    %1364 = vmatpush1.bf16.xpose.msra.mxu0 0
    %1365 = vmatprep.subr.bf16.mxu0 0
    %1366 = vmatpush1.bf16.xpose.msra.mxu0 0
    %1367 = vmatprep.subr.bf16.mxu0 0
    %1368 = vmatpush1.bf16.xpose.msra.mxu0 0
    %1369 = vmatprep.subr.bf16.mxu0 0
    %1370 = vmatpush1.bf16.xpose.msra.mxu0 0
    %1371 = vmatprep.mubr.bf16.mxu0 0
    %1372 = vmatmul.mubr.bf16.gmra.mrb[0].mxu0 %v1334
    %v1373 = vpop.f32.mrb[0].mxu0
    %v1374 = vadd.f32 %v413, %v1373
    %v1375 = vpop.f32.mrb[0].mxu0
    %v1376 = vpop.f32.mrb[0].mxu0
    %v1377 = vadd.f32 %v414, %v1376
    %v1378 = vpop.f32.mrb[0].mxu0
    %1379 = vdwg.mxu0
    %vm1380 = vcmask 130048
    %v1381 = vsel %vm1380, %v1374, -inf
    %1382 = vmax.xlane.f32.xlu0 %v1381
    %v1383 = vpop.xlane.xlu0 %1382
    %v1384 = vsel %vm1380, %v1377, -inf
    %1385 = vmax.xlane.f32.xlu0 %v1384
    %v1386 = vpop.xlane.xlu0 %1385
    %v1387 = vsub.f32 %v1374, %v1383
    %v1388 = vsub.f32 %v1377, %v1386
    %v1389 = vmul.f32 %v1387, 1.442695
    %v1390 = vpow.pop %v1389
    %v1391 = vmul.f32 %v1388, 1.442695
    %v1392 = vpow.pop %v1391
    %v1393 = vsel %vm1380, %v1390, 0.0
    %1394 = vadd.xlane.f32.xlu0 %v1393
    %v1395 = vpop.xlane.xlu0 %1394
    %v1396 = vsel %vm1380, %v1392, 0.0
    %1397 = vadd.xlane.f32.xlu0 %v1396
    %v1398 = vpop.xlane.xlu0 %1397
    %v1399 = vrcp.pop %v1395
    %v1400 = vrcp.pop %v1398
    %v1401 = vmul.f32 %v1390, %v1399
    %v1402 = vmul.f32 %v1392, %v1400
    %v1403 = vpack.c.bf16 %v1402, %v1401
    %v1404 = vpack.c.bf16 %v1328, %v1325
    %v1406 = vsel %vm1380, %v1403, 0
    %1408 = vmatprep.subr.bf16.mxu0 0
    %1409 = vmatpush1.bf16.msra.mxu0 %v1404
    %1410 = vmatprep.subr.bf16.mxu0 0
    %1411 = vmatpush1.bf16.msra.mxu0 0
    %1412 = vmatprep.subr.bf16.mxu0 0
    %1413 = vmatpush1.bf16.msra.mxu0 0
    %1414 = vmatprep.subr.bf16.mxu0 0
    %1415 = vmatpush1.bf16.msra.mxu0 0
    %1416 = vmatprep.subr.bf16.mxu0 0
    %1417 = vmatpush1.bf16.msra.mxu0 0
    %1418 = vmatprep.subr.bf16.mxu0 0
    %1419 = vmatpush1.bf16.msra.mxu0 0
    %1420 = vmatprep.subr.bf16.mxu0 0
    %1421 = vmatpush1.bf16.msra.mxu0 0
    %1422 = vmatprep.subr.bf16.mxu0 0
    %1423 = vmatpush1.bf16.msra.mxu0 0
    %1424 = vmatprep.subr.bf16.mxu0 0
    %1425 = vmatpush1.bf16.msra.mxu0 0
    %1426 = vmatprep.subr.bf16.mxu0 0
    %1427 = vmatpush1.bf16.msra.mxu0 0
    %1428 = vmatprep.subr.bf16.mxu0 0
    %1429 = vmatpush1.bf16.msra.mxu0 0
    %1430 = vmatprep.subr.bf16.mxu0 0
    %1431 = vmatpush1.bf16.msra.mxu0 0
    %1432 = vmatprep.subr.bf16.mxu0 0
    %1433 = vmatpush1.bf16.msra.mxu0 0
    %1434 = vmatprep.subr.bf16.mxu0 0
    %1435 = vmatpush1.bf16.msra.mxu0 0
    %1436 = vmatprep.subr.bf16.mxu0 0
    %1437 = vmatpush1.bf16.msra.mxu0 0
    %1438 = vmatprep.subr.bf16.mxu0 0
    %1439 = vmatpush1.bf16.msra.mxu0 0
    %1440 = vmatprep.mubr.bf16.mxu0 0
    %1441 = vmatmul.mubr.bf16.gmra.mrb[0].mxu0 %v1406
    %v1442 = vpop.f32.mrb[0].mxu0
    %v1443 = vadd.f32 0.0, %v1442
    %v1444 = vpop.f32.mrb[0].mxu0
    %v1445 = vpop.f32.mrb[0].mxu0
    %v1446 = vadd.f32 0.0, %v1445
    %v1447 = vpop.f32.mrb[0].mxu0
    %1448 = vdwg.mxu0
    %v1449 = vpack.c.bf16 %v1446, %v1443
    %v1454 = vunpack.c.l.b16 %v1160
    %v1455 = vunpack.c.l.b16 %v1161
    %v1456 = vunpack.c.l.b16 %v1162
    %v1457 = vunpack.c.l.b16 %v1163
    %v1458 = vpack.c.b16 %v1455, %v1454
    %v1459 = vpack.c.b16 %v1457, %v1456
    %v1463 = vsel %vm346, %v1449, 0
    %1465 = vmatprep.subr.bf16.mxu0 0
    %1466 = vmatpush1.bf16.msra.mxu0 %v1458
    %1467 = vmatprep.subr.bf16.mxu0 0
    %1468 = vmatpush1.bf16.msra.mxu0 %v1459
    %1469 = vmatprep.subr.bf16.mxu0 0
    %1470 = vmatpush1.bf16.msra.mxu0 0
    %1471 = vmatprep.subr.bf16.mxu0 0
    %1472 = vmatpush1.bf16.msra.mxu0 0
    %1473 = vmatprep.subr.bf16.mxu0 0
    %1474 = vmatpush1.bf16.msra.mxu0 0
    %1475 = vmatprep.subr.bf16.mxu0 0
    %1476 = vmatpush1.bf16.msra.mxu0 0
    %1477 = vmatprep.subr.bf16.mxu0 0
    %1478 = vmatpush1.bf16.msra.mxu0 0
    %1479 = vmatprep.subr.bf16.mxu0 0
    %1480 = vmatpush1.bf16.msra.mxu0 0
    %1481 = vmatprep.subr.bf16.mxu0 0
    %1482 = vmatpush1.bf16.msra.mxu0 0
    %1483 = vmatprep.subr.bf16.mxu0 0
    %1484 = vmatpush1.bf16.msra.mxu0 0
    %1485 = vmatprep.subr.bf16.mxu0 0
    %1486 = vmatpush1.bf16.msra.mxu0 0
    %1487 = vmatprep.subr.bf16.mxu0 0
    %1488 = vmatpush1.bf16.msra.mxu0 0
    %1489 = vmatprep.subr.bf16.mxu0 0
    %1490 = vmatpush1.bf16.msra.mxu0 0
    %1491 = vmatprep.subr.bf16.mxu0 0
    %1492 = vmatpush1.bf16.msra.mxu0 0
    %1493 = vmatprep.subr.bf16.mxu0 0
    %1494 = vmatpush1.bf16.msra.mxu0 0
    %1495 = vmatprep.subr.bf16.mxu0 0
    %1496 = vmatpush1.bf16.msra.mxu0 0
    %1497 = vmatprep.mubr.bf16.mxu0 0
    %1498 = vmatmul.mubr.bf16.gmra.mrb[0].mxu0 %v1463
    %v1499 = vpop.f32.mrb[0].mxu0
    %v1500 = vadd.f32 0.0, %v1499
    %v1501 = vpop.f32.mrb[0].mxu0
    %v1502 = vpop.f32.mrb[0].mxu0
    %v1503 = vadd.f32 0.0, %v1502
    %v1504 = vpop.f32.mrb[0].mxu0
    %1505 = vdwg.mxu0
    %v1506 = vadd.f32 %v1100, %v1500
    %v1507 = vadd.f32 %v1101, %v1503
    %v1508 = vsel %vm346, %v1506, 0.0
    %1509 = vadd.xlane.f32.xlu0 %v1508
    %v1510 = vpop.xlane.xlu0 %1509
    %v1511 = vsel %vm346, %v1507, 0.0
    %1512 = vadd.xlane.f32.xlu0 %v1511
    %v1513 = vpop.xlane.xlu0 %1512
    %v1514 = vmul.f32 %v1510, %v428
    %v1515 = vmul.f32 %v1513, %v428
    %v1516 = vmul.f32 %v1506, %v1506
    %v1517 = vmul.f32 %v1507, %v1507
    %v1518 = vsel %vm346, %v1516, 0.0
    %1519 = vadd.xlane.f32.xlu0 %v1518
    %v1520 = vpop.xlane.xlu0 %1519
    %v1521 = vsel %vm346, %v1517, 0.0
    %1522 = vadd.xlane.f32.xlu0 %v1521
    %v1523 = vpop.xlane.xlu0 %1522
    %v1524 = vmul.f32 %v1520, %v428
    %v1525 = vmul.f32 %v1523, %v428
    %v1526 = vmul.f32 %v1514, %v1514
    %v1527 = vmul.f32 %v1515, %v1515
    %v1528 = vsub.f32 %v1524, %v1526
    %v1529 = vsub.f32 %v1525, %v1527
    %v1530 = vsub.f32 %v1506, %v1514
    %v1531 = vsub.f32 %v1507, %v1515
    %v1532 = vadd.f32 %v1528, 1e-05
    %v1533 = vadd.f32 %v1529, 1e-05
    %v1534 = vrsqrt.pop %v1532
    %v1535 = vrsqrt.pop %v1533
    %v1536 = vmul.f32 %v1530, %v1534
    %v1537 = vmul.f32 %v1531, %v1535
    %v1538 = vlaneseq
    %v1539 = vshrl.u32 %v1538, 7
    %v1540 = vsub.s32 3, %v1539
    %v1541 = vrot.slane %v1103, %v1540
    %v1542 = vmul.f32 %v1536, %v1541
    %v1543 = vmul.f32 %v1537, %v1541
    %v1544 = vlaneseq
    %v1545 = vshrl.u32 %v1544, 7
    %v1546 = vsub.s32 3, %v1545
    %v1547 = vrot.slane %v1105, %v1546
    %v1548 = vadd.f32 %v1542, %v1547
    %v1549 = vadd.f32 %v1543, %v1547
    %v1550 = vld [vmem:[%s9 + $0x10] sm:$0xf]
    %v1551 = vld [vmem:[%s9 + $0x14] sm:$0xf]
    %v1552 = vld [vmem:[%s9 + $0x18] sm:$0xf]
    %v1553 = vld [vmem:[%s9 + $0x1c] sm:$0xf]
    %v1554 = vld [vmem:[%s8 + $0x144] sm:$0xf]
    %v1555 = vld [vmem:[%s8 + $0x148] sm:$0xf]
    %v1556 = vld [vmem:[%s8 + $0x14c] sm:$0xf]
    %v1557 = vld [vmem:[%s8 + $0x150] sm:$0xf]
    %v1558 = vld [vmem:[%s8 + $0x154] sm:$0xf]
    %v1559 = vld [vmem:[%s8 + $0x158] sm:$0xf]
    %v1560 = vld [vmem:[%s8 + $0x15c] sm:$0xf]
    %v1561 = vld [vmem:[%s8 + $0x160] sm:$0xf]
    %v1562 = vld [vmem:[%s8 + $0x164] sm:$0xf]
    %v1563 = vld [vmem:[%s8 + $0x168] sm:$0xf]
    %v1564 = vld [vmem:[%s8 + $0x16c] sm:$0xf]
    %v1565 = vld [vmem:[%s8 + $0x170] sm:$0xf]
    %v1566 = vld [vmem:[%s8 + $0x174] sm:$0xf]
    %v1567 = vld [vmem:[%s8 + $0x178] sm:$0xf]
    %v1568 = vld [vmem:[%s8 + $0x17c] sm:$0xf]
    %v1569 = vld [vmem:[%s8 + $0x180] sm:$0xf]
    %v1570 = vpack.c.bf16 %v1549, %v1548
    %v1571 = vlaneseq
    %v1572 = vshrl.u32 %v1571, 7
    %v1573 = vsub.s32 1, %v1572
    %v1574 = vrot.slane %v908, %v1573
    %v1579 = vunpack.c.l.b16 %v1550
    %v1580 = vunpack.c.l.b16 %v1551
    %v1581 = vunpack.c.l.b16 %v1552
    %v1582 = vunpack.c.l.b16 %v1553
    %v1583 = vpack.c.b16 %v1580, %v1579
    %v1584 = vpack.c.b16 %v1582, %v1581
    %v1588 = vsel %vm346, %v1570, 0
    %1590 = vmatprep.subr.bf16.mxu0 0
    %1591 = vmatpush1.bf16.msra.mxu0 %v1583
    %1592 = vmatprep.subr.bf16.mxu0 0
    %1593 = vmatpush1.bf16.msra.mxu0 %v1584
    %1594 = vmatprep.subr.bf16.mxu0 0
    %1595 = vmatpush1.bf16.msra.mxu0 0
    %1596 = vmatprep.subr.bf16.mxu0 0
    %1597 = vmatpush1.bf16.msra.mxu0 0
    %1598 = vmatprep.subr.bf16.mxu0 0
    %1599 = vmatpush1.bf16.msra.mxu0 0
    %1600 = vmatprep.subr.bf16.mxu0 0
    %1601 = vmatpush1.bf16.msra.mxu0 0
    %1602 = vmatprep.subr.bf16.mxu0 0
    %1603 = vmatpush1.bf16.msra.mxu0 0
    %1604 = vmatprep.subr.bf16.mxu0 0
    %1605 = vmatpush1.bf16.msra.mxu0 0
    %1606 = vmatprep.subr.bf16.mxu0 0
    %1607 = vmatpush1.bf16.msra.mxu0 0
    %1608 = vmatprep.subr.bf16.mxu0 0
    %1609 = vmatpush1.bf16.msra.mxu0 0
    %1610 = vmatprep.subr.bf16.mxu0 0
    %1611 = vmatpush1.bf16.msra.mxu0 0
    %1612 = vmatprep.subr.bf16.mxu0 0
    %1613 = vmatpush1.bf16.msra.mxu0 0
    %1614 = vmatprep.subr.bf16.mxu0 0
    %1615 = vmatpush1.bf16.msra.mxu0 0
    %1616 = vmatprep.subr.bf16.mxu0 0
    %1617 = vmatpush1.bf16.msra.mxu0 0
    %1618 = vmatprep.subr.bf16.mxu0 0
    %1619 = vmatpush1.bf16.msra.mxu0 0
    %1620 = vmatprep.subr.bf16.mxu0 0
    %1621 = vmatpush1.bf16.msra.mxu0 0
    %1622 = vmatprep.mubr.bf16.mxu0 0
    %1623 = vmatmul.mubr.bf16.gmra.mrb[0].mxu0 %v1588
    %v1624 = vpop.f32.mrb[0].mxu0
    %v1625 = vadd.f32 %v1574, %v1624
    %v1626 = vpop.f32.mrb[0].mxu0
    %v1627 = vpop.f32.mrb[0].mxu0
    %v1628 = vadd.f32 %v1574, %v1627
    %v1629 = vpop.f32.mrb[0].mxu0
    %1630 = vdwg.mxu0
    %v1631 = vmul.f32 %v1625, %v1625
    %v1632 = vmul.f32 %v1628, %v1628
    %v1633 = vmul.f32 %v1625, %v1631
    %v1634 = vmul.f32 %v1628, %v1632
    %v1635 = vmul.f32 %v1633, 0.044715
    %v1636 = vmul.f32 %v1634, 0.044715
    %v1637 = vadd.f32 %v1625, %v1635
    %v1638 = vadd.f32 %v1628, %v1636
    %v1639 = vmul.f32 %v1637, 0.7978846
    %v1640 = vmul.f32 %v1638, 0.7978846
    %v1641 = vtanh.pop %v1639
    %v1642 = vtanh.pop %v1640
    %v1643 = vadd.f32 %v1641, 1.0
    %v1644 = vadd.f32 %v1642, 1.0
    %v1645 = vmul.f32 %v1643, 0.5
    %v1646 = vmul.f32 %v1644, 0.5
    %v1647 = vmul.f32 %v1625, %v1645
    %v1648 = vmul.f32 %v1628, %v1646
    %v1649 = vpack.c.bf16 %v1648, %v1647
    %v1650 = vlaneseq
    %v1651 = vshrl.u32 %v1650, 7
    %v1652 = vsub.s32 3, %v1651
    %v1653 = vrot.slane %v926, %v1652
    %v1670 = vunpack.c.l.b16 %v1554
    %v1671 = vunpack.c.l.b16 %v1555
    %v1672 = vunpack.c.l.b16 %v1556
    %v1673 = vunpack.c.l.b16 %v1557
    %v1674 = vunpack.c.l.b16 %v1558
    %v1675 = vunpack.c.l.b16 %v1559
    %v1676 = vunpack.c.l.b16 %v1560
    %v1677 = vunpack.c.l.b16 %v1561
    %v1678 = vunpack.c.l.b16 %v1562
    %v1679 = vunpack.c.l.b16 %v1563
    %v1680 = vunpack.c.l.b16 %v1564
    %v1681 = vunpack.c.l.b16 %v1565
    %v1682 = vunpack.c.l.b16 %v1566
    %v1683 = vunpack.c.l.b16 %v1567
    %v1684 = vunpack.c.l.b16 %v1568
    %v1685 = vunpack.c.l.b16 %v1569
    %v1686 = vpack.c.b16 %v1671, %v1670
    %v1687 = vpack.c.b16 %v1673, %v1672
    %v1688 = vpack.c.b16 %v1675, %v1674
    %v1689 = vpack.c.b16 %v1677, %v1676
    %v1690 = vpack.c.b16 %v1679, %v1678
    %v1691 = vpack.c.b16 %v1681, %v1680
    %v1692 = vpack.c.b16 %v1683, %v1682
    %v1693 = vpack.c.b16 %v1685, %v1684
    %1702 = vmatprep.subr.bf16.mxu0 0
    %1703 = vmatpush1.bf16.msra.mxu0 %v1686
    %1704 = vmatprep.subr.bf16.mxu0 0
    %1705 = vmatpush1.bf16.msra.mxu0 %v1687
    %1706 = vmatprep.subr.bf16.mxu0 0
    %1707 = vmatpush1.bf16.msra.mxu0 %v1688
    %1708 = vmatprep.subr.bf16.mxu0 0
    %1709 = vmatpush1.bf16.msra.mxu0 %v1689
    %1710 = vmatprep.subr.bf16.mxu0 0
    %1711 = vmatpush1.bf16.msra.mxu0 %v1690
    %1712 = vmatprep.subr.bf16.mxu0 0
    %1713 = vmatpush1.bf16.msra.mxu0 %v1691
    %1714 = vmatprep.subr.bf16.mxu0 0
    %1715 = vmatpush1.bf16.msra.mxu0 %v1692
    %1716 = vmatprep.subr.bf16.mxu0 0
    %1717 = vmatpush1.bf16.msra.mxu0 %v1693
    %1718 = vmatprep.subr.bf16.mxu0 0
    %1719 = vmatpush1.bf16.msra.mxu0 0
    %1720 = vmatprep.subr.bf16.mxu0 0
    %1721 = vmatpush1.bf16.msra.mxu0 0
    %1722 = vmatprep.subr.bf16.mxu0 0
    %1723 = vmatpush1.bf16.msra.mxu0 0
    %1724 = vmatprep.subr.bf16.mxu0 0
    %1725 = vmatpush1.bf16.msra.mxu0 0
    %1726 = vmatprep.subr.bf16.mxu0 0
    %1727 = vmatpush1.bf16.msra.mxu0 0
    %1728 = vmatprep.subr.bf16.mxu0 0
    %1729 = vmatpush1.bf16.msra.mxu0 0
    %1730 = vmatprep.subr.bf16.mxu0 0
    %1731 = vmatpush1.bf16.msra.mxu0 0
    %1732 = vmatprep.subr.bf16.mxu0 0
    %1733 = vmatpush1.bf16.msra.mxu0 0
    %1734 = vmatprep.mubr.bf16.mxu0 0
    %1735 = vmatmul.mubr.bf16.gmra.mrb[0].mxu0 %v1649
    %v1736 = vpop.f32.mrb[0].mxu0
    %v1737 = vadd.f32 %v1653, %v1736
    %v1738 = vpop.f32.mrb[0].mxu0
    %v1739 = vpop.f32.mrb[0].mxu0
    %v1740 = vadd.f32 %v1653, %v1739
    %v1741 = vpop.f32.mrb[0].mxu0
    %1742 = vdwg.mxu0
    %v1743 = vadd.f32 %v1506, %v1737
    %v1744 = vadd.f32 %v1507, %v1740
    %v1745 = vld [vmem:[%s8 + $0x1c4] sm:$0x4]
    %v1746 = vunpack.c.l.bf16 %v1745
    %v1747 = vld [vmem:[%s8 + $0x1c8] sm:$0x4]
    %v1748 = vunpack.c.l.bf16 %v1747
    %v1749 = vsel %vm346, %v399, 0.0
    %1750 = vadd.xlane.f32.xlu0 %v1749
    %v1751 = vpop.xlane.xlu0 %1750
    %v1752 = vsel %vm346, %v400, 0.0
    %1753 = vadd.xlane.f32.xlu0 %v1752
    %v1754 = vpop.xlane.xlu0 %1753
    %v1755 = vsel %vm346, %v407, 0.0
    %1756 = vadd.xlane.f32.xlu0 %v1755
    %v1757 = vpop.xlane.xlu0 %1756
    %v1758 = vsel %vm346, %v401, 0.0
    %1759 = vadd.xlane.f32.xlu0 %v1758
    %v1760 = vpop.xlane.xlu0 %1759
    %v1761 = vsel %vm346, %v402, 0.0
    %1762 = vadd.xlane.f32.xlu0 %v1761
    %v1763 = vpop.xlane.xlu0 %1762
    %v1764 = vsel %vm346, %v408, 0.0
    %1765 = vadd.xlane.f32.xlu0 %v1764
    %v1766 = vpop.xlane.xlu0 %1765
    %v1767 = vmul.f32 %v1751, %v428
    %v1768 = vmul.f32 %v1754, %v428
    %v1769 = vmul.f32 %v1757, %v428
    %v1770 = vmul.f32 %v1760, %v428
    %v1771 = vmul.f32 %v1763, %v428
    %v1772 = vmul.f32 %v1766, %v428
    %v1773 = vmul.f32 %v399, %v399
    %v1774 = vmul.f32 %v400, %v400
    %v1775 = vmul.f32 %v407, %v407
    %v1776 = vmul.f32 %v401, %v401
    %v1777 = vmul.f32 %v402, %v402
    %v1778 = vmul.f32 %v408, %v408
    %v1779 = vsel %vm346, %v1773, 0.0
    %1780 = vadd.xlane.f32.xlu0 %v1779
    %v1781 = vpop.xlane.xlu0 %1780
    %v1782 = vsel %vm346, %v1774, 0.0
    %1783 = vadd.xlane.f32.xlu0 %v1782
    %v1784 = vpop.xlane.xlu0 %1783
    %v1785 = vsel %vm346, %v1775, 0.0
    %1786 = vadd.xlane.f32.xlu0 %v1785
    %v1787 = vpop.xlane.xlu0 %1786
    %v1788 = vsel %vm346, %v1776, 0.0
    %1789 = vadd.xlane.f32.xlu0 %v1788
    %v1790 = vpop.xlane.xlu0 %1789
    %v1791 = vsel %vm346, %v1777, 0.0
    %1792 = vadd.xlane.f32.xlu0 %v1791
    %v1793 = vpop.xlane.xlu0 %1792
    %v1794 = vsel %vm346, %v1778, 0.0
    %1795 = vadd.xlane.f32.xlu0 %v1794
    %v1796 = vpop.xlane.xlu0 %1795
    %v1797 = vmul.f32 %v1781, %v428
    %v1798 = vmul.f32 %v1784, %v428
    %v1799 = vmul.f32 %v1787, %v428
    %v1800 = vmul.f32 %v1790, %v428
    %v1801 = vmul.f32 %v1793, %v428
    %v1802 = vmul.f32 %v1796, %v428
    %v1803 = vmul.f32 %v1767, %v1767
    %v1804 = vmul.f32 %v1768, %v1768
    %v1805 = vmul.f32 %v1769, %v1769
    %v1806 = vmul.f32 %v1770, %v1770
    %v1807 = vmul.f32 %v1771, %v1771
    %v1808 = vmul.f32 %v1772, %v1772
    %v1809 = vsub.f32 %v1797, %v1803
    %v1810 = vsub.f32 %v1798, %v1804
    %v1811 = vsub.f32 %v1799, %v1805
    %v1812 = vsub.f32 %v1800, %v1806
    %v1813 = vsub.f32 %v1801, %v1807
    %v1814 = vsub.f32 %v1802, %v1808
    %v1815 = vsub.f32 %v399, %v1767
    %v1816 = vsub.f32 %v400, %v1768
    %v1817 = vsub.f32 %v407, %v1769
    %v1818 = vsub.f32 %v401, %v1770
    %v1819 = vsub.f32 %v402, %v1771
    %v1820 = vsub.f32 %v408, %v1772
    %v1821 = vadd.f32 %v1809, 1e-05
    %v1822 = vadd.f32 %v1810, 1e-05
    %v1823 = vadd.f32 %v1811, 1e-05
    %v1824 = vadd.f32 %v1812, 1e-05
    %v1825 = vadd.f32 %v1813, 1e-05
    %v1826 = vadd.f32 %v1814, 1e-05
    %v1827 = vrsqrt.pop %v1821
    %v1828 = vrsqrt.pop %v1822
    %v1829 = vrsqrt.pop %v1823
    %v1830 = vrsqrt.pop %v1824
    %v1831 = vrsqrt.pop %v1825
    %v1832 = vrsqrt.pop %v1826
    %v1833 = vmul.f32 %v1815, %v1827
    %v1834 = vmul.f32 %v1816, %v1828
    %v1835 = vmul.f32 %v1817, %v1829
    %v1836 = vmul.f32 %v1818, %v1830
    %v1837 = vmul.f32 %v1819, %v1831
    %v1838 = vmul.f32 %v1820, %v1832
    %v1839 = vlaneseq
    %v1840 = vshrl.u32 %v1839, 7
    %v1841 = vsub.s32 4, %v1840
    %v1842 = vrot.slane %v1746, %v1841
    %v1843 = vmul.f32 %v1833, %v1842
    %v1844 = vmul.f32 %v1834, %v1842
    %v1845 = vmul.f32 %v1835, %v1842
    %v1846 = vmul.f32 %v1836, %v1842
    %v1847 = vmul.f32 %v1837, %v1842
    %v1848 = vmul.f32 %v1838, %v1842
    %v1849 = vlaneseq
    %v1850 = vshrl.u32 %v1849, 7
    %v1851 = vsub.s32 4, %v1850
    %v1852 = vrot.slane %v1748, %v1851
    %v1853 = vadd.f32 %v1843, %v1852
    %v1854 = vadd.f32 %v1844, %v1852
    %v1855 = vadd.f32 %v1845, %v1852
    %v1856 = vadd.f32 %v1846, %v1852
    %v1857 = vadd.f32 %v1847, %v1852
    %v1858 = vadd.f32 %v1848, %v1852
    %v1859 = vld [vmem:[%s8 + $0xc4] sm:$0xf]
    %v1860 = vld [vmem:[%s8 + $0xc8] sm:$0xf]
    %v1861 = vld [vmem:[%s8 + $0xcc] sm:$0xf]
    %v1862 = vld [vmem:[%s8 + $0xd0] sm:$0xf]
    %v1863 = vld [vmem:[%s8 + $0xd4] sm:$0xf]
    %v1864 = vld [vmem:[%s8 + $0xd8] sm:$0xf]
    %v1865 = vld [vmem:[%s8 + $0xdc] sm:$0xf]
    %v1866 = vld [vmem:[%s8 + $0xe0] sm:$0xf]
    %v1867 = vld [vmem:[%s8 + $0xe4] sm:$0xf]
    %v1868 = vld [vmem:[%s8 + $0xe8] sm:$0xf]
    %v1869 = vld [vmem:[%s8 + $0xec] sm:$0xf]
    %v1870 = vld [vmem:[%s8 + $0xf0] sm:$0xf]
    %v1871 = vld [vmem:[%s8 + $0xf4] sm:$0xf]
    %v1872 = vld [vmem:[%s8 + $0xf8] sm:$0xf]
    %v1873 = vld [vmem:[%s8 + $0xfc] sm:$0xf]
    %v1874 = vld [vmem:[%s8 + $0x100] sm:$0xf]
    %v1875 = vpack.c.bf16 %v1854, %v1853
    %v1876 = vpack.c.bf16 %v1856, %v1855
    %v1877 = vpack.c.bf16 %v1858, %v1857
    %v1882 = vunpack.c.l.b16 %v1859
    %v1883 = vunpack.c.l.b16 %v1860
    %v1884 = vunpack.c.l.b16 %v1861
    %v1885 = vunpack.c.l.b16 %v1862
    %v1886 = vpack.c.b16 %v1883, %v1882
    %v1887 = vpack.c.b16 %v1885, %v1884
    %v1891 = vsel %vm346, %v1875, 0
    %v1894 = vsel %vm346, %v1876, 0
    %v1897 = vsel %vm346, %v1877, 0
    %1899 = vmatprep.subr.bf16.mxu0 0
    %1900 = vmatpush1.bf16.msra.mxu0 %v1886
    %1901 = vmatprep.subr.bf16.mxu0 0
    %1902 = vmatpush1.bf16.msra.mxu0 %v1887
    %1903 = vmatprep.subr.bf16.mxu0 0
    %1904 = vmatpush1.bf16.msra.mxu0 0
    %1905 = vmatprep.subr.bf16.mxu0 0
    %1906 = vmatpush1.bf16.msra.mxu0 0
    %1907 = vmatprep.subr.bf16.mxu0 0
    %1908 = vmatpush1.bf16.msra.mxu0 0
    %1909 = vmatprep.subr.bf16.mxu0 0
    %1910 = vmatpush1.bf16.msra.mxu0 0
    %1911 = vmatprep.subr.bf16.mxu0 0
    %1912 = vmatpush1.bf16.msra.mxu0 0
    %1913 = vmatprep.subr.bf16.mxu0 0
    %1914 = vmatpush1.bf16.msra.mxu0 0
    %1915 = vmatprep.subr.bf16.mxu0 0
    %1916 = vmatpush1.bf16.msra.mxu0 0
    %1917 = vmatprep.subr.bf16.mxu0 0
    %1918 = vmatpush1.bf16.msra.mxu0 0
    %1919 = vmatprep.subr.bf16.mxu0 0
    %1920 = vmatpush1.bf16.msra.mxu0 0
    %1921 = vmatprep.subr.bf16.mxu0 0
    %1922 = vmatpush1.bf16.msra.mxu0 0
    %1923 = vmatprep.subr.bf16.mxu0 0
    %1924 = vmatpush1.bf16.msra.mxu0 0
    %1925 = vmatprep.subr.bf16.mxu0 0
    %1926 = vmatpush1.bf16.msra.mxu0 0
    %1927 = vmatprep.subr.bf16.mxu0 0
    %1928 = vmatpush1.bf16.msra.mxu0 0
    %1929 = vmatprep.subr.bf16.mxu0 0
    %1930 = vmatpush1.bf16.msra.mxu0 0
    %1931 = vmatprep.mubr.bf16.mxu0 0
    %1932 = vmatmul.mubr.bf16.gmra.mrb[0].mxu0 %v1891
    %v1933 = vpop.f32.mrb[0].mxu0
    %v1934 = vadd.f32 0.0, %v1933
    %v1935 = vpop.f32.mrb[0].mxu0
    %v1936 = vpop.f32.mrb[0].mxu0
    %v1937 = vadd.f32 0.0, %v1936
    %v1938 = vpop.f32.mrb[0].mxu0
    %1939 = vmatprep.mubr.bf16.mxu0 0
    %1940 = vmatmul.mubr.bf16.gmra.mrb[0].mxu0 %v1894
    %v1941 = vpop.f32.mrb[0].mxu0
    %v1942 = vadd.f32 0.0, %v1941
    %v1943 = vpop.f32.mrb[0].mxu0
    %v1944 = vpop.f32.mrb[0].mxu0
    %v1945 = vadd.f32 0.0, %v1944
    %v1946 = vpop.f32.mrb[0].mxu0
    %1947 = vmatprep.mubr.bf16.mxu0 0
    %1948 = vmatmul.mubr.bf16.gmra.mrb[0].mxu0 %v1897
    %v1949 = vpop.f32.mrb[0].mxu0
    %v1950 = vadd.f32 0.0, %v1949
    %v1951 = vpop.f32.mrb[0].mxu0
    %v1952 = vpop.f32.mrb[0].mxu0
    %v1953 = vadd.f32 0.0, %v1952
    %v1954 = vpop.f32.mrb[0].mxu0
    %1955 = vdwg.mxu0
    %v1956 = vpack.c.bf16 %v1744, %v1743
    %v1961 = vunpack.c.l.b16 %v1863
    %v1962 = vunpack.c.l.b16 %v1864
    %v1963 = vunpack.c.l.b16 %v1865
    %v1964 = vunpack.c.l.b16 %v1866
    %v1965 = vpack.c.b16 %v1962, %v1961
    %v1966 = vpack.c.b16 %v1964, %v1963
    %v1970 = vsel %vm346, %v1956, 0
    %1972 = vmatprep.subr.bf16.mxu0 0
    %1973 = vmatpush1.bf16.msra.mxu0 %v1965
    %1974 = vmatprep.subr.bf16.mxu0 0
    %1975 = vmatpush1.bf16.msra.mxu0 %v1966
    %1976 = vmatprep.subr.bf16.mxu0 0
    %1977 = vmatpush1.bf16.msra.mxu0 0
    %1978 = vmatprep.subr.bf16.mxu0 0
    %1979 = vmatpush1.bf16.msra.mxu0 0
    %1980 = vmatprep.subr.bf16.mxu0 0
    %1981 = vmatpush1.bf16.msra.mxu0 0
    %1982 = vmatprep.subr.bf16.mxu0 0
    %1983 = vmatpush1.bf16.msra.mxu0 0
    %1984 = vmatprep.subr.bf16.mxu0 0
    %1985 = vmatpush1.bf16.msra.mxu0 0
    %1986 = vmatprep.subr.bf16.mxu0 0
    %1987 = vmatpush1.bf16.msra.mxu0 0
    %1988 = vmatprep.subr.bf16.mxu0 0
    %1989 = vmatpush1.bf16.msra.mxu0 0
    %1990 = vmatprep.subr.bf16.mxu0 0
    %1991 = vmatpush1.bf16.msra.mxu0 0
    %1992 = vmatprep.subr.bf16.mxu0 0
    %1993 = vmatpush1.bf16.msra.mxu0 0
    %1994 = vmatprep.subr.bf16.mxu0 0
    %1995 = vmatpush1.bf16.msra.mxu0 0
    %1996 = vmatprep.subr.bf16.mxu0 0
    %1997 = vmatpush1.bf16.msra.mxu0 0
    %1998 = vmatprep.subr.bf16.mxu0 0
    %1999 = vmatpush1.bf16.msra.mxu0 0
    %2000 = vmatprep.subr.bf16.mxu0 0
    %2001 = vmatpush1.bf16.msra.mxu0 0
    %2002 = vmatprep.subr.bf16.mxu0 0
    %2003 = vmatpush1.bf16.msra.mxu0 0
    %2004 = vmatprep.mubr.bf16.mxu0 0
    %2005 = vmatmul.mubr.bf16.gmra.mrb[0].mxu0 %v1970
    %v2006 = vpop.f32.mrb[0].mxu0
    %v2007 = vadd.f32 0.0, %v2006
    %v2008 = vpop.f32.mrb[0].mxu0
    %v2009 = vpop.f32.mrb[0].mxu0
    %v2010 = vadd.f32 0.0, %v2009
    %v2011 = vpop.f32.mrb[0].mxu0
    %2012 = vdwg.mxu0
    %v2017 = vunpack.c.l.b16 %v1867
    %v2018 = vunpack.c.l.b16 %v1868
    %v2019 = vunpack.c.l.b16 %v1869
    %v2020 = vunpack.c.l.b16 %v1870
    %v2021 = vpack.c.b16 %v2018, %v2017
    %v2022 = vpack.c.b16 %v2020, %v2019
    %2025 = vmatprep.subr.bf16.mxu0 0
    %2026 = vmatpush1.bf16.msra.mxu0 %v2021
    %2027 = vmatprep.subr.bf16.mxu0 0
    %2028 = vmatpush1.bf16.msra.mxu0 %v2022
    %2029 = vmatprep.subr.bf16.mxu0 0
    %2030 = vmatpush1.bf16.msra.mxu0 0
    %2031 = vmatprep.subr.bf16.mxu0 0
    %2032 = vmatpush1.bf16.msra.mxu0 0
    %2033 = vmatprep.subr.bf16.mxu0 0
    %2034 = vmatpush1.bf16.msra.mxu0 0
    %2035 = vmatprep.subr.bf16.mxu0 0
    %2036 = vmatpush1.bf16.msra.mxu0 0
    %2037 = vmatprep.subr.bf16.mxu0 0
    %2038 = vmatpush1.bf16.msra.mxu0 0
    %2039 = vmatprep.subr.bf16.mxu0 0
    %2040 = vmatpush1.bf16.msra.mxu0 0
    %2041 = vmatprep.subr.bf16.mxu0 0
    %2042 = vmatpush1.bf16.msra.mxu0 0
    %2043 = vmatprep.subr.bf16.mxu0 0
    %2044 = vmatpush1.bf16.msra.mxu0 0
    %2045 = vmatprep.subr.bf16.mxu0 0
    %2046 = vmatpush1.bf16.msra.mxu0 0
    %2047 = vmatprep.subr.bf16.mxu0 0
    %2048 = vmatpush1.bf16.msra.mxu0 0
    %2049 = vmatprep.subr.bf16.mxu0 0
    %2050 = vmatpush1.bf16.msra.mxu0 0
    %2051 = vmatprep.subr.bf16.mxu0 0
    %2052 = vmatpush1.bf16.msra.mxu0 0
    %2053 = vmatprep.subr.bf16.mxu0 0
    %2054 = vmatpush1.bf16.msra.mxu0 0
    %2055 = vmatprep.subr.bf16.mxu0 0
    %2056 = vmatpush1.bf16.msra.mxu0 0
    %2057 = vmatprep.mubr.bf16.mxu0 0
    %2058 = vmatmul.mubr.bf16.gmra.mrb[0].mxu0 %v1970
    %v2059 = vpop.f32.mrb[0].mxu0
    %v2060 = vadd.f32 0.0, %v2059
    %v2061 = vpop.f32.mrb[0].mxu0
    %v2062 = vpop.f32.mrb[0].mxu0
    %v2063 = vadd.f32 0.0, %v2062
    %v2064 = vpop.f32.mrb[0].mxu0
    %2065 = vdwg.mxu0
    %v2066 = vpack.c.bf16 %v1937, %v1934
    %v2067 = vpack.c.bf16 %v1945, %v1942
    %v2068 = vpack.c.bf16 %v1953, %v1950
    %v2069 = vpack.c.bf16 %v2010, %v2007
    %v2071 = vsel %vm346, %v2066, 0
    %v2074 = vsel %vm346, %v2067, 0
    %v2077 = vsel %vm346, %v2068, 0
    %v2080 = vsel %vm346, %v2069, 0
    %2082 = vmatprep.subr.bf16.mxu0 0
    %2083 = vmatpush1.bf16.xpose.msra.mxu0 %v2080
    %2084 = vmatprep.subr.bf16.mxu0 0
    %2085 = vmatpush1.bf16.xpose.msra.mxu0 0
    %2086 = vmatprep.subr.bf16.mxu0 0
    %2087 = vmatpush1.bf16.xpose.msra.mxu0 0
    %2088 = vmatprep.subr.bf16.mxu0 0
    %2089 = vmatpush1.bf16.xpose.msra.mxu0 0
    %2090 = vmatprep.subr.bf16.mxu0 0
    %2091 = vmatpush1.bf16.xpose.msra.mxu0 0
    %2092 = vmatprep.subr.bf16.mxu0 0
    %2093 = vmatpush1.bf16.xpose.msra.mxu0 0
    %2094 = vmatprep.subr.bf16.mxu0 0
    %2095 = vmatpush1.bf16.xpose.msra.mxu0 0
    %2096 = vmatprep.subr.bf16.mxu0 0
    %2097 = vmatpush1.bf16.xpose.msra.mxu0 0
    %2098 = vmatprep.subr.bf16.mxu0 0
    %2099 = vmatpush1.bf16.xpose.msra.mxu0 0
    %2100 = vmatprep.subr.bf16.mxu0 0
    %2101 = vmatpush1.bf16.xpose.msra.mxu0 0
    %2102 = vmatprep.subr.bf16.mxu0 0
    %2103 = vmatpush1.bf16.xpose.msra.mxu0 0
    %2104 = vmatprep.subr.bf16.mxu0 0
    %2105 = vmatpush1.bf16.xpose.msra.mxu0 0
    %2106 = vmatprep.subr.bf16.mxu0 0
    %2107 = vmatpush1.bf16.xpose.msra.mxu0 0
    %2108 = vmatprep.subr.bf16.mxu0 0
    %2109 = vmatpush1.bf16.xpose.msra.mxu0 0
    %2110 = vmatprep.subr.bf16.mxu0 0
    %2111 = vmatpush1.bf16.xpose.msra.mxu0 0
    %2112 = vmatprep.subr.bf16.mxu0 0
    %2113 = vmatpush1.bf16.xpose.msra.mxu0 0
    %2114 = vmatprep.mubr.bf16.mxu0 0
    %2115 = vmatmul.mubr.bf16.gmra.mrb[0].mxu0 %v2071
    %v2116 = vpop.f32.mrb[0].mxu0
    %v2117 = vadd.f32 %v415, %v2116
    %v2118 = vpop.f32.mrb[0].mxu0
    %v2119 = vpop.f32.mrb[0].mxu0
    %v2120 = vadd.f32 %v416, %v2119
    %v2121 = vpop.f32.mrb[0].mxu0
    %2122 = vmatprep.mubr.bf16.mxu0 0
    %2123 = vmatmul.mubr.bf16.gmra.mrb[0].mxu0 %v2074
    %v2124 = vpop.f32.mrb[0].mxu0
    %v2125 = vadd.f32 %v417, %v2124
    %v2126 = vpop.f32.mrb[0].mxu0
    %v2127 = vpop.f32.mrb[0].mxu0
    %v2128 = vadd.f32 %v418, %v2127
    %v2129 = vpop.f32.mrb[0].mxu0
    %2130 = vmatprep.mubr.bf16.mxu0 0
    %2131 = vmatmul.mubr.bf16.gmra.mrb[0].mxu0 %v2077
    %v2132 = vpop.f32.mrb[0].mxu0
    %v2133 = vadd.f32 %v419, %v2132
    %v2134 = vpop.f32.mrb[0].mxu0
    %v2135 = vpop.f32.mrb[0].mxu0
    %v2136 = vadd.f32 %v420, %v2135
    %v2137 = vpop.f32.mrb[0].mxu0
    %2138 = vdwg.mxu0
    %v2139 = vsel %vm1380, %v2117, -inf
    %2140 = vmax.xlane.f32.xlu0 %v2139
    %v2141 = vpop.xlane.xlu0 %2140
    %v2142 = vsel %vm1380, %v2120, -inf
    %2143 = vmax.xlane.f32.xlu0 %v2142
    %v2144 = vpop.xlane.xlu0 %2143
    %v2145 = vsel %vm1380, %v2125, -inf
    %2146 = vmax.xlane.f32.xlu0 %v2145
    %v2147 = vpop.xlane.xlu0 %2146
    %v2148 = vsel %vm1380, %v2128, -inf
    %2149 = vmax.xlane.f32.xlu0 %v2148
    %v2150 = vpop.xlane.xlu0 %2149
    %v2151 = vsel %vm1380, %v2133, -inf
    %2152 = vmax.xlane.f32.xlu0 %v2151
    %v2153 = vpop.xlane.xlu0 %2152
    %v2154 = vsel %vm1380, %v2136, -inf
    %2155 = vmax.xlane.f32.xlu0 %v2154
    %v2156 = vpop.xlane.xlu0 %2155
    %v2157 = vsub.f32 %v2117, %v2141
    %v2158 = vsub.f32 %v2120, %v2144
    %v2159 = vsub.f32 %v2125, %v2147
    %v2160 = vsub.f32 %v2128, %v2150
    %v2161 = vsub.f32 %v2133, %v2153
    %v2162 = vsub.f32 %v2136, %v2156
    %v2163 = vmul.f32 %v2157, 1.442695
    %v2164 = vpow.pop %v2163
    %v2165 = vmul.f32 %v2158, 1.442695
    %v2166 = vpow.pop %v2165
    %v2167 = vmul.f32 %v2159, 1.442695
    %v2168 = vpow.pop %v2167
    %v2169 = vmul.f32 %v2160, 1.442695
    %v2170 = vpow.pop %v2169
    %v2171 = vmul.f32 %v2161, 1.442695
    %v2172 = vpow.pop %v2171
    %v2173 = vmul.f32 %v2162, 1.442695
    %v2174 = vpow.pop %v2173
    %v2175 = vsel %vm1380, %v2164, 0.0
    %2176 = vadd.xlane.f32.xlu0 %v2175
    %v2177 = vpop.xlane.xlu0 %2176
    %v2178 = vsel %vm1380, %v2166, 0.0
    %2179 = vadd.xlane.f32.xlu0 %v2178
    %v2180 = vpop.xlane.xlu0 %2179
    %v2181 = vsel %vm1380, %v2168, 0.0
    %2182 = vadd.xlane.f32.xlu0 %v2181
    %v2183 = vpop.xlane.xlu0 %2182
    %v2184 = vsel %vm1380, %v2170, 0.0
    %2185 = vadd.xlane.f32.xlu0 %v2184
    %v2186 = vpop.xlane.xlu0 %2185
    %v2187 = vsel %vm1380, %v2172, 0.0
    %2188 = vadd.xlane.f32.xlu0 %v2187
    %v2189 = vpop.xlane.xlu0 %2188
    %v2190 = vsel %vm1380, %v2174, 0.0
    %2191 = vadd.xlane.f32.xlu0 %v2190
    %v2192 = vpop.xlane.xlu0 %2191
    %v2193 = vrcp.pop %v2177
    %v2194 = vrcp.pop %v2180
    %v2195 = vrcp.pop %v2183
    %v2196 = vrcp.pop %v2186
    %v2197 = vrcp.pop %v2189
    %v2198 = vrcp.pop %v2192
    %v2199 = vmul.f32 %v2164, %v2193
    %v2200 = vmul.f32 %v2166, %v2194
    %v2201 = vmul.f32 %v2168, %v2195
    %v2202 = vmul.f32 %v2170, %v2196
    %v2203 = vmul.f32 %v2172, %v2197
    %v2204 = vmul.f32 %v2174, %v2198
    %v2205 = vpack.c.bf16 %v2200, %v2199
    %v2206 = vpack.c.bf16 %v2202, %v2201
    %v2207 = vpack.c.bf16 %v2204, %v2203
    %v2208 = vpack.c.bf16 %v2063, %v2060
    %v2210 = vsel %vm1380, %v2205, 0
    %v2213 = vsel %vm1380, %v2206, 0
    %v2216 = vsel %vm1380, %v2207, 0
    %2218 = vmatprep.subr.bf16.mxu0 0
    %2219 = vmatpush1.bf16.msra.mxu0 %v2208
    %2220 = vmatprep.subr.bf16.mxu0 0
    %2221 = vmatpush1.bf16.msra.mxu0 0
    %2222 = vmatprep.subr.bf16.mxu0 0
    %2223 = vmatpush1.bf16.msra.mxu0 0
    %2224 = vmatprep.subr.bf16.mxu0 0
    %2225 = vmatpush1.bf16.msra.mxu0 0
    %2226 = vmatprep.subr.bf16.mxu0 0
    %2227 = vmatpush1.bf16.msra.mxu0 0
    %2228 = vmatprep.subr.bf16.mxu0 0
    %2229 = vmatpush1.bf16.msra.mxu0 0
    %2230 = vmatprep.subr.bf16.mxu0 0
    %2231 = vmatpush1.bf16.msra.mxu0 0
    %2232 = vmatprep.subr.bf16.mxu0 0
    %2233 = vmatpush1.bf16.msra.mxu0 0
    %2234 = vmatprep.subr.bf16.mxu0 0
    %2235 = vmatpush1.bf16.msra.mxu0 0
    %2236 = vmatprep.subr.bf16.mxu0 0
    %2237 = vmatpush1.bf16.msra.mxu0 0
    %2238 = vmatprep.subr.bf16.mxu0 0
    %2239 = vmatpush1.bf16.msra.mxu0 0
    %2240 = vmatprep.subr.bf16.mxu0 0
    %2241 = vmatpush1.bf16.msra.mxu0 0
    %2242 = vmatprep.subr.bf16.mxu0 0
    %2243 = vmatpush1.bf16.msra.mxu0 0
    %2244 = vmatprep.subr.bf16.mxu0 0
    %2245 = vmatpush1.bf16.msra.mxu0 0
    %2246 = vmatprep.subr.bf16.mxu0 0
    %2247 = vmatpush1.bf16.msra.mxu0 0
    %2248 = vmatprep.subr.bf16.mxu0 0
    %2249 = vmatpush1.bf16.msra.mxu0 0
    %2250 = vmatprep.mubr.bf16.mxu0 0
    %2251 = vmatmul.mubr.bf16.gmra.mrb[0].mxu0 %v2210
    %v2252 = vpop.f32.mrb[0].mxu0
    %v2253 = vadd.f32 0.0, %v2252
    %v2254 = vpop.f32.mrb[0].mxu0
    %v2255 = vpop.f32.mrb[0].mxu0
    %v2256 = vadd.f32 0.0, %v2255
    %v2257 = vpop.f32.mrb[0].mxu0
    %2258 = vmatprep.mubr.bf16.mxu0 0
    %2259 = vmatmul.mubr.bf16.gmra.mrb[0].mxu0 %v2213
    %v2260 = vpop.f32.mrb[0].mxu0
    %v2261 = vadd.f32 0.0, %v2260
    %v2262 = vpop.f32.mrb[0].mxu0
    %v2263 = vpop.f32.mrb[0].mxu0
    %v2264 = vadd.f32 0.0, %v2263
    %v2265 = vpop.f32.mrb[0].mxu0
    %2266 = vmatprep.mubr.bf16.mxu0 0
    %2267 = vmatmul.mubr.bf16.gmra.mrb[0].mxu0 %v2216
    %v2268 = vpop.f32.mrb[0].mxu0
    %v2269 = vadd.f32 0.0, %v2268
    %v2270 = vpop.f32.mrb[0].mxu0
    %v2271 = vpop.f32.mrb[0].mxu0
    %v2272 = vadd.f32 0.0, %v2271
    %v2273 = vpop.f32.mrb[0].mxu0
    %2274 = vdwg.mxu0
    %v2275 = vpack.c.bf16 %v2256, %v2253
    %v2276 = vpack.c.bf16 %v2264, %v2261
    %v2277 = vpack.c.bf16 %v2272, %v2269
    %v2282 = vunpack.c.l.b16 %v1871
    %v2283 = vunpack.c.l.b16 %v1872
    %v2284 = vunpack.c.l.b16 %v1873
    %v2285 = vunpack.c.l.b16 %v1874
    %v2286 = vpack.c.b16 %v2283, %v2282
    %v2287 = vpack.c.b16 %v2285, %v2284
    %v2291 = vsel %vm346, %v2275, 0
    %v2294 = vsel %vm346, %v2276, 0
    %v2297 = vsel %vm346, %v2277, 0
    %2299 = vmatprep.subr.bf16.mxu0 0
    %2300 = vmatpush1.bf16.msra.mxu0 %v2286
    %2301 = vmatprep.subr.bf16.mxu0 0
    %2302 = vmatpush1.bf16.msra.mxu0 %v2287
    %2303 = vmatprep.subr.bf16.mxu0 0
    %2304 = vmatpush1.bf16.msra.mxu0 0
    %2305 = vmatprep.subr.bf16.mxu0 0
    %2306 = vmatpush1.bf16.msra.mxu0 0
    %2307 = vmatprep.subr.bf16.mxu0 0
    %2308 = vmatpush1.bf16.msra.mxu0 0
    %2309 = vmatprep.subr.bf16.mxu0 0
    %2310 = vmatpush1.bf16.msra.mxu0 0
    %2311 = vmatprep.subr.bf16.mxu0 0
    %2312 = vmatpush1.bf16.msra.mxu0 0
    %2313 = vmatprep.subr.bf16.mxu0 0
    %2314 = vmatpush1.bf16.msra.mxu0 0
    %2315 = vmatprep.subr.bf16.mxu0 0
    %2316 = vmatpush1.bf16.msra.mxu0 0
    %2317 = vmatprep.subr.bf16.mxu0 0
    %2318 = vmatpush1.bf16.msra.mxu0 0
    %2319 = vmatprep.subr.bf16.mxu0 0
    %2320 = vmatpush1.bf16.msra.mxu0 0
    %2321 = vmatprep.subr.bf16.mxu0 0
    %2322 = vmatpush1.bf16.msra.mxu0 0
    %2323 = vmatprep.subr.bf16.mxu0 0
    %2324 = vmatpush1.bf16.msra.mxu0 0
    %2325 = vmatprep.subr.bf16.mxu0 0
    %2326 = vmatpush1.bf16.msra.mxu0 0
    %2327 = vmatprep.subr.bf16.mxu0 0
    %2328 = vmatpush1.bf16.msra.mxu0 0
    %2329 = vmatprep.subr.bf16.mxu0 0
    %2330 = vmatpush1.bf16.msra.mxu0 0
    %2331 = vmatprep.mubr.bf16.mxu0 0
    %2332 = vmatmul.mubr.bf16.gmra.mrb[0].mxu0 %v2291
    %v2333 = vpop.f32.mrb[0].mxu0
    %v2334 = vadd.f32 0.0, %v2333
    %v2335 = vpop.f32.mrb[0].mxu0
    %v2336 = vpop.f32.mrb[0].mxu0
    %v2337 = vadd.f32 0.0, %v2336
    %v2338 = vpop.f32.mrb[0].mxu0
    %2339 = vmatprep.mubr.bf16.mxu0 0
    %2340 = vmatmul.mubr.bf16.gmra.mrb[0].mxu0 %v2294
    %v2341 = vpop.f32.mrb[0].mxu0
    %v2342 = vadd.f32 0.0, %v2341
    %v2343 = vpop.f32.mrb[0].mxu0
    %v2344 = vpop.f32.mrb[0].mxu0
    %v2345 = vadd.f32 0.0, %v2344
    %v2346 = vpop.f32.mrb[0].mxu0
    %2347 = vmatprep.mubr.bf16.mxu0 0
    %2348 = vmatmul.mubr.bf16.gmra.mrb[0].mxu0 %v2297
    %v2349 = vpop.f32.mrb[0].mxu0
    %v2350 = vadd.f32 0.0, %v2349
    %v2351 = vpop.f32.mrb[0].mxu0
    %v2352 = vpop.f32.mrb[0].mxu0
    %v2353 = vadd.f32 0.0, %v2352
    %v2354 = vpop.f32.mrb[0].mxu0
    %2355 = vdwg.mxu0
    %v2356 = vadd.f32 %v399, %v2334
    %v2357 = vadd.f32 %v400, %v2337
    %v2358 = vadd.f32 %v407, %v2342
    %v2359 = vadd.f32 %v401, %v2345
    %v2360 = vadd.f32 %v402, %v2350
    %v2361 = vadd.f32 %v408, %v2353
    %v2362 = vsel %vm346, %v2356, 0.0
    %2363 = vadd.xlane.f32.xlu0 %v2362
    %v2364 = vpop.xlane.xlu0 %2363
    %v2365 = vsel %vm346, %v2357, 0.0
    %2366 = vadd.xlane.f32.xlu0 %v2365
    %v2367 = vpop.xlane.xlu0 %2366
    %v2368 = vsel %vm346, %v2358, 0.0
    %2369 = vadd.xlane.f32.xlu0 %v2368
    %v2370 = vpop.xlane.xlu0 %2369
    %v2371 = vsel %vm346, %v2359, 0.0
    %2372 = vadd.xlane.f32.xlu0 %v2371
    %v2373 = vpop.xlane.xlu0 %2372
    %v2374 = vsel %vm346, %v2360, 0.0
    %2375 = vadd.xlane.f32.xlu0 %v2374
    %v2376 = vpop.xlane.xlu0 %2375
    %v2377 = vsel %vm346, %v2361, 0.0
    %2378 = vadd.xlane.f32.xlu0 %v2377
    %v2379 = vpop.xlane.xlu0 %2378
    %v2380 = vmul.f32 %v2364, %v428
    %v2381 = vmul.f32 %v2367, %v428
    %v2382 = vmul.f32 %v2370, %v428
    %v2383 = vmul.f32 %v2373, %v428
    %v2384 = vmul.f32 %v2376, %v428
    %v2385 = vmul.f32 %v2379, %v428
    %v2386 = vmul.f32 %v2356, %v2356
    %v2387 = vmul.f32 %v2357, %v2357
    %v2388 = vmul.f32 %v2358, %v2358
    %v2389 = vmul.f32 %v2359, %v2359
    %v2390 = vmul.f32 %v2360, %v2360
    %v2391 = vmul.f32 %v2361, %v2361
    %v2392 = vsel %vm346, %v2386, 0.0
    %2393 = vadd.xlane.f32.xlu0 %v2392
    %v2394 = vpop.xlane.xlu0 %2393
    %v2395 = vsel %vm346, %v2387, 0.0
    %2396 = vadd.xlane.f32.xlu0 %v2395
    %v2397 = vpop.xlane.xlu0 %2396
    %v2398 = vsel %vm346, %v2388, 0.0
    %2399 = vadd.xlane.f32.xlu0 %v2398
    %v2400 = vpop.xlane.xlu0 %2399
    %v2401 = vsel %vm346, %v2389, 0.0
    %2402 = vadd.xlane.f32.xlu0 %v2401
    %v2403 = vpop.xlane.xlu0 %2402
    %v2404 = vsel %vm346, %v2390, 0.0
    %2405 = vadd.xlane.f32.xlu0 %v2404
    %v2406 = vpop.xlane.xlu0 %2405
    %v2407 = vsel %vm346, %v2391, 0.0
    %2408 = vadd.xlane.f32.xlu0 %v2407
    %v2409 = vpop.xlane.xlu0 %2408
    %v2410 = vmul.f32 %v2394, %v428
    %v2411 = vmul.f32 %v2397, %v428
    %v2412 = vmul.f32 %v2400, %v428
    %v2413 = vmul.f32 %v2403, %v428
    %v2414 = vmul.f32 %v2406, %v428
    %v2415 = vmul.f32 %v2409, %v428
    %v2416 = vmul.f32 %v2380, %v2380
    %v2417 = vmul.f32 %v2381, %v2381
    %v2418 = vmul.f32 %v2382, %v2382
    %v2419 = vmul.f32 %v2383, %v2383
    %v2420 = vmul.f32 %v2384, %v2384
    %v2421 = vmul.f32 %v2385, %v2385
    %v2422 = vsub.f32 %v2410, %v2416
    %v2423 = vsub.f32 %v2411, %v2417
    %v2424 = vsub.f32 %v2412, %v2418
    %v2425 = vsub.f32 %v2413, %v2419
    %v2426 = vsub.f32 %v2414, %v2420
    %v2427 = vsub.f32 %v2415, %v2421
    %v2428 = vsub.f32 %v2356, %v2380
    %v2429 = vsub.f32 %v2357, %v2381
    %v2430 = vsub.f32 %v2358, %v2382
    %v2431 = vsub.f32 %v2359, %v2383
    %v2432 = vsub.f32 %v2360, %v2384
    %v2433 = vsub.f32 %v2361, %v2385
    %v2434 = vadd.f32 %v2422, 1e-05
    %v2435 = vadd.f32 %v2423, 1e-05
    %v2436 = vadd.f32 %v2424, 1e-05
    %v2437 = vadd.f32 %v2425, 1e-05
    %v2438 = vadd.f32 %v2426, 1e-05
    %v2439 = vadd.f32 %v2427, 1e-05
    %v2440 = vrsqrt.pop %v2434
    %v2441 = vrsqrt.pop %v2435
    %v2442 = vrsqrt.pop %v2436
    %v2443 = vrsqrt.pop %v2437
    %v2444 = vrsqrt.pop %v2438
    %v2445 = vrsqrt.pop %v2439
    %v2446 = vmul.f32 %v2428, %v2440
    %v2447 = vmul.f32 %v2429, %v2441
    %v2448 = vmul.f32 %v2430, %v2442
    %v2449 = vmul.f32 %v2431, %v2443
    %v2450 = vmul.f32 %v2432, %v2444
    %v2451 = vmul.f32 %v2433, %v2445
    %v2452 = vlaneseq
    %v2453 = vshrl.u32 %v2452, 7
    %v2454 = vsub.s32 5, %v2453
    %v2455 = vrot.slane %v1746, %v2454
    %v2456 = vmul.f32 %v2446, %v2455
    %v2457 = vmul.f32 %v2447, %v2455
    %v2458 = vmul.f32 %v2448, %v2455
    %v2459 = vmul.f32 %v2449, %v2455
    %v2460 = vmul.f32 %v2450, %v2455
    %v2461 = vmul.f32 %v2451, %v2455
    %v2462 = vlaneseq
    %v2463 = vshrl.u32 %v2462, 7
    %v2464 = vsub.s32 5, %v2463
    %v2465 = vrot.slane %v1748, %v2464
    %v2466 = vadd.f32 %v2456, %v2465
    %v2467 = vadd.f32 %v2457, %v2465
    %v2468 = vadd.f32 %v2458, %v2465
    %v2469 = vadd.f32 %v2459, %v2465
    %v2470 = vadd.f32 %v2460, %v2465
    %v2471 = vadd.f32 %v2461, %v2465
    %v2472 = vld [vmem:[%s9 + $0x20] sm:$0xf]
    %v2473 = vld [vmem:[%s9 + $0x24] sm:$0xf]
    %v2474 = vld [vmem:[%s9 + $0x28] sm:$0xf]
    %v2475 = vld [vmem:[%s9 + $0x2c] sm:$0xf]
    %v2476 = vld [vmem:[%s9 + $0x30] sm:$0x2]
    %v2477 = vunpack.c.l.bf16 %v2476
    %v2478 = vld [vmem:[%s8 + $0x184] sm:$0xf]
    %v2479 = vld [vmem:[%s8 + $0x188] sm:$0xf]
    %v2480 = vld [vmem:[%s8 + $0x18c] sm:$0xf]
    %v2481 = vld [vmem:[%s8 + $0x190] sm:$0xf]
    %v2482 = vld [vmem:[%s8 + $0x194] sm:$0xf]
    %v2483 = vld [vmem:[%s8 + $0x198] sm:$0xf]
    %v2484 = vld [vmem:[%s8 + $0x19c] sm:$0xf]
    %v2485 = vld [vmem:[%s8 + $0x1a0] sm:$0xf]
    %v2486 = vld [vmem:[%s8 + $0x1a4] sm:$0xf]
    %v2487 = vld [vmem:[%s8 + $0x1a8] sm:$0xf]
    %v2488 = vld [vmem:[%s8 + $0x1ac] sm:$0xf]
    %v2489 = vld [vmem:[%s8 + $0x1b0] sm:$0xf]
    %v2490 = vld [vmem:[%s8 + $0x1b4] sm:$0xf]
    %v2491 = vld [vmem:[%s8 + $0x1b8] sm:$0xf]
    %v2492 = vld [vmem:[%s8 + $0x1bc] sm:$0xf]
    %v2493 = vld [vmem:[%s8 + $0x1c0] sm:$0xf]
    %v2494 = vld [vmem:[%s8 + $0x1cc] sm:$0x4]
    %v2495 = vunpack.c.l.bf16 %v2494
    %v2496 = vpack.c.bf16 %v2467, %v2466
    %v2497 = vpack.c.bf16 %v2469, %v2468
    %v2498 = vpack.c.bf16 %v2471, %v2470
    %v2499 = vlaneseq
    %v2500 = vshrl.u32 %v2499, 7
    %v2501 = vsub.s32 2, %v2500
    %v2502 = vrot.slane %v2477, %v2501
    %v2507 = vunpack.c.l.b16 %v2472
    %v2508 = vunpack.c.l.b16 %v2473
    %v2509 = vunpack.c.l.b16 %v2474
    %v2510 = vunpack.c.l.b16 %v2475
    %v2511 = vpack.c.b16 %v2508, %v2507
    %v2512 = vpack.c.b16 %v2510, %v2509
    %v2516 = vsel %vm346, %v2496, 0
    %v2519 = vsel %vm346, %v2497, 0
    %v2522 = vsel %vm346, %v2498, 0
    %2524 = vmatprep.subr.bf16.mxu0 0
    %2525 = vmatpush1.bf16.msra.mxu0 %v2511
    %2526 = vmatprep.subr.bf16.mxu0 0
    %2527 = vmatpush1.bf16.msra.mxu0 %v2512
    %2528 = vmatprep.subr.bf16.mxu0 0
    %2529 = vmatpush1.bf16.msra.mxu0 0
    %2530 = vmatprep.subr.bf16.mxu0 0
    %2531 = vmatpush1.bf16.msra.mxu0 0
    %2532 = vmatprep.subr.bf16.mxu0 0
    %2533 = vmatpush1.bf16.msra.mxu0 0
    %2534 = vmatprep.subr.bf16.mxu0 0
    %2535 = vmatpush1.bf16.msra.mxu0 0
    %2536 = vmatprep.subr.bf16.mxu0 0
    %2537 = vmatpush1.bf16.msra.mxu0 0
    %2538 = vmatprep.subr.bf16.mxu0 0
    %2539 = vmatpush1.bf16.msra.mxu0 0
    %2540 = vmatprep.subr.bf16.mxu0 0
    %2541 = vmatpush1.bf16.msra.mxu0 0
    %2542 = vmatprep.subr.bf16.mxu0 0
    %2543 = vmatpush1.bf16.msra.mxu0 0
    %2544 = vmatprep.subr.bf16.mxu0 0
    %2545 = vmatpush1.bf16.msra.mxu0 0
    %2546 = vmatprep.subr.bf16.mxu0 0
    %2547 = vmatpush1.bf16.msra.mxu0 0
    %2548 = vmatprep.subr.bf16.mxu0 0
    %2549 = vmatpush1.bf16.msra.mxu0 0
    %2550 = vmatprep.subr.bf16.mxu0 0
    %2551 = vmatpush1.bf16.msra.mxu0 0
    %2552 = vmatprep.subr.bf16.mxu0 0
    %2553 = vmatpush1.bf16.msra.mxu0 0
    %2554 = vmatprep.subr.bf16.mxu0 0
    %2555 = vmatpush1.bf16.msra.mxu0 0
    %2556 = vmatprep.mubr.bf16.mxu0 0
    %2557 = vmatmul.mubr.bf16.gmra.mrb[0].mxu0 %v2516
    %v2558 = vpop.f32.mrb[0].mxu0
    %v2559 = vadd.f32 %v2502, %v2558
    %v2560 = vpop.f32.mrb[0].mxu0
    %v2561 = vpop.f32.mrb[0].mxu0
    %v2562 = vadd.f32 %v2502, %v2561
    %v2563 = vpop.f32.mrb[0].mxu0
    %2564 = vmatprep.mubr.bf16.mxu0 0
    %2565 = vmatmul.mubr.bf16.gmra.mrb[0].mxu0 %v2519
    %v2566 = vpop.f32.mrb[0].mxu0
    %v2567 = vadd.f32 %v2502, %v2566
    %v2568 = vpop.f32.mrb[0].mxu0
    %v2569 = vpop.f32.mrb[0].mxu0
    %v2570 = vadd.f32 %v2502, %v2569
    %v2571 = vpop.f32.mrb[0].mxu0
    %2572 = vmatprep.mubr.bf16.mxu0 0
    %2573 = vmatmul.mubr.bf16.gmra.mrb[0].mxu0 %v2522
    %v2574 = vpop.f32.mrb[0].mxu0
    %v2575 = vadd.f32 %v2502, %v2574
    %v2576 = vpop.f32.mrb[0].mxu0
    %v2577 = vpop.f32.mrb[0].mxu0
    %v2578 = vadd.f32 %v2502, %v2577
    %v2579 = vpop.f32.mrb[0].mxu0
    %2580 = vdwg.mxu0
    %v2581 = vmul.f32 %v2559, %v2559
    %v2582 = vmul.f32 %v2562, %v2562
    %v2583 = vmul.f32 %v2567, %v2567
    %v2584 = vmul.f32 %v2570, %v2570
    %v2585 = vmul.f32 %v2575, %v2575
    %v2586 = vmul.f32 %v2578, %v2578
    %v2587 = vmul.f32 %v2559, %v2581
    %v2588 = vmul.f32 %v2562, %v2582
    %v2589 = vmul.f32 %v2567, %v2583
    %v2590 = vmul.f32 %v2570, %v2584
    %v2591 = vmul.f32 %v2575, %v2585
    %v2592 = vmul.f32 %v2578, %v2586
    %v2593 = vmul.f32 %v2587, 0.044715
    %v2594 = vmul.f32 %v2588, 0.044715
    %v2595 = vmul.f32 %v2589, 0.044715
    %v2596 = vmul.f32 %v2590, 0.044715
    %v2597 = vmul.f32 %v2591, 0.044715
    %v2598 = vmul.f32 %v2592, 0.044715
    %v2599 = vadd.f32 %v2559, %v2593
    %v2600 = vadd.f32 %v2562, %v2594
    %v2601 = vadd.f32 %v2567, %v2595
    %v2602 = vadd.f32 %v2570, %v2596
    %v2603 = vadd.f32 %v2575, %v2597
    %v2604 = vadd.f32 %v2578, %v2598
    %v2605 = vmul.f32 %v2599, 0.7978846
    %v2606 = vmul.f32 %v2600, 0.7978846
    %v2607 = vmul.f32 %v2601, 0.7978846
    %v2608 = vmul.f32 %v2602, 0.7978846
    %v2609 = vmul.f32 %v2603, 0.7978846
    %v2610 = vmul.f32 %v2604, 0.7978846
    %v2611 = vtanh.pop %v2605
    %v2612 = vtanh.pop %v2606
    %v2613 = vtanh.pop %v2607
    %v2614 = vtanh.pop %v2608
    %v2615 = vtanh.pop %v2609
    %v2616 = vtanh.pop %v2610
    %v2617 = vadd.f32 %v2611, 1.0
    %v2618 = vadd.f32 %v2612, 1.0
    %v2619 = vadd.f32 %v2613, 1.0
    %v2620 = vadd.f32 %v2614, 1.0
    %v2621 = vadd.f32 %v2615, 1.0
    %v2622 = vadd.f32 %v2616, 1.0
    %v2623 = vmul.f32 %v2617, 0.5
    %v2624 = vmul.f32 %v2618, 0.5
    %v2625 = vmul.f32 %v2619, 0.5
    %v2626 = vmul.f32 %v2620, 0.5
    %v2627 = vmul.f32 %v2621, 0.5
    %v2628 = vmul.f32 %v2622, 0.5
    %v2629 = vmul.f32 %v2559, %v2623
    %v2630 = vmul.f32 %v2562, %v2624
    %v2631 = vmul.f32 %v2567, %v2625
    %v2632 = vmul.f32 %v2570, %v2626
    %v2633 = vmul.f32 %v2575, %v2627
    %v2634 = vmul.f32 %v2578, %v2628
    %v2635 = vpack.c.bf16 %v2630, %v2629
    %v2636 = vpack.c.bf16 %v2632, %v2631
    %v2637 = vpack.c.bf16 %v2634, %v2633
    %v2638 = vlaneseq
    %v2639 = vshrl.u32 %v2638, 7
    %v2640 = vsub.s32 4, %v2639
    %v2641 = vrot.slane %v2495, %v2640
    %v2658 = vunpack.c.l.b16 %v2478
    %v2659 = vunpack.c.l.b16 %v2479
    %v2660 = vunpack.c.l.b16 %v2480
    %v2661 = vunpack.c.l.b16 %v2481
    %v2662 = vunpack.c.l.b16 %v2482
    %v2663 = vunpack.c.l.b16 %v2483
    %v2664 = vunpack.c.l.b16 %v2484
    %v2665 = vunpack.c.l.b16 %v2485
    %v2666 = vunpack.c.l.b16 %v2486
    %v2667 = vunpack.c.l.b16 %v2487
    %v2668 = vunpack.c.l.b16 %v2488
    %v2669 = vunpack.c.l.b16 %v2489
    %v2670 = vunpack.c.l.b16 %v2490
    %v2671 = vunpack.c.l.b16 %v2491
    %v2672 = vunpack.c.l.b16 %v2492
    %v2673 = vunpack.c.l.b16 %v2493
    %v2674 = vpack.c.b16 %v2659, %v2658
    %v2675 = vpack.c.b16 %v2661, %v2660
    %v2676 = vpack.c.b16 %v2663, %v2662
    %v2677 = vpack.c.b16 %v2665, %v2664
    %v2678 = vpack.c.b16 %v2667, %v2666
    %v2679 = vpack.c.b16 %v2669, %v2668
    %v2680 = vpack.c.b16 %v2671, %v2670
    %v2681 = vpack.c.b16 %v2673, %v2672
    %2690 = vmatprep.subr.bf16.mxu0 0
    %2691 = vmatpush1.bf16.msra.mxu0 %v2674
    %2692 = vmatprep.subr.bf16.mxu0 0
    %2693 = vmatpush1.bf16.msra.mxu0 %v2675
    %2694 = vmatprep.subr.bf16.mxu0 0
    %2695 = vmatpush1.bf16.msra.mxu0 %v2676
    %2696 = vmatprep.subr.bf16.mxu0 0
    %2697 = vmatpush1.bf16.msra.mxu0 %v2677
    %2698 = vmatprep.subr.bf16.mxu0 0
    %2699 = vmatpush1.bf16.msra.mxu0 %v2678
    %2700 = vmatprep.subr.bf16.mxu0 0
    %2701 = vmatpush1.bf16.msra.mxu0 %v2679
    %2702 = vmatprep.subr.bf16.mxu0 0
    %2703 = vmatpush1.bf16.msra.mxu0 %v2680
    %2704 = vmatprep.subr.bf16.mxu0 0
    %2705 = vmatpush1.bf16.msra.mxu0 %v2681
    %2706 = vmatprep.subr.bf16.mxu0 0
    %2707 = vmatpush1.bf16.msra.mxu0 0
    %2708 = vmatprep.subr.bf16.mxu0 0
    %2709 = vmatpush1.bf16.msra.mxu0 0
    %2710 = vmatprep.subr.bf16.mxu0 0
    %2711 = vmatpush1.bf16.msra.mxu0 0
    %2712 = vmatprep.subr.bf16.mxu0 0
    %2713 = vmatpush1.bf16.msra.mxu0 0
    %2714 = vmatprep.subr.bf16.mxu0 0
    %2715 = vmatpush1.bf16.msra.mxu0 0
    %2716 = vmatprep.subr.bf16.mxu0 0
    %2717 = vmatpush1.bf16.msra.mxu0 0
    %2718 = vmatprep.subr.bf16.mxu0 0
    %2719 = vmatpush1.bf16.msra.mxu0 0
    %2720 = vmatprep.subr.bf16.mxu0 0
    %2721 = vmatpush1.bf16.msra.mxu0 0
    %2722 = vmatprep.mubr.bf16.mxu0 0
    %2723 = vmatmul.mubr.bf16.gmra.mrb[0].mxu0 %v2635
    %v2724 = vpop.f32.mrb[0].mxu0
    %v2725 = vadd.f32 %v2641, %v2724
    %v2726 = vpop.f32.mrb[0].mxu0
    %v2727 = vpop.f32.mrb[0].mxu0
    %v2728 = vadd.f32 %v2641, %v2727
    %v2729 = vpop.f32.mrb[0].mxu0
    %2730 = vmatprep.mubr.bf16.mxu0 0
    %2731 = vmatmul.mubr.bf16.gmra.mrb[0].mxu0 %v2636
    %v2732 = vpop.f32.mrb[0].mxu0
    %v2733 = vpop.f32.mrb[0].mxu0
    %v2734 = vpop.f32.mrb[0].mxu0
    %v2735 = vadd.f32 %v2641, %v2734
    %v2736 = vpop.f32.mrb[0].mxu0
    %2737 = vmatprep.mubr.bf16.mxu0 0
    %2738 = vmatmul.mubr.bf16.gmra.mrb[0].mxu0 %v2637
    %v2739 = vpop.f32.mrb[0].mxu0
    %v2740 = vadd.f32 %v2641, %v2739
    %v2741 = vpop.f32.mrb[0].mxu0
    %v2742 = vpop.f32.mrb[0].mxu0
    %v2743 = vpop.f32.mrb[0].mxu0
    %2744 = vdwg.mxu0
    %v2745 = vadd.f32 %v2356, %v2725
    %v2746 = vadd.f32 %v2357, %v2728
    %v2747 = vadd.f32 %v2359, %v2735
    %v2748 = vadd.f32 %v2360, %v2740
    %v2749 = vld [vmem:[%s8 + $0x1c4] sm:$0x8]
    %v2750 = vunpack.c.l.bf16 %v2749
    %v2751 = vld [vmem:[%s8 + $0x1c8] sm:$0x8]
    %v2752 = vunpack.c.l.bf16 %v2751
    %v2753 = vsel %vm346, %v2745, 0.0
    %2754 = vadd.xlane.f32.xlu0 %v2753
    %v2755 = vpop.xlane.xlu0 %2754
    %v2756 = vsel %vm346, %v2746, 0.0
    %2757 = vadd.xlane.f32.xlu0 %v2756
    %v2758 = vpop.xlane.xlu0 %2757
    %v2759 = vsel %vm346, %v2747, 0.0
    %2760 = vadd.xlane.f32.xlu0 %v2759
    %v2761 = vpop.xlane.xlu0 %2760
    %v2762 = vsel %vm346, %v2748, 0.0
    %2763 = vadd.xlane.f32.xlu0 %v2762
    %v2764 = vpop.xlane.xlu0 %2763
    %v2765 = vmul.f32 %v2755, %v428
    %v2766 = vmul.f32 %v2758, %v428
    %v2767 = vmul.f32 %v2761, %v428
    %v2768 = vmul.f32 %v2764, %v428
    %v2769 = vmul.f32 %v2745, %v2745
    %v2770 = vmul.f32 %v2746, %v2746
    %v2771 = vmul.f32 %v2747, %v2747
    %v2772 = vmul.f32 %v2748, %v2748
    %v2773 = vsel %vm346, %v2769, 0.0
    %2774 = vadd.xlane.f32.xlu0 %v2773
    %v2775 = vpop.xlane.xlu0 %2774
    %v2776 = vsel %vm346, %v2770, 0.0
    %2777 = vadd.xlane.f32.xlu0 %v2776
    %v2778 = vpop.xlane.xlu0 %2777
    %v2779 = vsel %vm346, %v2771, 0.0
    %2780 = vadd.xlane.f32.xlu0 %v2779
    %v2781 = vpop.xlane.xlu0 %2780
    %v2782 = vsel %vm346, %v2772, 0.0
    %2783 = vadd.xlane.f32.xlu0 %v2782
    %v2784 = vpop.xlane.xlu0 %2783
    %v2785 = vmul.f32 %v2775, %v428
    %v2786 = vmul.f32 %v2778, %v428
    %v2787 = vmul.f32 %v2781, %v428
    %v2788 = vmul.f32 %v2784, %v428
    %v2789 = vmul.f32 %v2765, %v2765
    %v2790 = vmul.f32 %v2766, %v2766
    %v2791 = vmul.f32 %v2767, %v2767
    %v2792 = vmul.f32 %v2768, %v2768
    %v2793 = vsub.f32 %v2785, %v2789
    %v2794 = vsub.f32 %v2786, %v2790
    %v2795 = vsub.f32 %v2787, %v2791
    %v2796 = vsub.f32 %v2788, %v2792
    %v2797 = vsub.f32 %v2745, %v2765
    %v2798 = vsub.f32 %v2746, %v2766
    %v2799 = vsub.f32 %v2747, %v2767
    %v2800 = vsub.f32 %v2748, %v2768
    %v2801 = vadd.f32 %v2793, 1e-05
    %v2802 = vadd.f32 %v2794, 1e-05
    %v2803 = vadd.f32 %v2795, 1e-05
    %v2804 = vadd.f32 %v2796, 1e-05
    %v2805 = vrsqrt.pop %v2801
    %v2806 = vrsqrt.pop %v2802
    %v2807 = vrsqrt.pop %v2803
    %v2808 = vrsqrt.pop %v2804
    %v2809 = vmul.f32 %v2797, %v2805
    %v2810 = vmul.f32 %v2798, %v2806
    %v2811 = vmul.f32 %v2799, %v2807
    %v2812 = vmul.f32 %v2800, %v2808
    %v2813 = vlaneseq
    %v2814 = vshrl.u32 %v2813, 7
    %v2815 = vsub.s32 6, %v2814
    %v2816 = vrot.slane %v2750, %v2815
    %v2817 = vmul.f32 %v2809, %v2816
    %v2818 = vmul.f32 %v2810, %v2816
    %v2819 = vmul.f32 %v2811, %v2816
    %v2820 = vmul.f32 %v2812, %v2816
    %v2821 = vlaneseq
    %v2822 = vshrl.u32 %v2821, 7
    %v2823 = vsub.s32 6, %v2822
    %v2824 = vrot.slane %v2752, %v2823
    %v2825 = vadd.f32 %v2817, %v2824
    %v2826 = vadd.f32 %v2818, %v2824
    %v2827 = vadd.f32 %v2819, %v2824
    %v2828 = vadd.f32 %v2820, %v2824
    %v2829 = vld [vmem:[%s10] sm:$0xf]
    %v2830 = vld [vmem:[%s10 + $0x4] sm:$0xf]
    %v2831 = vld [vmem:[%s10 + $0x8] sm:$0xf]
    %v2832 = vld [vmem:[%s10 + $0xc] sm:$0xf]
    %v2833 = vpack.c.bf16 %v2826, %v2825
    %v2834 = vpack.c.bf16 %v2828, %v2827
    %v2835 = vld [vmem:[%s11] sm:$0x1]
    %v2836 = vunpack.c.l.bf16 %v2835
    %v2837 = vlaneseq
    %v2838 = vshrl.u32 %v2837, 7
    %v2839 = vsub.s32 0, %v2838
    %v2840 = vrot.slane %v2836, %v2839
    %v2845 = vunpack.c.l.b16 %v2829
    %v2846 = vunpack.c.l.b16 %v2830
    %v2847 = vunpack.c.l.b16 %v2831
    %v2848 = vunpack.c.l.b16 %v2832
    %v2849 = vpack.c.b16 %v2846, %v2845
    %v2850 = vpack.c.b16 %v2848, %v2847
    %v2854 = vsel %vm346, %v2833, 0
    %v2857 = vsel %vm346, %v2834, 0
    %2859 = vmatprep.subr.bf16.mxu0 0
    %2860 = vmatpush1.bf16.msra.mxu0 %v2849
    %2861 = vmatprep.subr.bf16.mxu0 0
    %2862 = vmatpush1.bf16.msra.mxu0 %v2850
    %2863 = vmatprep.subr.bf16.mxu0 0
    %2864 = vmatpush1.bf16.msra.mxu0 0
    %2865 = vmatprep.subr.bf16.mxu0 0
    %2866 = vmatpush1.bf16.msra.mxu0 0
    %2867 = vmatprep.subr.bf16.mxu0 0
    %2868 = vmatpush1.bf16.msra.mxu0 0
    %2869 = vmatprep.subr.bf16.mxu0 0
    %2870 = vmatpush1.bf16.msra.mxu0 0
    %2871 = vmatprep.subr.bf16.mxu0 0
    %2872 = vmatpush1.bf16.msra.mxu0 0
    %2873 = vmatprep.subr.bf16.mxu0 0
    %2874 = vmatpush1.bf16.msra.mxu0 0
    %2875 = vmatprep.subr.bf16.mxu0 0
    %2876 = vmatpush1.bf16.msra.mxu0 0
    %2877 = vmatprep.subr.bf16.mxu0 0
    %2878 = vmatpush1.bf16.msra.mxu0 0
    %2879 = vmatprep.subr.bf16.mxu0 0
    %2880 = vmatpush1.bf16.msra.mxu0 0
    %2881 = vmatprep.subr.bf16.mxu0 0
    %2882 = vmatpush1.bf16.msra.mxu0 0
    %2883 = vmatprep.subr.bf16.mxu0 0
    %2884 = vmatpush1.bf16.msra.mxu0 0
    %2885 = vmatprep.subr.bf16.mxu0 0
    %2886 = vmatpush1.bf16.msra.mxu0 0
    %2887 = vmatprep.subr.bf16.mxu0 0
    %2888 = vmatpush1.bf16.msra.mxu0 0
    %2889 = vmatprep.subr.bf16.mxu0 0
    %2890 = vmatpush1.bf16.msra.mxu0 0
    %2891 = vmatprep.mubr.bf16.mxu0 0
    %2892 = vmatmul.mubr.bf16.gmra.mrb[0].mxu0 %v2854
    %v2893 = vpop.f32.mrb[0].mxu0
    %v2894 = vadd.f32 %v2840, %v2893
    %v2895 = vpop.f32.mrb[0].mxu0
    %v2896 = vpop.f32.mrb[0].mxu0
    %v2897 = vadd.f32 %v2840, %v2896
    %v2898 = vpop.f32.mrb[0].mxu0
    %2899 = vmatprep.mubr.bf16.mxu0 0
    %2900 = vmatmul.mubr.bf16.gmra.mrb[0].mxu0 %v2857
    %v2901 = vpop.f32.mrb[0].mxu0
    %v2902 = vadd.f32 %v2840, %v2901
    %v2903 = vpop.f32.mrb[0].mxu0
    %v2904 = vpop.f32.mrb[0].mxu0
    %v2905 = vadd.f32 %v2840, %v2904
    %v2906 = vpop.f32.mrb[0].mxu0
    %2907 = vdwg.mxu0
    %v2908 = vmax.f32 %v2894, -1.0
    %v2909 = vmax.f32 %v2897, -1.0
    %v2910 = vmax.f32 %v2902, -1.0
    %v2911 = vmax.f32 %v2905, -1.0
    %v2912 = vmin.f32 %v2908, 1.0
    %v2913 = vmin.f32 %v2909, 1.0
    %v2914 = vmin.f32 %v2910, 1.0
    %v2915 = vmin.f32 %v2911, 1.0
    %v2916 = vsub.f32 %v55, %v2912
    %v2917 = vsub.f32 %v56, %v2913
    %v2918 = vsub.f32 %v57, %v2914
    %v2919 = vsub.f32 %v58, %v2915
    %v2920 = vmul.f32 %v2916, %v2916
    %v2921 = vmul.f32 %v2917, %v2917
    %v2922 = vmul.f32 %v2918, %v2918
    %v2923 = vmul.f32 %v2919, %v2919
    %v2924 = vsel %vm215, %v2920, 0.0
    %v2925 = vsel %vm215, %v2921, 0.0
    %v2926 = vadd.f32 %v2924, %v2925
    %v2927 = vsel %vm215, %v2922, 0.0
    %v2928 = vadd.f32 %v2926, %v2927
    %v2929 = vsel %vm215, %v2923, 0.0
    %v2930 = vadd.f32 %v2928, %v2929
    %2931 = vadd.xlane.f32.xlu0 %v2930
    %v2932 = vpop.xlane.xlu0 %2931
    %v2933 = vrot.slane %v2932, 4
    %v2934 = vadd.f32 %v2932, %v2933
    %v2935 = vrot.slane %v2934, 2
    %v2936 = vadd.f32 %v2934, %v2935
    %v2937 = vrot.slane %v2936, 1
    %v2938 = vadd.f32 %v2936, %v2937
    %s2939 = vtos %v2938
    %s2940 = smul.f32 %s2939, 0.00048828125
    %s2941 = scalar_lea.smem [#allocation2], 0
    %2942 = sst [smem:[%s2941]] %s2940
    // Predicated region
    $region50: #{rin_diffusion_forward.1} parent=1 // pred_check
      _
    $region51: #{rin_diffusion_forward.1} parent=1 // pred_check_branch
      %2944 = sbr.rel (0) target = $region53
    $region52: #{rin_diffusion_forward.1} parent=1 // pred_region
      %s2946 = ssub.s32 16, 16
      %2947 = vsyncadd [#allocation3], %s2946
      %2950 = dma.smem_to_hbm [#allocation2], 16, %s12, [#allocation3]
    $region53: #{rin_diffusion_forward.1} parent=1 // pred_fallthru
      _
    // Predicated region
    $region54: #{rin_diffusion_forward.1} parent=1 // pred_check
      _
    $region55: #{rin_diffusion_forward.1} parent=1 // pred_check_branch
      %2952 = sbr.rel (0) target = $region57
    $region56: #{rin_diffusion_forward.1} parent=1 // pred_region
      %2953 = dma.done [#allocation3], 16
    $region57: #{rin_diffusion_forward.1} parent=1 // pred_fallthru
      _
    %2954 = sfence
    %2955 = vsyncpa [#allocation3], 1

</llo_original>
